<compile_context>
chip_gen: v5e
topology: v5e:2x2
jax: 0.10.0
libtpu: 0.0.40
codegen_flags: <defaults>
</compile_context>

<pallas_src>
import functools
import math

import numpy as np
import jax
import jax.numpy as jnp
from jax.experimental import pallas as pl
from jax.experimental.pallas import tpu as pltpu


# ----------------------------- in-kernel helpers ----------------------------


def _elu(x):
    # PyTorch nn.ELU (alpha=1).  Clamp the discarded branch so exp never
    # overflows on large positive inputs.
    return jnp.where(x > 0, x, jnp.exp(jnp.minimum(x, 0.0)) - 1.0)


def _conv3x3_rowmm(x, m, b, *, stride, elu):
    """3x3 conv, padding=1, on a (H, W*Cin) lane-packed activation as ONE matmul.

    `m` is the host-prebuilt (3*W*Cin, Wo*Cout) row-conv matrix (even output
    columns already selected when stride==2); `b` is the bias tiled to
    (1, Wo*Cout).  Accumulation is f32; operands are cast to bf16.
    """
    H, WC = x.shape
    zrow = jnp.zeros((1, WC), jnp.float32)
    up = jnp.concatenate([zrow, x[:H - 1, :]], axis=0)   # row h holds x[h-1] (zero pad)
    dn = jnp.concatenate([x[1:, :], zrow], axis=0)       # row h holds x[h+1] (zero pad)
    lhs = jnp.concatenate([up, x, dn], axis=1)           # (H, 3*W*Cin), lane-dense
    out = jnp.dot(lhs.astype(jnp.bfloat16), m,
                  preferred_element_type=jnp.float32) + b  # (H, Wo*Cout)
    if elu:
        out = _elu(out)
    if stride == 2:                                      # keep even output rows only
        out = jnp.concatenate(
            [out[2 * i:2 * i + 1, :] for i in range(H // 2)], axis=0)
    return out


def _upsample2x(x, u):
    """Nearest-neighbour 2x upsample of a (H, W*C) activation.

    Rows: duplicate via slice+concat.  Columns: exact 0/1 selection matmul `u`
    of shape (W*C, 2*W*C), kept in f32 so the op is pure data movement.
    """
    H, WC = x.shape
    pieces = []
    for i in range(H):
        r = x[i:i + 1, :]
        pieces += [r, r]
    xr = jnp.concatenate(pieces, axis=0)                 # (2H, W*C)
    return jnp.dot(xr, u, preferred_element_type=jnp.float32)  # (2H, 2*W*C)


def _d_fused_kernel(*refs, enc_ops, dec_ops):
    """Whole BeGAN-D forward for one batch element (grid over batch)."""
    x_ref, o_ref = refs[0], refs[-1]
    it = iter(refs[1:-1])

    x = x_ref[0]                                         # (H0, W0*Cin0), f32

    # ----- encoder -----
    for op in enc_ops:
        m_ref, b_ref = next(it), next(it)
        x = _conv3x3_rowmm(x, m_ref[...], b_ref[...], **op["args"])

    # ----- fc_encode (torch NCHW flatten folded into we3 as a permutation) -----
    we_ref, be_ref = next(it), next(it)
    wd_ref, bd_ref = next(it), next(it)
    s = x.shape[0]                                       # encoder spatial size (8)
    z = be_ref[...]                                      # (1, h)
    for hh in range(s):
        z = z + jnp.dot(x[hh:hh + 1, :].astype(jnp.bfloat16), we_ref[hh],
                        preferred_element_type=jnp.float32)

    # ----- fc_decode (+ .view(-1,n,8,8) -> lane-packed NHWC, folded into wd3/bd2)
    zb = z.astype(jnp.bfloat16)
    bd = bd_ref[...]                                     # (8, 8*n)
    rows = [jnp.dot(zb, wd_ref[hh], preferred_element_type=jnp.float32)
            + bd[hh:hh + 1, :] for hh in range(bd.shape[0])]
    x = jnp.concatenate(rows, axis=0)                    # (8, 8*n)

    # ----- decoder -----
    for op in dec_ops:
        if op["kind"] == "conv":
            m_ref, b_ref = next(it), next(it)
            x = _conv3x3_rowmm(x, m_ref[...], b_ref[...], **op["args"])
        else:                                            # nearest 2x upsample
            u_ref = next(it)
            x = _upsample2x(x, u_ref[...])

    o_ref[0] = x                                         # (W0, W0*channel)


# --------------------- host-side parameter construction ---------------------


def _uniform(key, shape, fan_in):
    bound = 1.0 / math.sqrt(fan_in)
    return jax.random.uniform(key, shape, jnp.float32, -bound, bound)


def _row_conv_matrix(w_oihw, width, stride=1):
    """Fold a 3x3/pad=1 conv into a (3*W*Cin, Wo*Cout) matrix acting on three
    vertically shifted copies of a (W*Cin)-lane-packed row.  Column padding and
    (for stride=2) the even-column selection are baked in."""
    cout, cin, _, _ = w_oihw.shape
    wo = width // stride
    m = np.zeros((3 * width * cin, wo * cout), np.float32)
    for kh in range(3):
        for j in range(wo):
            for kw in range(3):
                q = stride * j + kw - 1                  # input column (pre-pad coords)
                if q < 0 or q >= width:
                    continue                             # zero padding -> no entry
                r0 = kh * width * cin + q * cin
                m[r0:r0 + cin, j * cout:(j + 1) * cout] = w_oihw[:, :, kh, kw].T
    return m


def _upsample_matrix(width, c):
    """0/1 matrix expanding a (., W*C) row to (., 2W*C) by nearest duplication."""
    u = np.zeros((width * c, 2 * width * c), np.float32)
    for j in range(2 * width):
        for ci in range(c):
            u[(j // 2) * c + ci, j * c + ci] = 1.0
    return u


def build_d(key, h, n, input_dim=(3, 16, 16)):
    """Create torch-layout parameters for BeGAN D and convert them to the fused
    kernel's operand list (in consumption order) plus static op metadata."""
    channel, width, height = input_dim
    blocks = int(np.log2(width) - 2)
    print('[!] {} blocks in D '.format(blocks))
    keys = iter(jax.random.split(key, 256))

    def conv_torch(cin, cout):                           # nn.Conv2d default init
        fan_in = cin * 9
        w = np.asarray(_uniform(next(keys), (cout, cin, 3, 3), fan_in))
        b = np.asarray(_uniform(next(keys), (cout,), fan_in))
        return w, b

    def lin_torch(din, dout):                            # nn.Linear default init
        w = np.asarray(_uniform(next(keys), (dout, din), din))
        b = np.asarray(_uniform(next(keys), (dout,), din))
        return w, b

    arrays, enc_ops, dec_ops = [], [], []

    def add_conv(ops, cin, cout, w_in, stride, elu):
        wt, bt = conv_torch(cin, cout)
        m = _row_conv_matrix(wt, w_in, stride)
        beff = np.tile(bt, w_in // stride).reshape(1, -1)
        arrays.append(jnp.asarray(m, jnp.bfloat16))
        arrays.append(jnp.asarray(beff, jnp.float32))
        ops.append({"kind": "conv", "args": dict(stride=stride, elu=elu)})

    # ----- encoder -----
    add_conv(enc_ops, 3, n, width, 1, False)             # first conv, no ELU
    prev, cur_w = n, width
    for i in range(blocks):
        ch = (i + 1) * n
        add_conv(enc_ops, prev, ch, cur_w, 1, True)
        add_conv(enc_ops, ch, ch, cur_w, 1, True)
        if i < blocks - 1:
            add_conv(enc_ops, ch, ch, cur_w, 2, True)    # downsampling conv
            cur_w //= 2
        prev = ch
    assert cur_w == 8 and prev == blocks * n

    # ----- fc_encode / fc_decode with layout permutations folded in -----
    c_enc, s = blocks * n, 8
    we_t, be_t = lin_torch(s * s * c_enc, h)
    we3 = np.zeros((s, s * c_enc, h), np.float32)        # (h_row, w*C+c, out)
    for hh in range(s):
        for ww in range(s):
            for c in range(c_enc):
                we3[hh, ww * c_enc + c, :] = we_t[:, c * s * s + hh * s + ww]
    arrays.append(jnp.asarray(we3, jnp.bfloat16))
    arrays.append(jnp.asarray(be_t.reshape(1, h), jnp.float32))

    wd_t, bd_t = lin_torch(h, s * s * n)
    wd3 = np.zeros((s, h, s * n), np.float32)            # (h_row, in, w*n+c)
    bd2 = np.zeros((s, s * n), np.float32)
    for hh in range(s):
        for ww in range(s):
            for c in range(n):
                wd3[hh, :, ww * n + c] = wd_t[c * s * s + hh * s + ww, :]
                bd2[hh, ww * n + c] = bd_t[c * s * s + hh * s + ww]
    arrays.append(jnp.asarray(wd3, jnp.bfloat16))
    arrays.append(jnp.asarray(bd2, jnp.float32))

    # ----- decoder -----
    cur_w = 8
    for i in range(blocks):
        add_conv(dec_ops, n, n, cur_w, 1, True)
        add_conv(dec_ops, n, n, cur_w, 1, True)
        if i < blocks - 1:
            arrays.append(jnp.asarray(_upsample_matrix(cur_w, n), jnp.float32))
            dec_ops.append({"kind": "upsample", "args": {}})
            cur_w *= 2
    add_conv(dec_ops, n, channel, cur_w, 1, False)       # final conv, no activation
    assert cur_w == width

    return dict(arrays=arrays, enc_ops=tuple(enc_ops), dec_ops=tuple(dec_ops),
                n=n, h=h, channel=channel, width=width, blocks=blocks)


# --------------------------------- forward ----------------------------------


def d_forward(model, x_nchw):
    """BeGAN D forward.  Accepts/returns NCHW like the PyTorch module; the whole
    network runs inside ONE Pallas kernel (grid over batch only)."""
    N, C, H, W = x_nchw.shape
    channel, width = model["channel"], model["width"]
    assert H == W == width

    # Boundary layout glue only: NCHW -> lane-packed NHWC rows (N, H, W*C).
    x_in = jnp.transpose(x_nchw, (0, 2, 3, 1)).astype(jnp.float32).reshape(N, H, W * C)

    arrays = model["arrays"]
    kernel = functools.partial(_d_fused_kernel,
                               enc_ops=model["enc_ops"], dec_ops=model["dec_ops"])

    in_specs = [pl.BlockSpec((1, H, W * C), lambda i: (i, 0, 0))]
    for a in arrays:                                     # whole-array VMEM blocks
        in_specs.append(pl.BlockSpec(a.shape, lambda i, nd=a.ndim: (0,) * nd))

    out = pl.pallas_call(
        kernel,
        grid=(N,),                                       # batch-parallel: 2 TCs on v7x
        in_specs=in_specs,
        out_specs=pl.BlockSpec((1, width, width * channel), lambda i: (i, 0, 0)),
        out_shape=jax.ShapeDtypeStruct((N, width, width * channel), jnp.float32),
        compiler_params=pltpu.CompilerParams(
            dimension_semantics=("parallel",)),
    )(x_in, *arrays)

    # lane-packed NHWC rows -> NCHW (boundary glue only).
    return jnp.transpose(out.reshape(N, width, width, channel), (0, 3, 1, 2))


# ----------------------------------- main ------------------------------------

if __name__ == "__main__":
    key = jax.random.PRNGKey(0)
    pkey, xkey = jax.random.split(key)

    h, n = 8, 4
    input_dim = (3, 16, 16)                              # -> blocks = 2
    model = build_d(pkey, h, n, input_dim)

    x = jax.random.normal(xkey, (2,) + input_dim, dtype=jnp.float32)  # (2,3,16,16)

    fwd = jax.jit(functools.partial(d_forward, model))
    out = jax.block_until_ready(fwd(x))

    assert out.shape == (2, 3, 16, 16), out.shape
    assert out.dtype == jnp.float32
    assert bool(jnp.all(jnp.isfinite(out)))
    print("KERNEL_OK")
</pallas_src>

<mosaic_0001>
module attributes {stable_mosaic.version = 11 : i64} {
  func.func @_d_fused_kernel(%arg0: i32, %arg1: memref<1x16x48xf32, #tpu.memory_space<vmem>>, %arg2: memref<144x64xbf16, #tpu.memory_space<vmem>>, %arg3: memref<1x64xf32, #tpu.memory_space<vmem>>, %arg4: memref<192x64xbf16, #tpu.memory_space<vmem>>, %arg5: memref<1x64xf32, #tpu.memory_space<vmem>>, %arg6: memref<192x64xbf16, #tpu.memory_space<vmem>>, %arg7: memref<1x64xf32, #tpu.memory_space<vmem>>, %arg8: memref<192x32xbf16, #tpu.memory_space<vmem>>, %arg9: memref<1x32xf32, #tpu.memory_space<vmem>>, %arg10: memref<96x64xbf16, #tpu.memory_space<vmem>>, %arg11: memref<1x64xf32, #tpu.memory_space<vmem>>, %arg12: memref<192x64xbf16, #tpu.memory_space<vmem>>, %arg13: memref<1x64xf32, #tpu.memory_space<vmem>>, %arg14: memref<8x64x8xbf16, #tpu.memory_space<vmem>>, %arg15: memref<1x8xf32, #tpu.memory_space<vmem>>, %arg16: memref<8x8x32xbf16, #tpu.memory_space<vmem>>, %arg17: memref<8x32xf32, #tpu.memory_space<vmem>>, %arg18: memref<96x32xbf16, #tpu.memory_space<vmem>>, %arg19: memref<1x32xf32, #tpu.memory_space<vmem>>, %arg20: memref<96x32xbf16, #tpu.memory_space<vmem>>, %arg21: memref<1x32xf32, #tpu.memory_space<vmem>>, %arg22: memref<32x64xf32, #tpu.memory_space<vmem>>, %arg23: memref<192x64xbf16, #tpu.memory_space<vmem>>, %arg24: memref<1x64xf32, #tpu.memory_space<vmem>>, %arg25: memref<192x64xbf16, #tpu.memory_space<vmem>>, %arg26: memref<1x64xf32, #tpu.memory_space<vmem>>, %arg27: memref<192x48xbf16, #tpu.memory_space<vmem>>, %arg28: memref<1x48xf32, #tpu.memory_space<vmem>>, %arg29: memref<1x16x48xf32, #tpu.memory_space<vmem>>) attributes {dimension_semantics = [#tpu.dimension_semantics<parallel>], iteration_bounds = array<i64: 2>, scalar_prefetch = 0 : i64, scratch_operands = 0 : i64, tpu.core_type = #tpu.core_type<tc>, window_params = [{transform_indices = @transform_0, window_bounds = array<i64: 1, 16, 48>}, {pipeline_mode = #tpu.pipeline_mode<synchronous>, transform_indices = @transform_1, window_bounds = array<i64: 144, 64>}, {pipeline_mode = #tpu.pipeline_mode<synchronous>, transform_indices = @transform_2, window_bounds = array<i64: 1, 64>}, {pipeline_mode = #tpu.pipeline_mode<synchronous>, transform_indices = @transform_3, window_bounds = array<i64: 192, 64>}, {pipeline_mode = #tpu.pipeline_mode<synchronous>, transform_indices = @transform_4, window_bounds = array<i64: 1, 64>}, {pipeline_mode = #tpu.pipeline_mode<synchronous>, transform_indices = @transform_5, window_bounds = array<i64: 192, 64>}, {pipeline_mode = #tpu.pipeline_mode<synchronous>, transform_indices = @transform_6, window_bounds = array<i64: 1, 64>}, {pipeline_mode = #tpu.pipeline_mode<synchronous>, transform_indices = @transform_7, window_bounds = array<i64: 192, 32>}, {pipeline_mode = #tpu.pipeline_mode<synchronous>, transform_indices = @transform_8, window_bounds = array<i64: 1, 32>}, {pipeline_mode = #tpu.pipeline_mode<synchronous>, transform_indices = @transform_9, window_bounds = array<i64: 96, 64>}, {pipeline_mode = #tpu.pipeline_mode<synchronous>, transform_indices = @transform_10, window_bounds = array<i64: 1, 64>}, {pipeline_mode = #tpu.pipeline_mode<synchronous>, transform_indices = @transform_11, window_bounds = array<i64: 192, 64>}, {pipeline_mode = #tpu.pipeline_mode<synchronous>, transform_indices = @transform_12, window_bounds = array<i64: 1, 64>}, {pipeline_mode = #tpu.pipeline_mode<synchronous>, transform_indices = @transform_13, window_bounds = array<i64: 8, 64, 8>}, {pipeline_mode = #tpu.pipeline_mode<synchronous>, transform_indices = @transform_14, window_bounds = array<i64: 1, 8>}, {pipeline_mode = #tpu.pipeline_mode<synchronous>, transform_indices = @transform_15, window_bounds = array<i64: 8, 8, 32>}, {pipeline_mode = #tpu.pipeline_mode<synchronous>, transform_indices = @transform_16, window_bounds = array<i64: 8, 32>}, {pipeline_mode = #tpu.pipeline_mode<synchronous>, transform_indices = @transform_17, window_bounds = array<i64: 96, 32>}, {pipeline_mode = #tpu.pipeline_mode<synchronous>, transform_indices = @transform_18, window_bounds = array<i64: 1, 32>}, {pipeline_mode = #tpu.pipeline_mode<synchronous>, transform_indices = @transform_19, window_bounds = array<i64: 96, 32>}, {pipeline_mode = #tpu.pipeline_mode<synchronous>, transform_indices = @transform_20, window_bounds = array<i64: 1, 32>}, {pipeline_mode = #tpu.pipeline_mode<synchronous>, transform_indices = @transform_21, window_bounds = array<i64: 32, 64>}, {pipeline_mode = #tpu.pipeline_mode<synchronous>, transform_indices = @transform_22, window_bounds = array<i64: 192, 64>}, {pipeline_mode = #tpu.pipeline_mode<synchronous>, transform_indices = @transform_23, window_bounds = array<i64: 1, 64>}, {pipeline_mode = #tpu.pipeline_mode<synchronous>, transform_indices = @transform_24, window_bounds = array<i64: 192, 64>}, {pipeline_mode = #tpu.pipeline_mode<synchronous>, transform_indices = @transform_25, window_bounds = array<i64: 1, 64>}, {pipeline_mode = #tpu.pipeline_mode<synchronous>, transform_indices = @transform_26, window_bounds = array<i64: 192, 48>}, {pipeline_mode = #tpu.pipeline_mode<synchronous>, transform_indices = @transform_27, window_bounds = array<i64: 1, 48>}, {transform_indices = @transform_28, window_bounds = array<i64: 1, 16, 48>}]} {
    %c0 = arith.constant 0 : index
    %c0_0 = arith.constant 0 : index
    %c0_1 = arith.constant 0 : index
    %0 = vector.load %arg1[%c0, %c0_0, %c0_1] : memref<1x16x48xf32, #tpu.memory_space<vmem>>, vector<1x16x48xf32>
    %1 = vector.shape_cast %0 : vector<1x16x48xf32> to vector<16x48xf32>
    %c0_2 = arith.constant 0 : index
    %c0_3 = arith.constant 0 : index
    %2 = vector.load %arg2[%c0_2, %c0_3] : memref<144x64xbf16, #tpu.memory_space<vmem>>, vector<144x64xbf16>
    %c0_4 = arith.constant 0 : index
    %c0_5 = arith.constant 0 : index
    %3 = vector.load %arg3[%c0_4, %c0_5] : memref<1x64xf32, #tpu.memory_space<vmem>>, vector<1x64xf32>
    %cst = arith.constant 0.000000e+00 : f32
    %4 = vector.broadcast %cst : f32 to vector<1x48xf32>
    %5 = vector.extract_strided_slice %1 {offsets = [0, 0], sizes = [15, 48], strides = [1, 1]} : vector<16x48xf32> to vector<15x48xf32>
    %6 = tpu.concatenate %4, %5 in 0 : vector<1x48xf32>, vector<15x48xf32> -> vector<16x48xf32>
    %7 = vector.extract_strided_slice %1 {offsets = [1, 0], sizes = [15, 48], strides = [1, 1]} : vector<16x48xf32> to vector<15x48xf32>
    %8 = tpu.concatenate %7, %4 in 0 : vector<15x48xf32>, vector<1x48xf32> -> vector<16x48xf32>
    %9 = tpu.concatenate %6, %1, %8 in 1 : vector<16x48xf32>, vector<16x48xf32>, vector<16x48xf32> -> vector<16x144xf32>
    %10 = arith.truncf %9 : vector<16x144xf32> to vector<16x144xbf16>
    %cst_6 = arith.constant dense<0.000000e+00> : vector<16x64xf32>
    %11 = tpu.matmul %10, %2, %cst_6 {dimension_numbers = #tpu.dot_dimension_numbers<[1], [0], [0], [1], [0, 0, 1, 1], [], []>} : vector<16x144xbf16>, vector<144x64xbf16>, vector<16x64xf32> -> vector<16x64xf32>
    %12 = vector.broadcast %3 : vector<1x64xf32> to vector<16x64xf32>
    %13 = arith.addf %11, %12 : vector<16x64xf32>
    %c0_7 = arith.constant 0 : index
    %c0_8 = arith.constant 0 : index
    %14 = vector.load %arg4[%c0_7, %c0_8] : memref<192x64xbf16, #tpu.memory_space<vmem>>, vector<192x64xbf16>
    %c0_9 = arith.constant 0 : index
    %c0_10 = arith.constant 0 : index
    %15 = vector.load %arg5[%c0_9, %c0_10] : memref<1x64xf32, #tpu.memory_space<vmem>>, vector<1x64xf32>
    %cst_11 = arith.constant 0.000000e+00 : f32
    %16 = vector.broadcast %cst_11 : f32 to vector<1x64xf32>
    %17 = vector.extract_strided_slice %13 {offsets = [0, 0], sizes = [15, 64], strides = [1, 1]} : vector<16x64xf32> to vector<15x64xf32>
    %18 = tpu.concatenate %16, %17 in 0 : vector<1x64xf32>, vector<15x64xf32> -> vector<16x64xf32>
    %19 = vector.extract_strided_slice %13 {offsets = [1, 0], sizes = [15, 64], strides = [1, 1]} : vector<16x64xf32> to vector<15x64xf32>
    %20 = tpu.concatenate %19, %16 in 0 : vector<15x64xf32>, vector<1x64xf32> -> vector<16x64xf32>
    %21 = tpu.concatenate %18, %13, %20 in 1 : vector<16x64xf32>, vector<16x64xf32>, vector<16x64xf32> -> vector<16x192xf32>
    %22 = arith.truncf %21 : vector<16x192xf32> to vector<16x192xbf16>
    %cst_12 = arith.constant dense<0.000000e+00> : vector<16x64xf32>
    %23 = tpu.matmul %22, %14, %cst_12 {dimension_numbers = #tpu.dot_dimension_numbers<[1], [0], [0], [1], [0, 0, 1, 1], [], []>} : vector<16x192xbf16>, vector<192x64xbf16>, vector<16x64xf32> -> vector<16x64xf32>
    %24 = vector.broadcast %15 : vector<1x64xf32> to vector<16x64xf32>
    %25 = arith.addf %23, %24 : vector<16x64xf32>
    %cst_13 = arith.constant 0.000000e+00 : f32
    %26 = vector.broadcast %cst_13 : f32 to vector<16x64xf32>
    %27 = arith.cmpf ogt, %25, %26 : vector<16x64xf32>
    %cst_14 = arith.constant 0.000000e+00 : f32
    %28 = vector.broadcast %cst_14 : f32 to vector<16x64xf32>
    %29 = arith.minimumf %25, %28 : vector<16x64xf32>
    %30 = math.exp %29 : vector<16x64xf32>
    %cst_15 = arith.constant 1.000000e+00 : f32
    %31 = vector.broadcast %cst_15 : f32 to vector<16x64xf32>
    %32 = arith.subf %30, %31 : vector<16x64xf32>
    %33 = arith.select %27, %25, %32 : vector<16x64xi1>, vector<16x64xf32>
    %c0_16 = arith.constant 0 : index
    %c0_17 = arith.constant 0 : index
    %34 = vector.load %arg6[%c0_16, %c0_17] : memref<192x64xbf16, #tpu.memory_space<vmem>>, vector<192x64xbf16>
    %c0_18 = arith.constant 0 : index
    %c0_19 = arith.constant 0 : index
    %35 = vector.load %arg7[%c0_18, %c0_19] : memref<1x64xf32, #tpu.memory_space<vmem>>, vector<1x64xf32>
    %cst_20 = arith.constant 0.000000e+00 : f32
    %36 = vector.broadcast %cst_20 : f32 to vector<1x64xf32>
    %37 = vector.extract_strided_slice %33 {offsets = [0, 0], sizes = [15, 64], strides = [1, 1]} : vector<16x64xf32> to vector<15x64xf32>
    %38 = tpu.concatenate %36, %37 in 0 : vector<1x64xf32>, vector<15x64xf32> -> vector<16x64xf32>
    %39 = vector.extract_strided_slice %33 {offsets = [1, 0], sizes = [15, 64], strides = [1, 1]} : vector<16x64xf32> to vector<15x64xf32>
    %40 = tpu.concatenate %39, %36 in 0 : vector<15x64xf32>, vector<1x64xf32> -> vector<16x64xf32>
    %41 = tpu.concatenate %38, %33, %40 in 1 : vector<16x64xf32>, vector<16x64xf32>, vector<16x64xf32> -> vector<16x192xf32>
    %42 = arith.truncf %41 : vector<16x192xf32> to vector<16x192xbf16>
    %cst_21 = arith.constant dense<0.000000e+00> : vector<16x64xf32>
    %43 = tpu.matmul %42, %34, %cst_21 {dimension_numbers = #tpu.dot_dimension_numbers<[1], [0], [0], [1], [0, 0, 1, 1], [], []>} : vector<16x192xbf16>, vector<192x64xbf16>, vector<16x64xf32> -> vector<16x64xf32>
    %44 = vector.broadcast %35 : vector<1x64xf32> to vector<16x64xf32>
    %45 = arith.addf %43, %44 : vector<16x64xf32>
    %cst_22 = arith.constant 0.000000e+00 : f32
    %46 = vector.broadcast %cst_22 : f32 to vector<16x64xf32>
    %47 = arith.cmpf ogt, %45, %46 : vector<16x64xf32>
    %cst_23 = arith.constant 0.000000e+00 : f32
    %48 = vector.broadcast %cst_23 : f32 to vector<16x64xf32>
    %49 = arith.minimumf %45, %48 : vector<16x64xf32>
    %50 = math.exp %49 : vector<16x64xf32>
    %cst_24 = arith.constant 1.000000e+00 : f32
    %51 = vector.broadcast %cst_24 : f32 to vector<16x64xf32>
    %52 = arith.subf %50, %51 : vector<16x64xf32>
    %53 = arith.select %47, %45, %52 : vector<16x64xi1>, vector<16x64xf32>
    %c0_25 = arith.constant 0 : index
    %c0_26 = arith.constant 0 : index
    %54 = vector.load %arg8[%c0_25, %c0_26] : memref<192x32xbf16, #tpu.memory_space<vmem>>, vector<192x32xbf16>
    %c0_27 = arith.constant 0 : index
    %c0_28 = arith.constant 0 : index
    %55 = vector.load %arg9[%c0_27, %c0_28] : memref<1x32xf32, #tpu.memory_space<vmem>>, vector<1x32xf32>
    %cst_29 = arith.constant 0.000000e+00 : f32
    %56 = vector.broadcast %cst_29 : f32 to vector<1x64xf32>
    %57 = vector.extract_strided_slice %53 {offsets = [0, 0], sizes = [15, 64], strides = [1, 1]} : vector<16x64xf32> to vector<15x64xf32>
    %58 = tpu.concatenate %56, %57 in 0 : vector<1x64xf32>, vector<15x64xf32> -> vector<16x64xf32>
    %59 = vector.extract_strided_slice %53 {offsets = [1, 0], sizes = [15, 64], strides = [1, 1]} : vector<16x64xf32> to vector<15x64xf32>
    %60 = tpu.concatenate %59, %56 in 0 : vector<15x64xf32>, vector<1x64xf32> -> vector<16x64xf32>
    %61 = tpu.concatenate %58, %53, %60 in 1 : vector<16x64xf32>, vector<16x64xf32>, vector<16x64xf32> -> vector<16x192xf32>
    %62 = arith.truncf %61 : vector<16x192xf32> to vector<16x192xbf16>
    %cst_30 = arith.constant dense<0.000000e+00> : vector<16x32xf32>
    %63 = tpu.matmul %62, %54, %cst_30 {dimension_numbers = #tpu.dot_dimension_numbers<[1], [0], [0], [1], [0, 0, 1, 1], [], []>} : vector<16x192xbf16>, vector<192x32xbf16>, vector<16x32xf32> -> vector<16x32xf32>
    %64 = vector.broadcast %55 : vector<1x32xf32> to vector<16x32xf32>
    %65 = arith.addf %63, %64 : vector<16x32xf32>
    %cst_31 = arith.constant 0.000000e+00 : f32
    %66 = vector.broadcast %cst_31 : f32 to vector<16x32xf32>
    %67 = arith.cmpf ogt, %65, %66 : vector<16x32xf32>
    %cst_32 = arith.constant 0.000000e+00 : f32
    %68 = vector.broadcast %cst_32 : f32 to vector<16x32xf32>
    %69 = arith.minimumf %65, %68 : vector<16x32xf32>
    %70 = math.exp %69 : vector<16x32xf32>
    %cst_33 = arith.constant 1.000000e+00 : f32
    %71 = vector.broadcast %cst_33 : f32 to vector<16x32xf32>
    %72 = arith.subf %70, %71 : vector<16x32xf32>
    %73 = arith.select %67, %65, %72 : vector<16x32xi1>, vector<16x32xf32>
    %74 = vector.extract_strided_slice %73 {offsets = [0, 0], sizes = [1, 32], strides = [1, 1]} : vector<16x32xf32> to vector<1x32xf32>
    %75 = vector.extract_strided_slice %73 {offsets = [2, 0], sizes = [1, 32], strides = [1, 1]} : vector<16x32xf32> to vector<1x32xf32>
    %76 = vector.extract_strided_slice %73 {offsets = [4, 0], sizes = [1, 32], strides = [1, 1]} : vector<16x32xf32> to vector<1x32xf32>
    %77 = vector.extract_strided_slice %73 {offsets = [6, 0], sizes = [1, 32], strides = [1, 1]} : vector<16x32xf32> to vector<1x32xf32>
    %78 = vector.extract_strided_slice %73 {offsets = [8, 0], sizes = [1, 32], strides = [1, 1]} : vector<16x32xf32> to vector<1x32xf32>
    %79 = vector.extract_strided_slice %73 {offsets = [10, 0], sizes = [1, 32], strides = [1, 1]} : vector<16x32xf32> to vector<1x32xf32>
    %80 = vector.extract_strided_slice %73 {offsets = [12, 0], sizes = [1, 32], strides = [1, 1]} : vector<16x32xf32> to vector<1x32xf32>
    %81 = vector.extract_strided_slice %73 {offsets = [14, 0], sizes = [1, 32], strides = [1, 1]} : vector<16x32xf32> to vector<1x32xf32>
    %82 = tpu.concatenate %74, %75, %76, %77, %78, %79, %80, %81 in 0 : vector<1x32xf32>, vector<1x32xf32>, vector<1x32xf32>, vector<1x32xf32>, vector<1x32xf32>, vector<1x32xf32>, vector<1x32xf32>, vector<1x32xf32> -> vector<8x32xf32>
    %c0_34 = arith.constant 0 : index
    %c0_35 = arith.constant 0 : index
    %83 = vector.load %arg10[%c0_34, %c0_35] : memref<96x64xbf16, #tpu.memory_space<vmem>>, vector<96x64xbf16>
    %c0_36 = arith.constant 0 : index
    %c0_37 = arith.constant 0 : index
    %84 = vector.load %arg11[%c0_36, %c0_37] : memref<1x64xf32, #tpu.memory_space<vmem>>, vector<1x64xf32>
    %cst_38 = arith.constant 0.000000e+00 : f32
    %85 = vector.broadcast %cst_38 : f32 to vector<1x32xf32>
    %86 = vector.extract_strided_slice %82 {offsets = [0, 0], sizes = [7, 32], strides = [1, 1]} : vector<8x32xf32> to vector<7x32xf32>
    %87 = tpu.concatenate %85, %86 in 0 : vector<1x32xf32>, vector<7x32xf32> -> vector<8x32xf32>
    %88 = vector.extract_strided_slice %82 {offsets = [1, 0], sizes = [7, 32], strides = [1, 1]} : vector<8x32xf32> to vector<7x32xf32>
    %89 = tpu.concatenate %88, %85 in 0 : vector<7x32xf32>, vector<1x32xf32> -> vector<8x32xf32>
    %90 = tpu.concatenate %87, %82, %89 in 1 : vector<8x32xf32>, vector<8x32xf32>, vector<8x32xf32> -> vector<8x96xf32>
    %91 = arith.truncf %90 : vector<8x96xf32> to vector<8x96xbf16>
    %cst_39 = arith.constant dense<0.000000e+00> : vector<8x64xf32>
    %92 = tpu.matmul %91, %83, %cst_39 {dimension_numbers = #tpu.dot_dimension_numbers<[1], [0], [0], [1], [0, 0, 1, 1], [], []>} : vector<8x96xbf16>, vector<96x64xbf16>, vector<8x64xf32> -> vector<8x64xf32>
    %93 = vector.broadcast %84 : vector<1x64xf32> to vector<8x64xf32>
    %94 = arith.addf %92, %93 : vector<8x64xf32>
    %cst_40 = arith.constant 0.000000e+00 : f32
    %95 = vector.broadcast %cst_40 : f32 to vector<8x64xf32>
    %96 = arith.cmpf ogt, %94, %95 : vector<8x64xf32>
    %cst_41 = arith.constant 0.000000e+00 : f32
    %97 = vector.broadcast %cst_41 : f32 to vector<8x64xf32>
    %98 = arith.minimumf %94, %97 : vector<8x64xf32>
    %99 = math.exp %98 : vector<8x64xf32>
    %cst_42 = arith.constant 1.000000e+00 : f32
    %100 = vector.broadcast %cst_42 : f32 to vector<8x64xf32>
    %101 = arith.subf %99, %100 : vector<8x64xf32>
    %102 = arith.select %96, %94, %101 : vector<8x64xi1>, vector<8x64xf32>
    %c0_43 = arith.constant 0 : index
    %c0_44 = arith.constant 0 : index
    %103 = vector.load %arg12[%c0_43, %c0_44] : memref<192x64xbf16, #tpu.memory_space<vmem>>, vector<192x64xbf16>
    %c0_45 = arith.constant 0 : index
    %c0_46 = arith.constant 0 : index
    %104 = vector.load %arg13[%c0_45, %c0_46] : memref<1x64xf32, #tpu.memory_space<vmem>>, vector<1x64xf32>
    %cst_47 = arith.constant 0.000000e+00 : f32
    %105 = vector.broadcast %cst_47 : f32 to vector<1x64xf32>
    %106 = vector.extract_strided_slice %102 {offsets = [0, 0], sizes = [7, 64], strides = [1, 1]} : vector<8x64xf32> to vector<7x64xf32>
    %107 = tpu.concatenate %105, %106 in 0 : vector<1x64xf32>, vector<7x64xf32> -> vector<8x64xf32>
    %108 = vector.extract_strided_slice %102 {offsets = [1, 0], sizes = [7, 64], strides = [1, 1]} : vector<8x64xf32> to vector<7x64xf32>
    %109 = tpu.concatenate %108, %105 in 0 : vector<7x64xf32>, vector<1x64xf32> -> vector<8x64xf32>
    %110 = tpu.concatenate %107, %102, %109 in 1 : vector<8x64xf32>, vector<8x64xf32>, vector<8x64xf32> -> vector<8x192xf32>
    %111 = arith.truncf %110 : vector<8x192xf32> to vector<8x192xbf16>
    %cst_48 = arith.constant dense<0.000000e+00> : vector<8x64xf32>
    %112 = tpu.matmul %111, %103, %cst_48 {dimension_numbers = #tpu.dot_dimension_numbers<[1], [0], [0], [1], [0, 0, 1, 1], [], []>} : vector<8x192xbf16>, vector<192x64xbf16>, vector<8x64xf32> -> vector<8x64xf32>
    %113 = vector.broadcast %104 : vector<1x64xf32> to vector<8x64xf32>
    %114 = arith.addf %112, %113 : vector<8x64xf32>
    %cst_49 = arith.constant 0.000000e+00 : f32
    %115 = vector.broadcast %cst_49 : f32 to vector<8x64xf32>
    %116 = arith.cmpf ogt, %114, %115 : vector<8x64xf32>
    %cst_50 = arith.constant 0.000000e+00 : f32
    %117 = vector.broadcast %cst_50 : f32 to vector<8x64xf32>
    %118 = arith.minimumf %114, %117 : vector<8x64xf32>
    %119 = math.exp %118 : vector<8x64xf32>
    %cst_51 = arith.constant 1.000000e+00 : f32
    %120 = vector.broadcast %cst_51 : f32 to vector<8x64xf32>
    %121 = arith.subf %119, %120 : vector<8x64xf32>
    %122 = arith.select %116, %114, %121 : vector<8x64xi1>, vector<8x64xf32>
    %c0_52 = arith.constant 0 : index
    %c0_53 = arith.constant 0 : index
    %123 = vector.load %arg15[%c0_52, %c0_53] : memref<1x8xf32, #tpu.memory_space<vmem>>, vector<1x8xf32>
    %124 = vector.extract_strided_slice %122 {offsets = [0, 0], sizes = [1, 64], strides = [1, 1]} : vector<8x64xf32> to vector<1x64xf32>
    %125 = arith.truncf %124 : vector<1x64xf32> to vector<1x64xbf16>
    %c0_54 = arith.constant 0 : index
    %c0_55 = arith.constant 0 : index
    %c0_56 = arith.constant 0 : index
    %126 = vector.load %arg14[%c0_54, %c0_55, %c0_56] : memref<8x64x8xbf16, #tpu.memory_space<vmem>>, vector<1x64x8xbf16>
    %127 = vector.shape_cast %126 : vector<1x64x8xbf16> to vector<64x8xbf16>
    %cst_57 = arith.constant dense<0.000000e+00> : vector<1x8xf32>
    %128 = tpu.matmul %125, %127, %cst_57 {dimension_numbers = #tpu.dot_dimension_numbers<[1], [0], [0], [1], [0, 0, 1, 1], [], []>} : vector<1x64xbf16>, vector<64x8xbf16>, vector<1x8xf32> -> vector<1x8xf32>
    %129 = arith.addf %123, %128 : vector<1x8xf32>
    %130 = vector.extract_strided_slice %122 {offsets = [1, 0], sizes = [1, 64], strides = [1, 1]} : vector<8x64xf32> to vector<1x64xf32>
    %131 = arith.truncf %130 : vector<1x64xf32> to vector<1x64xbf16>
    %c1 = arith.constant 1 : index
    %c0_58 = arith.constant 0 : index
    %c0_59 = arith.constant 0 : index
    %132 = vector.load %arg14[%c1, %c0_58, %c0_59] : memref<8x64x8xbf16, #tpu.memory_space<vmem>>, vector<1x64x8xbf16>
    %133 = vector.shape_cast %132 : vector<1x64x8xbf16> to vector<64x8xbf16>
    %cst_60 = arith.constant dense<0.000000e+00> : vector<1x8xf32>
    %134 = tpu.matmul %131, %133, %cst_60 {dimension_numbers = #tpu.dot_dimension_numbers<[1], [0], [0], [1], [0, 0, 1, 1], [], []>} : vector<1x64xbf16>, vector<64x8xbf16>, vector<1x8xf32> -> vector<1x8xf32>
    %135 = arith.addf %129, %134 : vector<1x8xf32>
    %136 = vector.extract_strided_slice %122 {offsets = [2, 0], sizes = [1, 64], strides = [1, 1]} : vector<8x64xf32> to vector<1x64xf32>
    %137 = arith.truncf %136 : vector<1x64xf32> to vector<1x64xbf16>
    %c2 = arith.constant 2 : index
    %c0_61 = arith.constant 0 : index
    %c0_62 = arith.constant 0 : index
    %138 = vector.load %arg14[%c2, %c0_61, %c0_62] : memref<8x64x8xbf16, #tpu.memory_space<vmem>>, vector<1x64x8xbf16>
    %139 = vector.shape_cast %138 : vector<1x64x8xbf16> to vector<64x8xbf16>
    %cst_63 = arith.constant dense<0.000000e+00> : vector<1x8xf32>
    %140 = tpu.matmul %137, %139, %cst_63 {dimension_numbers = #tpu.dot_dimension_numbers<[1], [0], [0], [1], [0, 0, 1, 1], [], []>} : vector<1x64xbf16>, vector<64x8xbf16>, vector<1x8xf32> -> vector<1x8xf32>
    %141 = arith.addf %135, %140 : vector<1x8xf32>
    %142 = vector.extract_strided_slice %122 {offsets = [3, 0], sizes = [1, 64], strides = [1, 1]} : vector<8x64xf32> to vector<1x64xf32>
    %143 = arith.truncf %142 : vector<1x64xf32> to vector<1x64xbf16>
    %c3 = arith.constant 3 : index
    %c0_64 = arith.constant 0 : index
    %c0_65 = arith.constant 0 : index
    %144 = vector.load %arg14[%c3, %c0_64, %c0_65] : memref<8x64x8xbf16, #tpu.memory_space<vmem>>, vector<1x64x8xbf16>
    %145 = vector.shape_cast %144 : vector<1x64x8xbf16> to vector<64x8xbf16>
    %cst_66 = arith.constant dense<0.000000e+00> : vector<1x8xf32>
    %146 = tpu.matmul %143, %145, %cst_66 {dimension_numbers = #tpu.dot_dimension_numbers<[1], [0], [0], [1], [0, 0, 1, 1], [], []>} : vector<1x64xbf16>, vector<64x8xbf16>, vector<1x8xf32> -> vector<1x8xf32>
    %147 = arith.addf %141, %146 : vector<1x8xf32>
    %148 = vector.extract_strided_slice %122 {offsets = [4, 0], sizes = [1, 64], strides = [1, 1]} : vector<8x64xf32> to vector<1x64xf32>
    %149 = arith.truncf %148 : vector<1x64xf32> to vector<1x64xbf16>
    %c4 = arith.constant 4 : index
    %c0_67 = arith.constant 0 : index
    %c0_68 = arith.constant 0 : index
    %150 = vector.load %arg14[%c4, %c0_67, %c0_68] : memref<8x64x8xbf16, #tpu.memory_space<vmem>>, vector<1x64x8xbf16>
    %151 = vector.shape_cast %150 : vector<1x64x8xbf16> to vector<64x8xbf16>
    %cst_69 = arith.constant dense<0.000000e+00> : vector<1x8xf32>
    %152 = tpu.matmul %149, %151, %cst_69 {dimension_numbers = #tpu.dot_dimension_numbers<[1], [0], [0], [1], [0, 0, 1, 1], [], []>} : vector<1x64xbf16>, vector<64x8xbf16>, vector<1x8xf32> -> vector<1x8xf32>
    %153 = arith.addf %147, %152 : vector<1x8xf32>
    %154 = vector.extract_strided_slice %122 {offsets = [5, 0], sizes = [1, 64], strides = [1, 1]} : vector<8x64xf32> to vector<1x64xf32>
    %155 = arith.truncf %154 : vector<1x64xf32> to vector<1x64xbf16>
    %c5 = arith.constant 5 : index
    %c0_70 = arith.constant 0 : index
    %c0_71 = arith.constant 0 : index
    %156 = vector.load %arg14[%c5, %c0_70, %c0_71] : memref<8x64x8xbf16, #tpu.memory_space<vmem>>, vector<1x64x8xbf16>
    %157 = vector.shape_cast %156 : vector<1x64x8xbf16> to vector<64x8xbf16>
    %cst_72 = arith.constant dense<0.000000e+00> : vector<1x8xf32>
    %158 = tpu.matmul %155, %157, %cst_72 {dimension_numbers = #tpu.dot_dimension_numbers<[1], [0], [0], [1], [0, 0, 1, 1], [], []>} : vector<1x64xbf16>, vector<64x8xbf16>, vector<1x8xf32> -> vector<1x8xf32>
    %159 = arith.addf %153, %158 : vector<1x8xf32>
    %160 = vector.extract_strided_slice %122 {offsets = [6, 0], sizes = [1, 64], strides = [1, 1]} : vector<8x64xf32> to vector<1x64xf32>
    %161 = arith.truncf %160 : vector<1x64xf32> to vector<1x64xbf16>
    %c6 = arith.constant 6 : index
    %c0_73 = arith.constant 0 : index
    %c0_74 = arith.constant 0 : index
    %162 = vector.load %arg14[%c6, %c0_73, %c0_74] : memref<8x64x8xbf16, #tpu.memory_space<vmem>>, vector<1x64x8xbf16>
    %163 = vector.shape_cast %162 : vector<1x64x8xbf16> to vector<64x8xbf16>
    %cst_75 = arith.constant dense<0.000000e+00> : vector<1x8xf32>
    %164 = tpu.matmul %161, %163, %cst_75 {dimension_numbers = #tpu.dot_dimension_numbers<[1], [0], [0], [1], [0, 0, 1, 1], [], []>} : vector<1x64xbf16>, vector<64x8xbf16>, vector<1x8xf32> -> vector<1x8xf32>
    %165 = arith.addf %159, %164 : vector<1x8xf32>
    %166 = vector.extract_strided_slice %122 {offsets = [7, 0], sizes = [1, 64], strides = [1, 1]} : vector<8x64xf32> to vector<1x64xf32>
    %167 = arith.truncf %166 : vector<1x64xf32> to vector<1x64xbf16>
    %c7 = arith.constant 7 : index
    %c0_76 = arith.constant 0 : index
    %c0_77 = arith.constant 0 : index
    %168 = vector.load %arg14[%c7, %c0_76, %c0_77] : memref<8x64x8xbf16, #tpu.memory_space<vmem>>, vector<1x64x8xbf16>
    %169 = vector.shape_cast %168 : vector<1x64x8xbf16> to vector<64x8xbf16>
    %cst_78 = arith.constant dense<0.000000e+00> : vector<1x8xf32>
    %170 = tpu.matmul %167, %169, %cst_78 {dimension_numbers = #tpu.dot_dimension_numbers<[1], [0], [0], [1], [0, 0, 1, 1], [], []>} : vector<1x64xbf16>, vector<64x8xbf16>, vector<1x8xf32> -> vector<1x8xf32>
    %171 = arith.addf %165, %170 : vector<1x8xf32>
    %172 = arith.truncf %171 : vector<1x8xf32> to vector<1x8xbf16>
    %c0_79 = arith.constant 0 : index
    %c0_80 = arith.constant 0 : index
    %173 = vector.load %arg17[%c0_79, %c0_80] : memref<8x32xf32, #tpu.memory_space<vmem>>, vector<8x32xf32>
    %c0_81 = arith.constant 0 : index
    %c0_82 = arith.constant 0 : index
    %c0_83 = arith.constant 0 : index
    %174 = vector.load %arg16[%c0_81, %c0_82, %c0_83] : memref<8x8x32xbf16, #tpu.memory_space<vmem>>, vector<1x8x32xbf16>
    %175 = vector.shape_cast %174 : vector<1x8x32xbf16> to vector<8x32xbf16>
    %cst_84 = arith.constant dense<0.000000e+00> : vector<1x32xf32>
    %176 = tpu.matmul %172, %175, %cst_84 {dimension_numbers = #tpu.dot_dimension_numbers<[1], [0], [0], [1], [0, 0, 1, 1], [], []>} : vector<1x8xbf16>, vector<8x32xbf16>, vector<1x32xf32> -> vector<1x32xf32>
    %177 = vector.extract_strided_slice %173 {offsets = [0, 0], sizes = [1, 32], strides = [1, 1]} : vector<8x32xf32> to vector<1x32xf32>
    %178 = arith.addf %176, %177 : vector<1x32xf32>
    %c1_85 = arith.constant 1 : index
    %c0_86 = arith.constant 0 : index
    %c0_87 = arith.constant 0 : index
    %179 = vector.load %arg16[%c1_85, %c0_86, %c0_87] : memref<8x8x32xbf16, #tpu.memory_space<vmem>>, vector<1x8x32xbf16>
    %180 = vector.shape_cast %179 : vector<1x8x32xbf16> to vector<8x32xbf16>
    %cst_88 = arith.constant dense<0.000000e+00> : vector<1x32xf32>
    %181 = tpu.matmul %172, %180, %cst_88 {dimension_numbers = #tpu.dot_dimension_numbers<[1], [0], [0], [1], [0, 0, 1, 1], [], []>} : vector<1x8xbf16>, vector<8x32xbf16>, vector<1x32xf32> -> vector<1x32xf32>
    %182 = vector.extract_strided_slice %173 {offsets = [1, 0], sizes = [1, 32], strides = [1, 1]} : vector<8x32xf32> to vector<1x32xf32>
    %183 = arith.addf %181, %182 : vector<1x32xf32>
    %c2_89 = arith.constant 2 : index
    %c0_90 = arith.constant 0 : index
    %c0_91 = arith.constant 0 : index
    %184 = vector.load %arg16[%c2_89, %c0_90, %c0_91] : memref<8x8x32xbf16, #tpu.memory_space<vmem>>, vector<1x8x32xbf16>
    %185 = vector.shape_cast %184 : vector<1x8x32xbf16> to vector<8x32xbf16>
    %cst_92 = arith.constant dense<0.000000e+00> : vector<1x32xf32>
    %186 = tpu.matmul %172, %185, %cst_92 {dimension_numbers = #tpu.dot_dimension_numbers<[1], [0], [0], [1], [0, 0, 1, 1], [], []>} : vector<1x8xbf16>, vector<8x32xbf16>, vector<1x32xf32> -> vector<1x32xf32>
    %187 = vector.extract_strided_slice %173 {offsets = [2, 0], sizes = [1, 32], strides = [1, 1]} : vector<8x32xf32> to vector<1x32xf32>
    %188 = arith.addf %186, %187 : vector<1x32xf32>
    %c3_93 = arith.constant 3 : index
    %c0_94 = arith.constant 0 : index
    %c0_95 = arith.constant 0 : index
    %189 = vector.load %arg16[%c3_93, %c0_94, %c0_95] : memref<8x8x32xbf16, #tpu.memory_space<vmem>>, vector<1x8x32xbf16>
    %190 = vector.shape_cast %189 : vector<1x8x32xbf16> to vector<8x32xbf16>
    %cst_96 = arith.constant dense<0.000000e+00> : vector<1x32xf32>
    %191 = tpu.matmul %172, %190, %cst_96 {dimension_numbers = #tpu.dot_dimension_numbers<[1], [0], [0], [1], [0, 0, 1, 1], [], []>} : vector<1x8xbf16>, vector<8x32xbf16>, vector<1x32xf32> -> vector<1x32xf32>
    %192 = vector.extract_strided_slice %173 {offsets = [3, 0], sizes = [1, 32], strides = [1, 1]} : vector<8x32xf32> to vector<1x32xf32>
    %193 = arith.addf %191, %192 : vector<1x32xf32>
    %c4_97 = arith.constant 4 : index
    %c0_98 = arith.constant 0 : index
    %c0_99 = arith.constant 0 : index
    %194 = vector.load %arg16[%c4_97, %c0_98, %c0_99] : memref<8x8x32xbf16, #tpu.memory_space<vmem>>, vector<1x8x32xbf16>
    %195 = vector.shape_cast %194 : vector<1x8x32xbf16> to vector<8x32xbf16>
    %cst_100 = arith.constant dense<0.000000e+00> : vector<1x32xf32>
    %196 = tpu.matmul %172, %195, %cst_100 {dimension_numbers = #tpu.dot_dimension_numbers<[1], [0], [0], [1], [0, 0, 1, 1], [], []>} : vector<1x8xbf16>, vector<8x32xbf16>, vector<1x32xf32> -> vector<1x32xf32>
    %197 = vector.extract_strided_slice %173 {offsets = [4, 0], sizes = [1, 32], strides = [1, 1]} : vector<8x32xf32> to vector<1x32xf32>
    %198 = arith.addf %196, %197 : vector<1x32xf32>
    %c5_101 = arith.constant 5 : index
    %c0_102 = arith.constant 0 : index
    %c0_103 = arith.constant 0 : index
    %199 = vector.load %arg16[%c5_101, %c0_102, %c0_103] : memref<8x8x32xbf16, #tpu.memory_space<vmem>>, vector<1x8x32xbf16>
    %200 = vector.shape_cast %199 : vector<1x8x32xbf16> to vector<8x32xbf16>
    %cst_104 = arith.constant dense<0.000000e+00> : vector<1x32xf32>
    %201 = tpu.matmul %172, %200, %cst_104 {dimension_numbers = #tpu.dot_dimension_numbers<[1], [0], [0], [1], [0, 0, 1, 1], [], []>} : vector<1x8xbf16>, vector<8x32xbf16>, vector<1x32xf32> -> vector<1x32xf32>
    %202 = vector.extract_strided_slice %173 {offsets = [5, 0], sizes = [1, 32], strides = [1, 1]} : vector<8x32xf32> to vector<1x32xf32>
    %203 = arith.addf %201, %202 : vector<1x32xf32>
    %c6_105 = arith.constant 6 : index
    %c0_106 = arith.constant 0 : index
    %c0_107 = arith.constant 0 : index
    %204 = vector.load %arg16[%c6_105, %c0_106, %c0_107] : memref<8x8x32xbf16, #tpu.memory_space<vmem>>, vector<1x8x32xbf16>
    %205 = vector.shape_cast %204 : vector<1x8x32xbf16> to vector<8x32xbf16>
    %cst_108 = arith.constant dense<0.000000e+00> : vector<1x32xf32>
    %206 = tpu.matmul %172, %205, %cst_108 {dimension_numbers = #tpu.dot_dimension_numbers<[1], [0], [0], [1], [0, 0, 1, 1], [], []>} : vector<1x8xbf16>, vector<8x32xbf16>, vector<1x32xf32> -> vector<1x32xf32>
    %207 = vector.extract_strided_slice %173 {offsets = [6, 0], sizes = [1, 32], strides = [1, 1]} : vector<8x32xf32> to vector<1x32xf32>
    %208 = arith.addf %206, %207 : vector<1x32xf32>
    %c7_109 = arith.constant 7 : index
    %c0_110 = arith.constant 0 : index
    %c0_111 = arith.constant 0 : index
    %209 = vector.load %arg16[%c7_109, %c0_110, %c0_111] : memref<8x8x32xbf16, #tpu.memory_space<vmem>>, vector<1x8x32xbf16>
    %210 = vector.shape_cast %209 : vector<1x8x32xbf16> to vector<8x32xbf16>
    %cst_112 = arith.constant dense<0.000000e+00> : vector<1x32xf32>
    %211 = tpu.matmul %172, %210, %cst_112 {dimension_numbers = #tpu.dot_dimension_numbers<[1], [0], [0], [1], [0, 0, 1, 1], [], []>} : vector<1x8xbf16>, vector<8x32xbf16>, vector<1x32xf32> -> vector<1x32xf32>
    %212 = vector.extract_strided_slice %173 {offsets = [7, 0], sizes = [1, 32], strides = [1, 1]} : vector<8x32xf32> to vector<1x32xf32>
    %213 = arith.addf %211, %212 : vector<1x32xf32>
    %214 = tpu.concatenate %178, %183, %188, %193, %198, %203, %208, %213 in 0 : vector<1x32xf32>, vector<1x32xf32>, vector<1x32xf32>, vector<1x32xf32>, vector<1x32xf32>, vector<1x32xf32>, vector<1x32xf32>, vector<1x32xf32> -> vector<8x32xf32>
    %c0_113 = arith.constant 0 : index
    %c0_114 = arith.constant 0 : index
    %215 = vector.load %arg18[%c0_113, %c0_114] : memref<96x32xbf16, #tpu.memory_space<vmem>>, vector<96x32xbf16>
    %c0_115 = arith.constant 0 : index
    %c0_116 = arith.constant 0 : index
    %216 = vector.load %arg19[%c0_115, %c0_116] : memref<1x32xf32, #tpu.memory_space<vmem>>, vector<1x32xf32>
    %cst_117 = arith.constant 0.000000e+00 : f32
    %217 = vector.broadcast %cst_117 : f32 to vector<1x32xf32>
    %218 = vector.extract_strided_slice %214 {offsets = [0, 0], sizes = [7, 32], strides = [1, 1]} : vector<8x32xf32> to vector<7x32xf32>
    %219 = tpu.concatenate %217, %218 in 0 : vector<1x32xf32>, vector<7x32xf32> -> vector<8x32xf32>
    %220 = vector.extract_strided_slice %214 {offsets = [1, 0], sizes = [7, 32], strides = [1, 1]} : vector<8x32xf32> to vector<7x32xf32>
    %221 = tpu.concatenate %220, %217 in 0 : vector<7x32xf32>, vector<1x32xf32> -> vector<8x32xf32>
    %222 = tpu.concatenate %219, %214, %221 in 1 : vector<8x32xf32>, vector<8x32xf32>, vector<8x32xf32> -> vector<8x96xf32>
    %223 = arith.truncf %222 : vector<8x96xf32> to vector<8x96xbf16>
    %cst_118 = arith.constant dense<0.000000e+00> : vector<8x32xf32>
    %224 = tpu.matmul %223, %215, %cst_118 {dimension_numbers = #tpu.dot_dimension_numbers<[1], [0], [0], [1], [0, 0, 1, 1], [], []>} : vector<8x96xbf16>, vector<96x32xbf16>, vector<8x32xf32> -> vector<8x32xf32>
    %225 = vector.broadcast %216 : vector<1x32xf32> to vector<8x32xf32>
    %226 = arith.addf %224, %225 : vector<8x32xf32>
    %cst_119 = arith.constant 0.000000e+00 : f32
    %227 = vector.broadcast %cst_119 : f32 to vector<8x32xf32>
    %228 = arith.cmpf ogt, %226, %227 : vector<8x32xf32>
    %cst_120 = arith.constant 0.000000e+00 : f32
    %229 = vector.broadcast %cst_120 : f32 to vector<8x32xf32>
    %230 = arith.minimumf %226, %229 : vector<8x32xf32>
    %231 = math.exp %230 : vector<8x32xf32>
    %cst_121 = arith.constant 1.000000e+00 : f32
    %232 = vector.broadcast %cst_121 : f32 to vector<8x32xf32>
    %233 = arith.subf %231, %232 : vector<8x32xf32>
    %234 = arith.select %228, %226, %233 : vector<8x32xi1>, vector<8x32xf32>
    %c0_122 = arith.constant 0 : index
    %c0_123 = arith.constant 0 : index
    %235 = vector.load %arg20[%c0_122, %c0_123] : memref<96x32xbf16, #tpu.memory_space<vmem>>, vector<96x32xbf16>
    %c0_124 = arith.constant 0 : index
    %c0_125 = arith.constant 0 : index
    %236 = vector.load %arg21[%c0_124, %c0_125] : memref<1x32xf32, #tpu.memory_space<vmem>>, vector<1x32xf32>
    %cst_126 = arith.constant 0.000000e+00 : f32
    %237 = vector.broadcast %cst_126 : f32 to vector<1x32xf32>
    %238 = vector.extract_strided_slice %234 {offsets = [0, 0], sizes = [7, 32], strides = [1, 1]} : vector<8x32xf32> to vector<7x32xf32>
    %239 = tpu.concatenate %237, %238 in 0 : vector<1x32xf32>, vector<7x32xf32> -> vector<8x32xf32>
    %240 = vector.extract_strided_slice %234 {offsets = [1, 0], sizes = [7, 32], strides = [1, 1]} : vector<8x32xf32> to vector<7x32xf32>
    %241 = tpu.concatenate %240, %237 in 0 : vector<7x32xf32>, vector<1x32xf32> -> vector<8x32xf32>
    %242 = tpu.concatenate %239, %234, %241 in 1 : vector<8x32xf32>, vector<8x32xf32>, vector<8x32xf32> -> vector<8x96xf32>
    %243 = arith.truncf %242 : vector<8x96xf32> to vector<8x96xbf16>
    %cst_127 = arith.constant dense<0.000000e+00> : vector<8x32xf32>
    %244 = tpu.matmul %243, %235, %cst_127 {dimension_numbers = #tpu.dot_dimension_numbers<[1], [0], [0], [1], [0, 0, 1, 1], [], []>} : vector<8x96xbf16>, vector<96x32xbf16>, vector<8x32xf32> -> vector<8x32xf32>
    %245 = vector.broadcast %236 : vector<1x32xf32> to vector<8x32xf32>
    %246 = arith.addf %244, %245 : vector<8x32xf32>
    %cst_128 = arith.constant 0.000000e+00 : f32
    %247 = vector.broadcast %cst_128 : f32 to vector<8x32xf32>
    %248 = arith.cmpf ogt, %246, %247 : vector<8x32xf32>
    %cst_129 = arith.constant 0.000000e+00 : f32
    %249 = vector.broadcast %cst_129 : f32 to vector<8x32xf32>
    %250 = arith.minimumf %246, %249 : vector<8x32xf32>
    %251 = math.exp %250 : vector<8x32xf32>
    %cst_130 = arith.constant 1.000000e+00 : f32
    %252 = vector.broadcast %cst_130 : f32 to vector<8x32xf32>
    %253 = arith.subf %251, %252 : vector<8x32xf32>
    %254 = arith.select %248, %246, %253 : vector<8x32xi1>, vector<8x32xf32>
    %c0_131 = arith.constant 0 : index
    %c0_132 = arith.constant 0 : index
    %255 = vector.load %arg22[%c0_131, %c0_132] : memref<32x64xf32, #tpu.memory_space<vmem>>, vector<32x64xf32>
    %256 = vector.extract_strided_slice %254 {offsets = [0, 0], sizes = [1, 32], strides = [1, 1]} : vector<8x32xf32> to vector<1x32xf32>
    %257 = vector.extract_strided_slice %254 {offsets = [1, 0], sizes = [1, 32], strides = [1, 1]} : vector<8x32xf32> to vector<1x32xf32>
    %258 = vector.extract_strided_slice %254 {offsets = [2, 0], sizes = [1, 32], strides = [1, 1]} : vector<8x32xf32> to vector<1x32xf32>
    %259 = vector.extract_strided_slice %254 {offsets = [3, 0], sizes = [1, 32], strides = [1, 1]} : vector<8x32xf32> to vector<1x32xf32>
    %260 = vector.extract_strided_slice %254 {offsets = [4, 0], sizes = [1, 32], strides = [1, 1]} : vector<8x32xf32> to vector<1x32xf32>
    %261 = vector.extract_strided_slice %254 {offsets = [5, 0], sizes = [1, 32], strides = [1, 1]} : vector<8x32xf32> to vector<1x32xf32>
    %262 = vector.extract_strided_slice %254 {offsets = [6, 0], sizes = [1, 32], strides = [1, 1]} : vector<8x32xf32> to vector<1x32xf32>
    %263 = vector.extract_strided_slice %254 {offsets = [7, 0], sizes = [1, 32], strides = [1, 1]} : vector<8x32xf32> to vector<1x32xf32>
    %264 = tpu.concatenate %256, %256, %257, %257, %258, %258, %259, %259, %260, %260, %261, %261, %262, %262, %263, %263 in 0 : vector<1x32xf32>, vector<1x32xf32>, vector<1x32xf32>, vector<1x32xf32>, vector<1x32xf32>, vector<1x32xf32>, vector<1x32xf32>, vector<1x32xf32>, vector<1x32xf32>, vector<1x32xf32>, vector<1x32xf32>, vector<1x32xf32>, vector<1x32xf32>, vector<1x32xf32>, vector<1x32xf32>, vector<1x32xf32> -> vector<16x32xf32>
    %cst_133 = arith.constant dense<0.000000e+00> : vector<16x64xf32>
    %265 = tpu.matmul %264, %255, %cst_133 {dimension_numbers = #tpu.dot_dimension_numbers<[1], [0], [0], [1], [0, 0, 1, 1], [], []>} : vector<16x32xf32>, vector<32x64xf32>, vector<16x64xf32> -> vector<16x64xf32>
    %c0_134 = arith.constant 0 : index
    %c0_135 = arith.constant 0 : index
    %266 = vector.load %arg23[%c0_134, %c0_135] : memref<192x64xbf16, #tpu.memory_space<vmem>>, vector<192x64xbf16>
    %c0_136 = arith.constant 0 : index
    %c0_137 = arith.constant 0 : index
    %267 = vector.load %arg24[%c0_136, %c0_137] : memref<1x64xf32, #tpu.memory_space<vmem>>, vector<1x64xf32>
    %cst_138 = arith.constant 0.000000e+00 : f32
    %268 = vector.broadcast %cst_138 : f32 to vector<1x64xf32>
    %269 = vector.extract_strided_slice %265 {offsets = [0, 0], sizes = [15, 64], strides = [1, 1]} : vector<16x64xf32> to vector<15x64xf32>
    %270 = tpu.concatenate %268, %269 in 0 : vector<1x64xf32>, vector<15x64xf32> -> vector<16x64xf32>
    %271 = vector.extract_strided_slice %265 {offsets = [1, 0], sizes = [15, 64], strides = [1, 1]} : vector<16x64xf32> to vector<15x64xf32>
    %272 = tpu.concatenate %271, %268 in 0 : vector<15x64xf32>, vector<1x64xf32> -> vector<16x64xf32>
    %273 = tpu.concatenate %270, %265, %272 in 1 : vector<16x64xf32>, vector<16x64xf32>, vector<16x64xf32> -> vector<16x192xf32>
    %274 = arith.truncf %273 : vector<16x192xf32> to vector<16x192xbf16>
    %cst_139 = arith.constant dense<0.000000e+00> : vector<16x64xf32>
    %275 = tpu.matmul %274, %266, %cst_139 {dimension_numbers = #tpu.dot_dimension_numbers<[1], [0], [0], [1], [0, 0, 1, 1], [], []>} : vector<16x192xbf16>, vector<192x64xbf16>, vector<16x64xf32> -> vector<16x64xf32>
    %276 = vector.broadcast %267 : vector<1x64xf32> to vector<16x64xf32>
    %277 = arith.addf %275, %276 : vector<16x64xf32>
    %cst_140 = arith.constant 0.000000e+00 : f32
    %278 = vector.broadcast %cst_140 : f32 to vector<16x64xf32>
    %279 = arith.cmpf ogt, %277, %278 : vector<16x64xf32>
    %cst_141 = arith.constant 0.000000e+00 : f32
    %280 = vector.broadcast %cst_141 : f32 to vector<16x64xf32>
    %281 = arith.minimumf %277, %280 : vector<16x64xf32>
    %282 = math.exp %281 : vector<16x64xf32>
    %cst_142 = arith.constant 1.000000e+00 : f32
    %283 = vector.broadcast %cst_142 : f32 to vector<16x64xf32>
    %284 = arith.subf %282, %283 : vector<16x64xf32>
    %285 = arith.select %279, %277, %284 : vector<16x64xi1>, vector<16x64xf32>
    %c0_143 = arith.constant 0 : index
    %c0_144 = arith.constant 0 : index
    %286 = vector.load %arg25[%c0_143, %c0_144] : memref<192x64xbf16, #tpu.memory_space<vmem>>, vector<192x64xbf16>
    %c0_145 = arith.constant 0 : index
    %c0_146 = arith.constant 0 : index
    %287 = vector.load %arg26[%c0_145, %c0_146] : memref<1x64xf32, #tpu.memory_space<vmem>>, vector<1x64xf32>
    %cst_147 = arith.constant 0.000000e+00 : f32
    %288 = vector.broadcast %cst_147 : f32 to vector<1x64xf32>
    %289 = vector.extract_strided_slice %285 {offsets = [0, 0], sizes = [15, 64], strides = [1, 1]} : vector<16x64xf32> to vector<15x64xf32>
    %290 = tpu.concatenate %288, %289 in 0 : vector<1x64xf32>, vector<15x64xf32> -> vector<16x64xf32>
    %291 = vector.extract_strided_slice %285 {offsets = [1, 0], sizes = [15, 64], strides = [1, 1]} : vector<16x64xf32> to vector<15x64xf32>
    %292 = tpu.concatenate %291, %288 in 0 : vector<15x64xf32>, vector<1x64xf32> -> vector<16x64xf32>
    %293 = tpu.concatenate %290, %285, %292 in 1 : vector<16x64xf32>, vector<16x64xf32>, vector<16x64xf32> -> vector<16x192xf32>
    %294 = arith.truncf %293 : vector<16x192xf32> to vector<16x192xbf16>
    %cst_148 = arith.constant dense<0.000000e+00> : vector<16x64xf32>
    %295 = tpu.matmul %294, %286, %cst_148 {dimension_numbers = #tpu.dot_dimension_numbers<[1], [0], [0], [1], [0, 0, 1, 1], [], []>} : vector<16x192xbf16>, vector<192x64xbf16>, vector<16x64xf32> -> vector<16x64xf32>
    %296 = vector.broadcast %287 : vector<1x64xf32> to vector<16x64xf32>
    %297 = arith.addf %295, %296 : vector<16x64xf32>
    %cst_149 = arith.constant 0.000000e+00 : f32
    %298 = vector.broadcast %cst_149 : f32 to vector<16x64xf32>
    %299 = arith.cmpf ogt, %297, %298 : vector<16x64xf32>
    %cst_150 = arith.constant 0.000000e+00 : f32
    %300 = vector.broadcast %cst_150 : f32 to vector<16x64xf32>
    %301 = arith.minimumf %297, %300 : vector<16x64xf32>
    %302 = math.exp %301 : vector<16x64xf32>
    %cst_151 = arith.constant 1.000000e+00 : f32
    %303 = vector.broadcast %cst_151 : f32 to vector<16x64xf32>
    %304 = arith.subf %302, %303 : vector<16x64xf32>
    %305 = arith.select %299, %297, %304 : vector<16x64xi1>, vector<16x64xf32>
    %c0_152 = arith.constant 0 : index
    %c0_153 = arith.constant 0 : index
    %306 = vector.load %arg27[%c0_152, %c0_153] : memref<192x48xbf16, #tpu.memory_space<vmem>>, vector<192x48xbf16>
    %c0_154 = arith.constant 0 : index
    %c0_155 = arith.constant 0 : index
    %307 = vector.load %arg28[%c0_154, %c0_155] : memref<1x48xf32, #tpu.memory_space<vmem>>, vector<1x48xf32>
    %cst_156 = arith.constant 0.000000e+00 : f32
    %308 = vector.broadcast %cst_156 : f32 to vector<1x64xf32>
    %309 = vector.extract_strided_slice %305 {offsets = [0, 0], sizes = [15, 64], strides = [1, 1]} : vector<16x64xf32> to vector<15x64xf32>
    %310 = tpu.concatenate %308, %309 in 0 : vector<1x64xf32>, vector<15x64xf32> -> vector<16x64xf32>
    %311 = vector.extract_strided_slice %305 {offsets = [1, 0], sizes = [15, 64], strides = [1, 1]} : vector<16x64xf32> to vector<15x64xf32>
    %312 = tpu.concatenate %311, %308 in 0 : vector<15x64xf32>, vector<1x64xf32> -> vector<16x64xf32>
    %313 = tpu.concatenate %310, %305, %312 in 1 : vector<16x64xf32>, vector<16x64xf32>, vector<16x64xf32> -> vector<16x192xf32>
    %314 = arith.truncf %313 : vector<16x192xf32> to vector<16x192xbf16>
    %cst_157 = arith.constant dense<0.000000e+00> : vector<16x48xf32>
    %315 = tpu.matmul %314, %306, %cst_157 {dimension_numbers = #tpu.dot_dimension_numbers<[1], [0], [0], [1], [0, 0, 1, 1], [], []>} : vector<16x192xbf16>, vector<192x48xbf16>, vector<16x48xf32> -> vector<16x48xf32>
    %316 = vector.broadcast %307 : vector<1x48xf32> to vector<16x48xf32>
    %317 = arith.addf %315, %316 : vector<16x48xf32>
    %c0_158 = arith.constant 0 : index
    %c0_159 = arith.constant 0 : index
    %c0_160 = arith.constant 0 : index
    %318 = vector.load %arg29[%c0_158, %c0_159, %c0_160] : memref<1x16x48xf32, #tpu.memory_space<vmem>>, vector<1x16x48xf32>
    %319 = vector.shape_cast %318 : vector<1x16x48xf32> to vector<16x48xf32>
    %320 = vector.shape_cast %317 : vector<16x48xf32> to vector<1x16x48xf32>
    tpu.vector_store %arg29[%c0_158, %c0_159, %c0_160], %320 {strides = array<i32>} : memref<1x16x48xf32, #tpu.memory_space<vmem>>, vector<1x16x48xf32>,
    return
  }
  func.func @transform_0(%arg0: i32) -> (i32, i32, i32) {
    %c0_i32 = arith.constant 0 : i32
    %c0_i32_0 = arith.constant 0 : i32
    %c0_i32_1 = arith.constant 0 : i32
    return %arg0, %c0_i32, %c0_i32_0 : i32, i32, i32
  }
  func.func @transform_1(%arg0: i32) -> (i32, i32) {
    %c0_i32 = arith.constant 0 : i32
    %c0_i32_0 = arith.constant 0 : i32
    %c0_i32_1 = arith.constant 0 : i32
    return %c0_i32, %c0_i32_0 : i32, i32
  }
  func.func @transform_2(%arg0: i32) -> (i32, i32) {
    %c0_i32 = arith.constant 0 : i32
    %c0_i32_0 = arith.constant 0 : i32
    %c0_i32_1 = arith.constant 0 : i32
    return %c0_i32, %c0_i32_0 : i32, i32
  }
  func.func @transform_3(%arg0: i32) -> (i32, i32) {
    %c0_i32 = arith.constant 0 : i32
    %c0_i32_0 = arith.constant 0 : i32
    %c0_i32_1 = arith.constant 0 : i32
    return %c0_i32, %c0_i32_0 : i32, i32
  }
  func.func @transform_4(%arg0: i32) -> (i32, i32) {
    %c0_i32 = arith.constant 0 : i32
    %c0_i32_0 = arith.constant 0 : i32
    %c0_i32_1 = arith.constant 0 : i32
    return %c0_i32, %c0_i32_0 : i32, i32
  }
  func.func @transform_5(%arg0: i32) -> (i32, i32) {
    %c0_i32 = arith.constant 0 : i32
    %c0_i32_0 = arith.constant 0 : i32
    %c0_i32_1 = arith.constant 0 : i32
    return %c0_i32, %c0_i32_0 : i32, i32
  }
  func.func @transform_6(%arg0: i32) -> (i32, i32) {
    %c0_i32 = arith.constant 0 : i32
    %c0_i32_0 = arith.constant 0 : i32
    %c0_i32_1 = arith.constant 0 : i32
    return %c0_i32, %c0_i32_0 : i32, i32
  }
  func.func @transform_7(%arg0: i32) -> (i32, i32) {
    %c0_i32 = arith.constant 0 : i32
    %c0_i32_0 = arith.constant 0 : i32
    %c0_i32_1 = arith.constant 0 : i32
    return %c0_i32, %c0_i32_0 : i32, i32
  }
  func.func @transform_8(%arg0: i32) -> (i32, i32) {
    %c0_i32 = arith.constant 0 : i32
    %c0_i32_0 = arith.constant 0 : i32
    %c0_i32_1 = arith.constant 0 : i32
    return %c0_i32, %c0_i32_0 : i32, i32
  }
  func.func @transform_9(%arg0: i32) -> (i32, i32) {
    %c0_i32 = arith.constant 0 : i32
    %c0_i32_0 = arith.constant 0 : i32
    %c0_i32_1 = arith.constant 0 : i32
    return %c0_i32, %c0_i32_0 : i32, i32
  }
  func.func @transform_10(%arg0: i32) -> (i32, i32) {
    %c0_i32 = arith.constant 0 : i32
    %c0_i32_0 = arith.constant 0 : i32
    %c0_i32_1 = arith.constant 0 : i32
    return %c0_i32, %c0_i32_0 : i32, i32
  }
  func.func @transform_11(%arg0: i32) -> (i32, i32) {
    %c0_i32 = arith.constant 0 : i32
    %c0_i32_0 = arith.constant 0 : i32
    %c0_i32_1 = arith.constant 0 : i32
    return %c0_i32, %c0_i32_0 : i32, i32
  }
  func.func @transform_12(%arg0: i32) -> (i32, i32) {
    %c0_i32 = arith.constant 0 : i32
    %c0_i32_0 = arith.constant 0 : i32
    %c0_i32_1 = arith.constant 0 : i32
    return %c0_i32, %c0_i32_0 : i32, i32
  }
  func.func @transform_13(%arg0: i32) -> (i32, i32, i32) {
    %c0_i32 = arith.constant 0 : i32
    %c0_i32_0 = arith.constant 0 : i32
    %c0_i32_1 = arith.constant 0 : i32
    %c0_i32_2 = arith.constant 0 : i32
    return %c0_i32, %c0_i32_0, %c0_i32_1 : i32, i32, i32
  }
  func.func @transform_14(%arg0: i32) -> (i32, i32) {
    %c0_i32 = arith.constant 0 : i32
    %c0_i32_0 = arith.constant 0 : i32
    %c0_i32_1 = arith.constant 0 : i32
    return %c0_i32, %c0_i32_0 : i32, i32
  }
  func.func @transform_15(%arg0: i32) -> (i32, i32, i32) {
    %c0_i32 = arith.constant 0 : i32
    %c0_i32_0 = arith.constant 0 : i32
    %c0_i32_1 = arith.constant 0 : i32
    %c0_i32_2 = arith.constant 0 : i32
    return %c0_i32, %c0_i32_0, %c0_i32_1 : i32, i32, i32
  }
  func.func @transform_16(%arg0: i32) -> (i32, i32) {
    %c0_i32 = arith.constant 0 : i32
    %c0_i32_0 = arith.constant 0 : i32
    %c0_i32_1 = arith.constant 0 : i32
    return %c0_i32, %c0_i32_0 : i32, i32
  }
  func.func @transform_17(%arg0: i32) -> (i32, i32) {
    %c0_i32 = arith.constant 0 : i32
    %c0_i32_0 = arith.constant 0 : i32
    %c0_i32_1 = arith.constant 0 : i32
    return %c0_i32, %c0_i32_0 : i32, i32
  }
  func.func @transform_18(%arg0: i32) -> (i32, i32) {
    %c0_i32 = arith.constant 0 : i32
    %c0_i32_0 = arith.constant 0 : i32
    %c0_i32_1 = arith.constant 0 : i32
    return %c0_i32, %c0_i32_0 : i32, i32
  }
  func.func @transform_19(%arg0: i32) -> (i32, i32) {
    %c0_i32 = arith.constant 0 : i32
    %c0_i32_0 = arith.constant 0 : i32
    %c0_i32_1 = arith.constant 0 : i32
    return %c0_i32, %c0_i32_0 : i32, i32
  }
  func.func @transform_20(%arg0: i32) -> (i32, i32) {
    %c0_i32 = arith.constant 0 : i32
    %c0_i32_0 = arith.constant 0 : i32
    %c0_i32_1 = arith.constant 0 : i32
    return %c0_i32, %c0_i32_0 : i32, i32
  }
  func.func @transform_21(%arg0: i32) -> (i32, i32) {
    %c0_i32 = arith.constant 0 : i32
    %c0_i32_0 = arith.constant 0 : i32
    %c0_i32_1 = arith.constant 0 : i32
    return %c0_i32, %c0_i32_0 : i32, i32
  }
  func.func @transform_22(%arg0: i32) -> (i32, i32) {
    %c0_i32 = arith.constant 0 : i32
    %c0_i32_0 = arith.constant 0 : i32
    %c0_i32_1 = arith.constant 0 : i32
    return %c0_i32, %c0_i32_0 : i32, i32
  }
  func.func @transform_23(%arg0: i32) -> (i32, i32) {
    %c0_i32 = arith.constant 0 : i32
    %c0_i32_0 = arith.constant 0 : i32
    %c0_i32_1 = arith.constant 0 : i32
    return %c0_i32, %c0_i32_0 : i32, i32
  }
  func.func @transform_24(%arg0: i32) -> (i32, i32) {
    %c0_i32 = arith.constant 0 : i32
    %c0_i32_0 = arith.constant 0 : i32
    %c0_i32_1 = arith.constant 0 : i32
    return %c0_i32, %c0_i32_0 : i32, i32
  }
  func.func @transform_25(%arg0: i32) -> (i32, i32) {
    %c0_i32 = arith.constant 0 : i32
    %c0_i32_0 = arith.constant 0 : i32
    %c0_i32_1 = arith.constant 0 : i32
    return %c0_i32, %c0_i32_0 : i32, i32
  }
  func.func @transform_26(%arg0: i32) -> (i32, i32) {
    %c0_i32 = arith.constant 0 : i32
    %c0_i32_0 = arith.constant 0 : i32
    %c0_i32_1 = arith.constant 0 : i32
    return %c0_i32, %c0_i32_0 : i32, i32
  }
  func.func @transform_27(%arg0: i32) -> (i32, i32) {
    %c0_i32 = arith.constant 0 : i32
    %c0_i32_0 = arith.constant 0 : i32
    %c0_i32_1 = arith.constant 0 : i32
    return %c0_i32, %c0_i32_0 : i32, i32
  }
  func.func @transform_28(%arg0: i32) -> (i32, i32, i32) {
    %c0_i32 = arith.constant 0 : i32
    %c0_i32_0 = arith.constant 0 : i32
    %c0_i32_1 = arith.constant 0 : i32
    return %arg0, %c0_i32, %c0_i32_0 : i32, i32, i32
  }
}

</mosaic_0001>

<llo_original>
// kernel: d_forward.1
$region0: #{d_forward.1}
  #allocation0 [shape = 'u32[]', space=smem, size = 0x4, offset = 0x4, fixed_abs, tag = 'smem constant byte address 0x4 - core index']
  #allocation1 [shape = 'u32[72,128]{1,0:T(1,128)}', space=vmem, size = 0x9000, scoped, tag = 'internal scratch']
  %s0 = inlined_call_operand.vmem [shape: f32[2,16,48], index: 0, kind: input, shape index: {}]
  %s1 = inlined_call_operand.vmem [shape: bf16[144,64], index: 1, kind: input, shape index: {}]
  %s2 = inlined_call_operand.hbm [shape: f32[1,64], index: 2, kind: input, shape index: {}]
  %s3 = inlined_call_operand.hbm [shape: bf16[192,64], index: 3, kind: input, shape index: {}]
  %s4 = inlined_call_operand.hbm [shape: f32[1,64], index: 4, kind: input, shape index: {}]
  %s5 = inlined_call_operand.hbm [shape: bf16[192,64], index: 5, kind: input, shape index: {}]
  %s6 = inlined_call_operand.hbm [shape: f32[1,64], index: 6, kind: input, shape index: {}]
  %s7 = inlined_call_operand.hbm [shape: bf16[192,32], index: 7, kind: input, shape index: {}]
  %s8 = inlined_call_operand.hbm [shape: f32[1,32], index: 8, kind: input, shape index: {}]
  %s9 = inlined_call_operand.hbm [shape: bf16[96,64], index: 9, kind: input, shape index: {}]
  %s10 = inlined_call_operand.hbm [shape: f32[1,64], index: 10, kind: input, shape index: {}]
  %s11 = inlined_call_operand.hbm [shape: bf16[192,64], index: 11, kind: input, shape index: {}]
  %s12 = inlined_call_operand.hbm [shape: f32[1,64], index: 12, kind: input, shape index: {}]
  %s13 = inlined_call_operand.vmem [shape: bf16[8,64,8], index: 13, kind: input, shape index: {}]
  %s14 = inlined_call_operand.hbm [shape: f32[1,8], index: 14, kind: input, shape index: {}]
  %s15 = inlined_call_operand.hbm [shape: bf16[8,8,32], index: 15, kind: input, shape index: {}]
  %s16 = inlined_call_operand.vmem [shape: f32[8,32], index: 16, kind: input, shape index: {}]
  %s17 = inlined_call_operand.hbm [shape: bf16[96,32], index: 17, kind: input, shape index: {}]
  %s18 = inlined_call_operand.hbm [shape: f32[1,32], index: 18, kind: input, shape index: {}]
  %s19 = inlined_call_operand.hbm [shape: bf16[96,32], index: 19, kind: input, shape index: {}]
  %s20 = inlined_call_operand.vmem [shape: f32[1,32], index: 20, kind: input, shape index: {}]
  %s21 = inlined_call_operand.hbm [shape: f32[32,64], index: 21, kind: input, shape index: {}]
  %s22 = inlined_call_operand.hbm [shape: bf16[192,64], index: 22, kind: input, shape index: {}]
  %s23 = inlined_call_operand.vmem [shape: f32[1,64], index: 23, kind: input, shape index: {}]
  %s24 = inlined_call_operand.hbm [shape: bf16[192,64], index: 24, kind: input, shape index: {}]
  %s25 = inlined_call_operand.vmem [shape: f32[1,64], index: 25, kind: input, shape index: {}]
  %s26 = inlined_call_operand.hbm [shape: bf16[192,48], index: 26, kind: input, shape index: {}]
  %s27 = inlined_call_operand.vmem [shape: f32[1,48], index: 27, kind: input, shape index: {}]
  %s28 = inlined_call_operand.vmem [shape: f32[2,16,48], index: 28, kind: output, shape index: {}]
  %s29 = sld [smem:[#allocation0]]
  $region225: #{d_forward.1} parent=0
    _
  %s31 = ssub.s32 1, %s29
  %s32 = scalar_select 0, %s31, %s29
  $region1: #{d_forward.1} parent=0
    #allocation2 [shape = 'u8[512]{0}', space=vmem, size = 0x400, scoped, tag = 'input window, operand 2, single buffered']
    #allocation3 [shape = 's32[2]{0}', space=sflag, size = 0x8, scoped, tag = 'scoped memory for d_forward.1']
    #allocation4 [shape = 'u8[49152]{0}', space=vmem, size = 0xc000, scoped, tag = 'input window, operand 3, single buffered']
    #allocation5 [shape = 's32[1]{0}', space=sflag, size = 0x4, scoped, tag = 'scoped memory for d_forward.1']
    #allocation6 [shape = 'u8[512]{0}', space=vmem, size = 0x400, scoped, tag = 'input window, operand 4, single buffered']
    #allocation7 [shape = 'u8[49152]{0}', space=vmem, size = 0xc000, scoped, tag = 'input window, operand 5, single buffered']
    #allocation8 [shape = 's32[1]{0}', space=sflag, size = 0x4, scoped, tag = 'scoped memory for d_forward.1']
    #allocation9 [shape = 'u8[512]{0}', space=vmem, size = 0x400, scoped, tag = 'input window, operand 6, single buffered']
    #allocation10 [shape = 'u8[49152]{0}', space=vmem, size = 0xc000, scoped, tag = 'input window, operand 7, single buffered']
    #allocation11 [shape = 's32[1]{0}', space=sflag, size = 0x4, scoped, tag = 'scoped memory for d_forward.1']
    #allocation12 [shape = 'u8[512]{0}', space=vmem, size = 0x400, scoped, tag = 'input window, operand 8, single buffered']
    #allocation13 [shape = 'u8[24576]{0}', space=vmem, size = 0x6000, scoped, tag = 'input window, operand 9, single buffered']
    #allocation14 [shape = 's32[1]{0}', space=sflag, size = 0x4, scoped, tag = 'scoped memory for d_forward.1']
    #allocation15 [shape = 'u8[512]{0}', space=vmem, size = 0x400, scoped, tag = 'input window, operand 10, single buffered']
    #allocation16 [shape = 'u8[49152]{0}', space=vmem, size = 0xc000, scoped, tag = 'input window, operand 11, single buffered']
    #allocation17 [shape = 's32[1]{0}', space=sflag, size = 0x4, scoped, tag = 'scoped memory for d_forward.1']
    #allocation18 [shape = 'u8[512]{0}', space=vmem, size = 0x400, scoped, tag = 'input window, operand 12, single buffered']
    #allocation19 [shape = 'u8[512]{0}', space=vmem, size = 0x400, scoped, tag = 'input window, operand 14, single buffered']
    #allocation20 [shape = 's32[1]{0}', space=sflag, size = 0x4, scoped, tag = 'scoped memory for d_forward.1']
    #allocation21 [shape = 'u8[16384]{0}', space=vmem, size = 0x4000, scoped, tag = 'input window, operand 15, single buffered']
    #allocation22 [shape = 'u8[24576]{0}', space=vmem, size = 0x6000, scoped, tag = 'input window, operand 17, single buffered']
    #allocation23 [shape = 's32[1]{0}', space=sflag, size = 0x4, scoped, tag = 'scoped memory for d_forward.1']
    #allocation24 [shape = 'u8[512]{0}', space=vmem, size = 0x400, scoped, tag = 'input window, operand 18, single buffered']
    #allocation25 [shape = 'u8[24576]{0}', space=vmem, size = 0x6000, scoped, tag = 'input window, operand 19, single buffered']
    #allocation26 [shape = 's32[1]{0}', space=sflag, size = 0x4, scoped, tag = 'scoped memory for d_forward.1']
    #allocation27 [shape = 'u8[16384]{0}', space=vmem, size = 0x4000, scoped, tag = 'input window, operand 21, single buffered']
    #allocation28 [shape = 'u8[49152]{0}', space=vmem, size = 0xc000, scoped, tag = 'input window, operand 22, single buffered']
    #allocation29 [shape = 's32[1]{0}', space=sflag, size = 0x4, scoped, tag = 'scoped memory for d_forward.1']
    #allocation30 [shape = 'u8[49152]{0}', space=vmem, size = 0xc000, scoped, tag = 'input window, operand 24, single buffered']
    #allocation31 [shape = 'u8[49152]{0}', space=vmem, size = 0xc000, scoped, tag = 'input window, operand 26, single buffered']
    #allocation32 [shape = 's32[1]{0}', space=sflag, size = 0x4, scoped, tag = 'scoped memory for d_forward.1']
    %33 = vsyncpa [#allocation3], 0
    %34 = vsyncpa [#allocation5], 0
    %35 = vsyncpa [#allocation8], 0
    %36 = vsyncpa [#allocation11], 0
    %37 = vsyncpa [#allocation14], 0
    %38 = vsyncpa [#allocation17], 0
    %39 = vsyncpa [#allocation20], 0
    %40 = vsyncpa [#allocation23], 0
    %41 = vsyncpa [#allocation26], 0
    %42 = vsyncpa [#allocation29], 0
    %43 = vsyncpa [#allocation32], 0
    loop: start=0, step=1, limit=4
    $region2: #{d_forward.1} parent=1 // loop_pre_header
      _
    $region3: #{d_forward.1} parent=1 // loop_header
      %s45 = sphi 0, %s49
      %p46 = scmp.ge.s32.totalorder %s45, 4
      %s55 = sphi 0, %s57
      %s58 = sphi 0, %s55
      %s59 = sphi 0, %s58
      %s75 = sphi 0, %s59
      %s79 = sphi 0, %s79
      %s81 = sphi 0, %s79
      %s82 = sphi 0, %s81
      %s96 = sphi 0, %s82
      %s100 = sphi 0, %s100
      %s102 = sphi 0, %s100
      %s103 = sphi 0, %s102
      %s117 = sphi 0, %s103
      %s121 = sphi 0, %s121
      %s123 = sphi 0, %s121
      %s124 = sphi 0, %s123
      %s138 = sphi 0, %s124
      %s142 = sphi 0, %s142
      %s144 = sphi 0, %s142
      %s145 = sphi 0, %s144
      %s159 = sphi 0, %s145
      %s163 = sphi 0, %s163
      %s165 = sphi 0, %s163
      %s166 = sphi 0, %s165
      %s180 = sphi 0, %s166
      %s184 = sphi 0, %s184
      %s186 = sphi 0, %s184
      %s187 = sphi 0, %s186
      %s201 = sphi 0, %s187
      %s205 = sphi 0, %s205
      %s207 = sphi 0, %s205
      %s208 = sphi 0, %s207
      %s222 = sphi 0, %s208
      %s226 = sphi 0, %s226
      %s228 = sphi 0, %s226
      %s229 = sphi 0, %s228
      %s243 = sphi 0, %s229
      %s247 = sphi 0, %s247
      %s249 = sphi 0, %s247
      %s250 = sphi 0, %s249
      %s264 = sphi 0, %s250
      %s268 = sphi 0, %s268
      %s270 = sphi 0, %s268
      %s271 = sphi 0, %s270
      %s285 = sphi 0, %s271
      %s289 = sphi 0, %s289
      %s291 = sphi 0, %s289
      %s292 = sphi 0, %s291
      %s306 = sphi 0, %s292
      %s310 = sphi 0, %s310
      %s312 = sphi 0, %s310
      %s313 = sphi 0, %s312
      %s327 = sphi 0, %s313
      %s331 = sphi 0, %s331
      %s333 = sphi 0, %s331
      %s334 = sphi 0, %s333
      %s348 = sphi 0, %s334
      %s352 = sphi 0, %s352
      %s354 = sphi 0, %s352
      %s355 = sphi 0, %s354
      %s369 = sphi 0, %s355
      %s373 = sphi 0, %s373
      %s375 = sphi 0, %s373
      %s376 = sphi 0, %s375
      %s390 = sphi 0, %s376
      %s394 = sphi 0, %s394
      %s396 = sphi 0, %s394
      %s397 = sphi 0, %s396
      %s411 = sphi 0, %s397
      %s415 = sphi 0, %s415
      %s417 = sphi 0, %s415
      %s418 = sphi 0, %s417
      %s432 = sphi 0, %s418
      %s436 = sphi 0, %s436
      %s438 = sphi 0, %s436
      %s439 = sphi 0, %s438
      %s453 = sphi 0, %s439
      %s457 = sphi 0, %s457
      %s459 = sphi 0, %s457
      %s460 = sphi 0, %s459
      %s474 = sphi 0, %s460
      %s478 = sphi 0, %s478
      %s480 = sphi 0, %s478
      %s481 = sphi 0, %s480
      %s495 = sphi 0, %s481
      %s499 = sphi 0, %s499
      %s501 = sphi 0, %s499
      %s502 = sphi 0, %s501
      %s516 = sphi 0, %s502
      %s520 = sphi 0, %s520
      %s522 = sphi 0, %s520
      %s523 = sphi 0, %s522
      %s537 = sphi 0, %s523
      %s541 = sphi 0, %s541
      %s543 = sphi 0, %s541
      %s544 = sphi 0, %s543
      %s558 = sphi 0, %s544
      %s562 = sphi 0, %s562
      %s564 = sphi 0, %s562
      %s565 = sphi 0, %s564
      %s579 = sphi 0, %s565
      %s583 = sphi 0, %s583
      %s585 = sphi 0, %s583
      %s586 = sphi 0, %s585
      %s600 = sphi 0, %s586
      %s604 = sphi 0, %s604
      %s606 = sphi 0, %s604
      %s607 = sphi 0, %s606
      %s621 = sphi 0, %s607
      %s625 = sphi 0, %s625
      %s627 = sphi 0, %s625
      %s628 = sphi 0, %s627
      %s642 = sphi 0, %s628
      %s648 = sphi 0, %s650
      %s651 = sphi 0, %s648
      %s652 = sphi 0, %s651
      %s668 = sphi 0, %s652
    $region4: #{d_forward.1} parent=1 // loop_header_branch
      %48 = sbr.rel (%p46) target = $region8
    $region5: #{d_forward.1} parent=1 // loop_body
      %s50 = ssub.s32 %s45, 1
      %s51 = ssub.s32 %s45, 2
      %s52 = sadd.s32 %s45, 1
      %s53 = ssub.s32 %s45, %s52
      %p54 = scmp.eq.s32.totalorder %s53, 0
      %s56 = sadd.s32 %s55, 1
      %s57 = scalar_select %p54, %s55, %s56
      %p60 = pneg %p54
      %p61 = scmp.eq.s32.totalorder %s45, 1
      %p62 = por %p60, %p61
      %p63 = scmp.ne.s32.totalorder %s55, %s58
      %p64 = scmp.eq.s32.totalorder %s45, 0
      %p65 = por %p63, %p64
      %p66 = scmp.ne.s32.totalorder %s55, %s58
      %p67 = scmp.eq.s32.totalorder %s50, 1
      %p68 = por %p66, %p67
      %p69 = scmp.ne.s32.totalorder %s58, %s59
      %p70 = scmp.eq.s32.totalorder %s50, 0
      %p71 = por %p69, %p70
      %p72 = scmp.ne.s32.totalorder %s58, %s59
      %p73 = scmp.eq.s32.totalorder %s51, 1
      %p74 = por %p72, %p73
      %p76 = scmp.ne.s32.totalorder %s59, %s75
      %p77 = scmp.eq.s32.totalorder %s51, 0
      %p78 = por %p76, %p77
      %s80 = sadd.s32 %s79, 1
      %p83 = scmp.eq.s32.totalorder %s45, 1
      %p84 = scmp.ne.s32.totalorder %s79, %s81
      %p85 = scmp.eq.s32.totalorder %s45, 0
      %p86 = por %p84, %p85
      %p87 = scmp.ne.s32.totalorder %s79, %s81
      %p88 = scmp.eq.s32.totalorder %s50, 1
      %p89 = por %p87, %p88
      %p90 = scmp.ne.s32.totalorder %s81, %s82
      %p91 = scmp.eq.s32.totalorder %s50, 0
      %p92 = por %p90, %p91
      %p93 = scmp.ne.s32.totalorder %s81, %s82
      %p94 = scmp.eq.s32.totalorder %s51, 1
      %p95 = por %p93, %p94
      %p97 = scmp.ne.s32.totalorder %s82, %s96
      %p98 = scmp.eq.s32.totalorder %s51, 0
      %p99 = por %p97, %p98
      %s101 = sadd.s32 %s100, 1
      %p104 = scmp.eq.s32.totalorder %s45, 1
      %p105 = scmp.ne.s32.totalorder %s100, %s102
      %p106 = scmp.eq.s32.totalorder %s45, 0
      %p107 = por %p105, %p106
      %p108 = scmp.ne.s32.totalorder %s100, %s102
      %p109 = scmp.eq.s32.totalorder %s50, 1
      %p110 = por %p108, %p109
      %p111 = scmp.ne.s32.totalorder %s102, %s103
      %p112 = scmp.eq.s32.totalorder %s50, 0
      %p113 = por %p111, %p112
      %p114 = scmp.ne.s32.totalorder %s102, %s103
      %p115 = scmp.eq.s32.totalorder %s51, 1
      %p116 = por %p114, %p115
      %p118 = scmp.ne.s32.totalorder %s103, %s117
      %p119 = scmp.eq.s32.totalorder %s51, 0
      %p120 = por %p118, %p119
      %s122 = sadd.s32 %s121, 1
      %p125 = scmp.eq.s32.totalorder %s45, 1
      %p126 = scmp.ne.s32.totalorder %s121, %s123
      %p127 = scmp.eq.s32.totalorder %s45, 0
      %p128 = por %p126, %p127
      %p129 = scmp.ne.s32.totalorder %s121, %s123
      %p130 = scmp.eq.s32.totalorder %s50, 1
      %p131 = por %p129, %p130
      %p132 = scmp.ne.s32.totalorder %s123, %s124
      %p133 = scmp.eq.s32.totalorder %s50, 0
      %p134 = por %p132, %p133
      %p135 = scmp.ne.s32.totalorder %s123, %s124
      %p136 = scmp.eq.s32.totalorder %s51, 1
      %p137 = por %p135, %p136
      %p139 = scmp.ne.s32.totalorder %s124, %s138
      %p140 = scmp.eq.s32.totalorder %s51, 0
      %p141 = por %p139, %p140
      %s143 = sadd.s32 %s142, 1
      %p146 = scmp.eq.s32.totalorder %s45, 1
      %p147 = scmp.ne.s32.totalorder %s142, %s144
      %p148 = scmp.eq.s32.totalorder %s45, 0
      %p149 = por %p147, %p148
      %p150 = scmp.ne.s32.totalorder %s142, %s144
      %p151 = scmp.eq.s32.totalorder %s50, 1
      %p152 = por %p150, %p151
      %p153 = scmp.ne.s32.totalorder %s144, %s145
      %p154 = scmp.eq.s32.totalorder %s50, 0
      %p155 = por %p153, %p154
      %p156 = scmp.ne.s32.totalorder %s144, %s145
      %p157 = scmp.eq.s32.totalorder %s51, 1
      %p158 = por %p156, %p157
      %p160 = scmp.ne.s32.totalorder %s145, %s159
      %p161 = scmp.eq.s32.totalorder %s51, 0
      %p162 = por %p160, %p161
      %s164 = sadd.s32 %s163, 1
      %p167 = scmp.eq.s32.totalorder %s45, 1
      %p168 = scmp.ne.s32.totalorder %s163, %s165
      %p169 = scmp.eq.s32.totalorder %s45, 0
      %p170 = por %p168, %p169
      %p171 = scmp.ne.s32.totalorder %s163, %s165
      %p172 = scmp.eq.s32.totalorder %s50, 1
      %p173 = por %p171, %p172
      %p174 = scmp.ne.s32.totalorder %s165, %s166
      %p175 = scmp.eq.s32.totalorder %s50, 0
      %p176 = por %p174, %p175
      %p177 = scmp.ne.s32.totalorder %s165, %s166
      %p178 = scmp.eq.s32.totalorder %s51, 1
      %p179 = por %p177, %p178
      %p181 = scmp.ne.s32.totalorder %s166, %s180
      %p182 = scmp.eq.s32.totalorder %s51, 0
      %p183 = por %p181, %p182
      %s185 = sadd.s32 %s184, 1
      %p188 = scmp.eq.s32.totalorder %s45, 1
      %p189 = scmp.ne.s32.totalorder %s184, %s186
      %p190 = scmp.eq.s32.totalorder %s45, 0
      %p191 = por %p189, %p190
      %p192 = scmp.ne.s32.totalorder %s184, %s186
      %p193 = scmp.eq.s32.totalorder %s50, 1
      %p194 = por %p192, %p193
      %p195 = scmp.ne.s32.totalorder %s186, %s187
      %p196 = scmp.eq.s32.totalorder %s50, 0
      %p197 = por %p195, %p196
      %p198 = scmp.ne.s32.totalorder %s186, %s187
      %p199 = scmp.eq.s32.totalorder %s51, 1
      %p200 = por %p198, %p199
      %p202 = scmp.ne.s32.totalorder %s187, %s201
      %p203 = scmp.eq.s32.totalorder %s51, 0
      %p204 = por %p202, %p203
      %s206 = sadd.s32 %s205, 1
      %p209 = scmp.eq.s32.totalorder %s45, 1
      %p210 = scmp.ne.s32.totalorder %s205, %s207
      %p211 = scmp.eq.s32.totalorder %s45, 0
      %p212 = por %p210, %p211
      %p213 = scmp.ne.s32.totalorder %s205, %s207
      %p214 = scmp.eq.s32.totalorder %s50, 1
      %p215 = por %p213, %p214
      %p216 = scmp.ne.s32.totalorder %s207, %s208
      %p217 = scmp.eq.s32.totalorder %s50, 0
      %p218 = por %p216, %p217
      %p219 = scmp.ne.s32.totalorder %s207, %s208
      %p220 = scmp.eq.s32.totalorder %s51, 1
      %p221 = por %p219, %p220
      %p223 = scmp.ne.s32.totalorder %s208, %s222
      %p224 = scmp.eq.s32.totalorder %s51, 0
      %p225 = por %p223, %p224
      %s227 = sadd.s32 %s226, 1
      %p230 = scmp.eq.s32.totalorder %s45, 1
      %p231 = scmp.ne.s32.totalorder %s226, %s228
      %p232 = scmp.eq.s32.totalorder %s45, 0
      %p233 = por %p231, %p232
      %p234 = scmp.ne.s32.totalorder %s226, %s228
      %p235 = scmp.eq.s32.totalorder %s50, 1
      %p236 = por %p234, %p235
      %p237 = scmp.ne.s32.totalorder %s228, %s229
      %p238 = scmp.eq.s32.totalorder %s50, 0
      %p239 = por %p237, %p238
      %p240 = scmp.ne.s32.totalorder %s228, %s229
      %p241 = scmp.eq.s32.totalorder %s51, 1
      %p242 = por %p240, %p241
      %p244 = scmp.ne.s32.totalorder %s229, %s243
      %p245 = scmp.eq.s32.totalorder %s51, 0
      %p246 = por %p244, %p245
      %s248 = sadd.s32 %s247, 1
      %p251 = scmp.eq.s32.totalorder %s45, 1
      %p252 = scmp.ne.s32.totalorder %s247, %s249
      %p253 = scmp.eq.s32.totalorder %s45, 0
      %p254 = por %p252, %p253
      %p255 = scmp.ne.s32.totalorder %s247, %s249
      %p256 = scmp.eq.s32.totalorder %s50, 1
      %p257 = por %p255, %p256
      %p258 = scmp.ne.s32.totalorder %s249, %s250
      %p259 = scmp.eq.s32.totalorder %s50, 0
      %p260 = por %p258, %p259
      %p261 = scmp.ne.s32.totalorder %s249, %s250
      %p262 = scmp.eq.s32.totalorder %s51, 1
      %p263 = por %p261, %p262
      %p265 = scmp.ne.s32.totalorder %s250, %s264
      %p266 = scmp.eq.s32.totalorder %s51, 0
      %p267 = por %p265, %p266
      %s269 = sadd.s32 %s268, 1
      %p272 = scmp.eq.s32.totalorder %s45, 1
      %p273 = scmp.ne.s32.totalorder %s268, %s270
      %p274 = scmp.eq.s32.totalorder %s45, 0
      %p275 = por %p273, %p274
      %p276 = scmp.ne.s32.totalorder %s268, %s270
      %p277 = scmp.eq.s32.totalorder %s50, 1
      %p278 = por %p276, %p277
      %p279 = scmp.ne.s32.totalorder %s270, %s271
      %p280 = scmp.eq.s32.totalorder %s50, 0
      %p281 = por %p279, %p280
      %p282 = scmp.ne.s32.totalorder %s270, %s271
      %p283 = scmp.eq.s32.totalorder %s51, 1
      %p284 = por %p282, %p283
      %p286 = scmp.ne.s32.totalorder %s271, %s285
      %p287 = scmp.eq.s32.totalorder %s51, 0
      %p288 = por %p286, %p287
      %s290 = sadd.s32 %s289, 1
      %p293 = scmp.eq.s32.totalorder %s45, 1
      %p294 = scmp.ne.s32.totalorder %s289, %s291
      %p295 = scmp.eq.s32.totalorder %s45, 0
      %p296 = por %p294, %p295
      %p297 = scmp.ne.s32.totalorder %s289, %s291
      %p298 = scmp.eq.s32.totalorder %s50, 1
      %p299 = por %p297, %p298
      %p300 = scmp.ne.s32.totalorder %s291, %s292
      %p301 = scmp.eq.s32.totalorder %s50, 0
      %p302 = por %p300, %p301
      %p303 = scmp.ne.s32.totalorder %s291, %s292
      %p304 = scmp.eq.s32.totalorder %s51, 1
      %p305 = por %p303, %p304
      %p307 = scmp.ne.s32.totalorder %s292, %s306
      %p308 = scmp.eq.s32.totalorder %s51, 0
      %p309 = por %p307, %p308
      %s311 = sadd.s32 %s310, 1
      %p314 = scmp.eq.s32.totalorder %s45, 1
      %p315 = scmp.ne.s32.totalorder %s310, %s312
      %p316 = scmp.eq.s32.totalorder %s45, 0
      %p317 = por %p315, %p316
      %p318 = scmp.ne.s32.totalorder %s310, %s312
      %p319 = scmp.eq.s32.totalorder %s50, 1
      %p320 = por %p318, %p319
      %p321 = scmp.ne.s32.totalorder %s312, %s313
      %p322 = scmp.eq.s32.totalorder %s50, 0
      %p323 = por %p321, %p322
      %p324 = scmp.ne.s32.totalorder %s312, %s313
      %p325 = scmp.eq.s32.totalorder %s51, 1
      %p326 = por %p324, %p325
      %p328 = scmp.ne.s32.totalorder %s313, %s327
      %p329 = scmp.eq.s32.totalorder %s51, 0
      %p330 = por %p328, %p329
      %s332 = sadd.s32 %s331, 1
      %p335 = scmp.eq.s32.totalorder %s45, 1
      %p336 = scmp.ne.s32.totalorder %s331, %s333
      %p337 = scmp.eq.s32.totalorder %s45, 0
      %p338 = por %p336, %p337
      %p339 = scmp.ne.s32.totalorder %s331, %s333
      %p340 = scmp.eq.s32.totalorder %s50, 1
      %p341 = por %p339, %p340
      %p342 = scmp.ne.s32.totalorder %s333, %s334
      %p343 = scmp.eq.s32.totalorder %s50, 0
      %p344 = por %p342, %p343
      %p345 = scmp.ne.s32.totalorder %s333, %s334
      %p346 = scmp.eq.s32.totalorder %s51, 1
      %p347 = por %p345, %p346
      %p349 = scmp.ne.s32.totalorder %s334, %s348
      %p350 = scmp.eq.s32.totalorder %s51, 0
      %p351 = por %p349, %p350
      %s353 = sadd.s32 %s352, 1
      %p356 = scmp.eq.s32.totalorder %s45, 1
      %p357 = scmp.ne.s32.totalorder %s352, %s354
      %p358 = scmp.eq.s32.totalorder %s45, 0
      %p359 = por %p357, %p358
      %p360 = scmp.ne.s32.totalorder %s352, %s354
      %p361 = scmp.eq.s32.totalorder %s50, 1
      %p362 = por %p360, %p361
      %p363 = scmp.ne.s32.totalorder %s354, %s355
      %p364 = scmp.eq.s32.totalorder %s50, 0
      %p365 = por %p363, %p364
      %p366 = scmp.ne.s32.totalorder %s354, %s355
      %p367 = scmp.eq.s32.totalorder %s51, 1
      %p368 = por %p366, %p367
      %p370 = scmp.ne.s32.totalorder %s355, %s369
      %p371 = scmp.eq.s32.totalorder %s51, 0
      %p372 = por %p370, %p371
      %s374 = sadd.s32 %s373, 1
      %p377 = scmp.eq.s32.totalorder %s45, 1
      %p378 = scmp.ne.s32.totalorder %s373, %s375
      %p379 = scmp.eq.s32.totalorder %s45, 0
      %p380 = por %p378, %p379
      %p381 = scmp.ne.s32.totalorder %s373, %s375
      %p382 = scmp.eq.s32.totalorder %s50, 1
      %p383 = por %p381, %p382
      %p384 = scmp.ne.s32.totalorder %s375, %s376
      %p385 = scmp.eq.s32.totalorder %s50, 0
      %p386 = por %p384, %p385
      %p387 = scmp.ne.s32.totalorder %s375, %s376
      %p388 = scmp.eq.s32.totalorder %s51, 1
      %p389 = por %p387, %p388
      %p391 = scmp.ne.s32.totalorder %s376, %s390
      %p392 = scmp.eq.s32.totalorder %s51, 0
      %p393 = por %p391, %p392
      %s395 = sadd.s32 %s394, 1
      %p398 = scmp.eq.s32.totalorder %s45, 1
      %p399 = scmp.ne.s32.totalorder %s394, %s396
      %p400 = scmp.eq.s32.totalorder %s45, 0
      %p401 = por %p399, %p400
      %p402 = scmp.ne.s32.totalorder %s394, %s396
      %p403 = scmp.eq.s32.totalorder %s50, 1
      %p404 = por %p402, %p403
      %p405 = scmp.ne.s32.totalorder %s396, %s397
      %p406 = scmp.eq.s32.totalorder %s50, 0
      %p407 = por %p405, %p406
      %p408 = scmp.ne.s32.totalorder %s396, %s397
      %p409 = scmp.eq.s32.totalorder %s51, 1
      %p410 = por %p408, %p409
      %p412 = scmp.ne.s32.totalorder %s397, %s411
      %p413 = scmp.eq.s32.totalorder %s51, 0
      %p414 = por %p412, %p413
      %s416 = sadd.s32 %s415, 1
      %p419 = scmp.eq.s32.totalorder %s45, 1
      %p420 = scmp.ne.s32.totalorder %s415, %s417
      %p421 = scmp.eq.s32.totalorder %s45, 0
      %p422 = por %p420, %p421
      %p423 = scmp.ne.s32.totalorder %s415, %s417
      %p424 = scmp.eq.s32.totalorder %s50, 1
      %p425 = por %p423, %p424
      %p426 = scmp.ne.s32.totalorder %s417, %s418
      %p427 = scmp.eq.s32.totalorder %s50, 0
      %p428 = por %p426, %p427
      %p429 = scmp.ne.s32.totalorder %s417, %s418
      %p430 = scmp.eq.s32.totalorder %s51, 1
      %p431 = por %p429, %p430
      %p433 = scmp.ne.s32.totalorder %s418, %s432
      %p434 = scmp.eq.s32.totalorder %s51, 0
      %p435 = por %p433, %p434
      %s437 = sadd.s32 %s436, 1
      %p440 = scmp.eq.s32.totalorder %s45, 1
      %p441 = scmp.ne.s32.totalorder %s436, %s438
      %p442 = scmp.eq.s32.totalorder %s45, 0
      %p443 = por %p441, %p442
      %p444 = scmp.ne.s32.totalorder %s436, %s438
      %p445 = scmp.eq.s32.totalorder %s50, 1
      %p446 = por %p444, %p445
      %p447 = scmp.ne.s32.totalorder %s438, %s439
      %p448 = scmp.eq.s32.totalorder %s50, 0
      %p449 = por %p447, %p448
      %p450 = scmp.ne.s32.totalorder %s438, %s439
      %p451 = scmp.eq.s32.totalorder %s51, 1
      %p452 = por %p450, %p451
      %p454 = scmp.ne.s32.totalorder %s439, %s453
      %p455 = scmp.eq.s32.totalorder %s51, 0
      %p456 = por %p454, %p455
      %s458 = sadd.s32 %s457, 1
      %p461 = scmp.eq.s32.totalorder %s45, 1
      %p462 = scmp.ne.s32.totalorder %s457, %s459
      %p463 = scmp.eq.s32.totalorder %s45, 0
      %p464 = por %p462, %p463
      %p465 = scmp.ne.s32.totalorder %s457, %s459
      %p466 = scmp.eq.s32.totalorder %s50, 1
      %p467 = por %p465, %p466
      %p468 = scmp.ne.s32.totalorder %s459, %s460
      %p469 = scmp.eq.s32.totalorder %s50, 0
      %p470 = por %p468, %p469
      %p471 = scmp.ne.s32.totalorder %s459, %s460
      %p472 = scmp.eq.s32.totalorder %s51, 1
      %p473 = por %p471, %p472
      %p475 = scmp.ne.s32.totalorder %s460, %s474
      %p476 = scmp.eq.s32.totalorder %s51, 0
      %p477 = por %p475, %p476
      %s479 = sadd.s32 %s478, 1
      %p482 = scmp.eq.s32.totalorder %s45, 1
      %p483 = scmp.ne.s32.totalorder %s478, %s480
      %p484 = scmp.eq.s32.totalorder %s45, 0
      %p485 = por %p483, %p484
      %p486 = scmp.ne.s32.totalorder %s478, %s480
      %p487 = scmp.eq.s32.totalorder %s50, 1
      %p488 = por %p486, %p487
      %p489 = scmp.ne.s32.totalorder %s480, %s481
      %p490 = scmp.eq.s32.totalorder %s50, 0
      %p491 = por %p489, %p490
      %p492 = scmp.ne.s32.totalorder %s480, %s481
      %p493 = scmp.eq.s32.totalorder %s51, 1
      %p494 = por %p492, %p493
      %p496 = scmp.ne.s32.totalorder %s481, %s495
      %p497 = scmp.eq.s32.totalorder %s51, 0
      %p498 = por %p496, %p497
      %s500 = sadd.s32 %s499, 1
      %p503 = scmp.eq.s32.totalorder %s45, 1
      %p504 = scmp.ne.s32.totalorder %s499, %s501
      %p505 = scmp.eq.s32.totalorder %s45, 0
      %p506 = por %p504, %p505
      %p507 = scmp.ne.s32.totalorder %s499, %s501
      %p508 = scmp.eq.s32.totalorder %s50, 1
      %p509 = por %p507, %p508
      %p510 = scmp.ne.s32.totalorder %s501, %s502
      %p511 = scmp.eq.s32.totalorder %s50, 0
      %p512 = por %p510, %p511
      %p513 = scmp.ne.s32.totalorder %s501, %s502
      %p514 = scmp.eq.s32.totalorder %s51, 1
      %p515 = por %p513, %p514
      %p517 = scmp.ne.s32.totalorder %s502, %s516
      %p518 = scmp.eq.s32.totalorder %s51, 0
      %p519 = por %p517, %p518
      %s521 = sadd.s32 %s520, 1
      %p524 = scmp.eq.s32.totalorder %s45, 1
      %p525 = scmp.ne.s32.totalorder %s520, %s522
      %p526 = scmp.eq.s32.totalorder %s45, 0
      %p527 = por %p525, %p526
      %p528 = scmp.ne.s32.totalorder %s520, %s522
      %p529 = scmp.eq.s32.totalorder %s50, 1
      %p530 = por %p528, %p529
      %p531 = scmp.ne.s32.totalorder %s522, %s523
      %p532 = scmp.eq.s32.totalorder %s50, 0
      %p533 = por %p531, %p532
      %p534 = scmp.ne.s32.totalorder %s522, %s523
      %p535 = scmp.eq.s32.totalorder %s51, 1
      %p536 = por %p534, %p535
      %p538 = scmp.ne.s32.totalorder %s523, %s537
      %p539 = scmp.eq.s32.totalorder %s51, 0
      %p540 = por %p538, %p539
      %s542 = sadd.s32 %s541, 1
      %p545 = scmp.eq.s32.totalorder %s45, 1
      %p546 = scmp.ne.s32.totalorder %s541, %s543
      %p547 = scmp.eq.s32.totalorder %s45, 0
      %p548 = por %p546, %p547
      %p549 = scmp.ne.s32.totalorder %s541, %s543
      %p550 = scmp.eq.s32.totalorder %s50, 1
      %p551 = por %p549, %p550
      %p552 = scmp.ne.s32.totalorder %s543, %s544
      %p553 = scmp.eq.s32.totalorder %s50, 0
      %p554 = por %p552, %p553
      %p555 = scmp.ne.s32.totalorder %s543, %s544
      %p556 = scmp.eq.s32.totalorder %s51, 1
      %p557 = por %p555, %p556
      %p559 = scmp.ne.s32.totalorder %s544, %s558
      %p560 = scmp.eq.s32.totalorder %s51, 0
      %p561 = por %p559, %p560
      %s563 = sadd.s32 %s562, 1
      %p566 = scmp.eq.s32.totalorder %s45, 1
      %p567 = scmp.ne.s32.totalorder %s562, %s564
      %p568 = scmp.eq.s32.totalorder %s45, 0
      %p569 = por %p567, %p568
      %p570 = scmp.ne.s32.totalorder %s562, %s564
      %p571 = scmp.eq.s32.totalorder %s50, 1
      %p572 = por %p570, %p571
      %p573 = scmp.ne.s32.totalorder %s564, %s565
      %p574 = scmp.eq.s32.totalorder %s50, 0
      %p575 = por %p573, %p574
      %p576 = scmp.ne.s32.totalorder %s564, %s565
      %p577 = scmp.eq.s32.totalorder %s51, 1
      %p578 = por %p576, %p577
      %p580 = scmp.ne.s32.totalorder %s565, %s579
      %p581 = scmp.eq.s32.totalorder %s51, 0
      %p582 = por %p580, %p581
      %s584 = sadd.s32 %s583, 1
      %p587 = scmp.eq.s32.totalorder %s45, 1
      %p588 = scmp.ne.s32.totalorder %s583, %s585
      %p589 = scmp.eq.s32.totalorder %s45, 0
      %p590 = por %p588, %p589
      %p591 = scmp.ne.s32.totalorder %s583, %s585
      %p592 = scmp.eq.s32.totalorder %s50, 1
      %p593 = por %p591, %p592
      %p594 = scmp.ne.s32.totalorder %s585, %s586
      %p595 = scmp.eq.s32.totalorder %s50, 0
      %p596 = por %p594, %p595
      %p597 = scmp.ne.s32.totalorder %s585, %s586
      %p598 = scmp.eq.s32.totalorder %s51, 1
      %p599 = por %p597, %p598
      %p601 = scmp.ne.s32.totalorder %s586, %s600
      %p602 = scmp.eq.s32.totalorder %s51, 0
      %p603 = por %p601, %p602
      %s605 = sadd.s32 %s604, 1
      %p608 = scmp.eq.s32.totalorder %s45, 1
      %p609 = scmp.ne.s32.totalorder %s604, %s606
      %p610 = scmp.eq.s32.totalorder %s45, 0
      %p611 = por %p609, %p610
      %p612 = scmp.ne.s32.totalorder %s604, %s606
      %p613 = scmp.eq.s32.totalorder %s50, 1
      %p614 = por %p612, %p613
      %p615 = scmp.ne.s32.totalorder %s606, %s607
      %p616 = scmp.eq.s32.totalorder %s50, 0
      %p617 = por %p615, %p616
      %p618 = scmp.ne.s32.totalorder %s606, %s607
      %p619 = scmp.eq.s32.totalorder %s51, 1
      %p620 = por %p618, %p619
      %p622 = scmp.ne.s32.totalorder %s607, %s621
      %p623 = scmp.eq.s32.totalorder %s51, 0
      %p624 = por %p622, %p623
      %s626 = sadd.s32 %s625, 1
      %p629 = scmp.eq.s32.totalorder %s45, 1
      %p630 = scmp.ne.s32.totalorder %s625, %s627
      %p631 = scmp.eq.s32.totalorder %s45, 0
      %p632 = por %p630, %p631
      %p633 = scmp.ne.s32.totalorder %s625, %s627
      %p634 = scmp.eq.s32.totalorder %s50, 1
      %p635 = por %p633, %p634
      %p636 = scmp.ne.s32.totalorder %s627, %s628
      %p637 = scmp.eq.s32.totalorder %s50, 0
      %p638 = por %p636, %p637
      %p639 = scmp.ne.s32.totalorder %s627, %s628
      %p640 = scmp.eq.s32.totalorder %s51, 1
      %p641 = por %p639, %p640
      %p643 = scmp.ne.s32.totalorder %s628, %s642
      %p644 = scmp.eq.s32.totalorder %s51, 0
      %p645 = por %p643, %p644
      %s646 = ssub.s32 %s45, %s52
      %p647 = scmp.eq.s32.totalorder %s646, 0
      %s649 = sadd.s32 %s648, 1
      %s650 = scalar_select %p647, %s648, %s649
      %p653 = pneg %p647
      %p654 = scmp.eq.s32.totalorder %s45, 1
      %p655 = por %p653, %p654
      %p656 = scmp.ne.s32.totalorder %s648, %s651
      %p657 = scmp.eq.s32.totalorder %s45, 0
      %p658 = por %p656, %p657
      %p659 = scmp.ne.s32.totalorder %s648, %s651
      %p660 = scmp.eq.s32.totalorder %s50, 1
      %p661 = por %p659, %p660
      %p662 = scmp.ne.s32.totalorder %s651, %s652
      %p663 = scmp.eq.s32.totalorder %s50, 0
      %p664 = por %p662, %p663
      %p665 = scmp.ne.s32.totalorder %s651, %s652
      %p666 = scmp.eq.s32.totalorder %s51, 1
      %p667 = por %p665, %p666
      %p669 = scmp.ne.s32.totalorder %s652, %s668
      %p670 = scmp.eq.s32.totalorder %s51, 0
      %p671 = por %p669, %p670
      %p672 = scmp.le.s32.totalorder 1, %s45
      %p673 = scmp.lt.s32.totalorder %s45, 3
      %p674 = pnand %p672, %p673
      %p675 = pneg %p674
      // Predicated region
      $region9: #{d_forward.1} parent=5 // pred_check
        _
      $region10: #{d_forward.1} parent=5 // pred_check_branch
        %677 = sbr.rel (%p674) target = $region12
      $region11: #{d_forward.1} parent=5 // pred_region
        %s678 = ssub.s32 %s45, 1
        // Predicated region
        $region13: #{d_forward.1} parent=11 // pred_check
          %p679 = pneg %p92
        $region14: #{d_forward.1} parent=11 // pred_check_branch
          %681 = sbr.rel (%p679) target = $region16
        $region15: #{d_forward.1} parent=11 // pred_region
          _
        $region16: #{d_forward.1} parent=11 // pred_fallthru
          _
        // Predicated region
        $region17: #{d_forward.1} parent=11 // pred_check
          %p682 = pneg %p113
        $region18: #{d_forward.1} parent=11 // pred_check_branch
          %684 = sbr.rel (%p682) target = $region20
        $region19: #{d_forward.1} parent=11 // pred_region
          %686 = vsyncadd [#allocation3], 0
          %s688 = sshll.u32 %s2, 4
          %s689 = int_to_ptr.hbm [resolvable:$true] %s688
          %s690 = sshll.u32 [#allocation2], 4
          %s691 = int_to_ptr.vmem [resolvable:$true] %s690
          %693 = dma.hbm_to_vmem [thread:$0]  %s689, 16, %s691, [#allocation3]
        $region20: #{d_forward.1} parent=11 // pred_fallthru
          _
        // Predicated region
        $region21: #{d_forward.1} parent=11 // pred_check
          %p694 = pneg %p134
        $region22: #{d_forward.1} parent=11 // pred_check_branch
          %696 = sbr.rel (%p694) target = $region24
        $region23: #{d_forward.1} parent=11 // pred_region
          %698 = vsyncadd [#allocation5], 0
          %s699 = sshll.u32 %s3, 4
          %s700 = int_to_ptr.hbm [resolvable:$true] %s699
          %s701 = sshll.u32 [#allocation4], 4
          %s702 = int_to_ptr.vmem [resolvable:$true] %s701
          %707 = dma.hbm_to_vmem [thread:$0]  %s700, 1536, %s702, [#allocation5], 64, 64, 4
        $region24: #{d_forward.1} parent=11 // pred_fallthru
          _
        // Predicated region
        $region25: #{d_forward.1} parent=11 // pred_check
          %p708 = pneg %p155
        $region26: #{d_forward.1} parent=11 // pred_check_branch
          %710 = sbr.rel (%p708) target = $region28
        $region27: #{d_forward.1} parent=11 // pred_region
          %712 = vsyncadd [#allocation5], 0
          %s714 = sshll.u32 %s4, 4
          %s715 = int_to_ptr.hbm [resolvable:$true] %s714
          %s716 = sshll.u32 [#allocation6], 4
          %s717 = int_to_ptr.vmem [resolvable:$true] %s716
          %719 = dma.hbm_to_vmem [thread:$0]  %s715, 16, %s717, [#allocation5]
        $region28: #{d_forward.1} parent=11 // pred_fallthru
          _
        // Predicated region
        $region29: #{d_forward.1} parent=11 // pred_check
          %p720 = pneg %p176
        $region30: #{d_forward.1} parent=11 // pred_check_branch
          %722 = sbr.rel (%p720) target = $region32
        $region31: #{d_forward.1} parent=11 // pred_region
          %724 = vsyncadd [#allocation8], 0
          %s725 = sshll.u32 %s5, 4
          %s726 = int_to_ptr.hbm [resolvable:$true] %s725
          %s727 = sshll.u32 [#allocation7], 4
          %s728 = int_to_ptr.vmem [resolvable:$true] %s727
          %733 = dma.hbm_to_vmem [thread:$0]  %s726, 1536, %s728, [#allocation8], 64, 64, 4
        $region32: #{d_forward.1} parent=11 // pred_fallthru
          _
        // Predicated region
        $region33: #{d_forward.1} parent=11 // pred_check
          %p734 = pneg %p197
        $region34: #{d_forward.1} parent=11 // pred_check_branch
          %736 = sbr.rel (%p734) target = $region36
        $region35: #{d_forward.1} parent=11 // pred_region
          %738 = vsyncadd [#allocation8], 0
          %s740 = sshll.u32 %s6, 4
          %s741 = int_to_ptr.hbm [resolvable:$true] %s740
          %s742 = sshll.u32 [#allocation9], 4
          %s743 = int_to_ptr.vmem [resolvable:$true] %s742
          %745 = dma.hbm_to_vmem [thread:$0]  %s741, 16, %s743, [#allocation8]
        $region36: #{d_forward.1} parent=11 // pred_fallthru
          _
        // Predicated region
        $region37: #{d_forward.1} parent=11 // pred_check
          %p746 = pneg %p218
        $region38: #{d_forward.1} parent=11 // pred_check_branch
          %748 = sbr.rel (%p746) target = $region40
        $region39: #{d_forward.1} parent=11 // pred_region
          %750 = vsyncadd [#allocation11], 0
          %s751 = sshll.u32 %s7, 4
          %s752 = int_to_ptr.hbm [resolvable:$true] %s751
          %s753 = sshll.u32 [#allocation10], 4
          %s754 = int_to_ptr.vmem [resolvable:$true] %s753
          %759 = dma.hbm_to_vmem [thread:$0]  %s752, 1536, %s754, [#allocation11], 64, 64, 4
        $region40: #{d_forward.1} parent=11 // pred_fallthru
          _
        // Predicated region
        $region41: #{d_forward.1} parent=11 // pred_check
          %p760 = pneg %p239
        $region42: #{d_forward.1} parent=11 // pred_check_branch
          %762 = sbr.rel (%p760) target = $region44
        $region43: #{d_forward.1} parent=11 // pred_region
          %764 = vsyncadd [#allocation11], 0
          %s766 = sshll.u32 %s8, 4
          %s767 = int_to_ptr.hbm [resolvable:$true] %s766
          %s768 = sshll.u32 [#allocation12], 4
          %s769 = int_to_ptr.vmem [resolvable:$true] %s768
          %771 = dma.hbm_to_vmem [thread:$0]  %s767, 16, %s769, [#allocation11]
        $region44: #{d_forward.1} parent=11 // pred_fallthru
          _
        // Predicated region
        $region45: #{d_forward.1} parent=11 // pred_check
          %p772 = pneg %p260
        $region46: #{d_forward.1} parent=11 // pred_check_branch
          %774 = sbr.rel (%p772) target = $region48
        $region47: #{d_forward.1} parent=11 // pred_region
          %776 = vsyncadd [#allocation14], 0
          %s777 = sshll.u32 %s9, 4
          %s778 = int_to_ptr.hbm [resolvable:$true] %s777
          %s779 = sshll.u32 [#allocation13], 4
          %s780 = int_to_ptr.vmem [resolvable:$true] %s779
          %785 = dma.hbm_to_vmem [thread:$0]  %s778, 768, %s780, [#allocation14], 64, 64, 4
        $region48: #{d_forward.1} parent=11 // pred_fallthru
          _
        // Predicated region
        $region49: #{d_forward.1} parent=11 // pred_check
          %p786 = pneg %p281
        $region50: #{d_forward.1} parent=11 // pred_check_branch
          %788 = sbr.rel (%p786) target = $region52
        $region51: #{d_forward.1} parent=11 // pred_region
          %790 = vsyncadd [#allocation14], 0
          %s792 = sshll.u32 %s10, 4
          %s793 = int_to_ptr.hbm [resolvable:$true] %s792
          %s794 = sshll.u32 [#allocation15], 4
          %s795 = int_to_ptr.vmem [resolvable:$true] %s794
          %797 = dma.hbm_to_vmem [thread:$0]  %s793, 16, %s795, [#allocation14]
        $region52: #{d_forward.1} parent=11 // pred_fallthru
          _
        // Predicated region
        $region53: #{d_forward.1} parent=11 // pred_check
          %p798 = pneg %p302
        $region54: #{d_forward.1} parent=11 // pred_check_branch
          %800 = sbr.rel (%p798) target = $region56
        $region55: #{d_forward.1} parent=11 // pred_region
          %802 = vsyncadd [#allocation17], 0
          %s803 = sshll.u32 %s11, 4
          %s804 = int_to_ptr.hbm [resolvable:$true] %s803
          %s805 = sshll.u32 [#allocation16], 4
          %s806 = int_to_ptr.vmem [resolvable:$true] %s805
          %811 = dma.hbm_to_vmem [thread:$0]  %s804, 1536, %s806, [#allocation17], 64, 64, 4
        $region56: #{d_forward.1} parent=11 // pred_fallthru
          _
        // Predicated region
        $region57: #{d_forward.1} parent=11 // pred_check
          %p812 = pneg %p323
        $region58: #{d_forward.1} parent=11 // pred_check_branch
          %814 = sbr.rel (%p812) target = $region60
        $region59: #{d_forward.1} parent=11 // pred_region
          %816 = vsyncadd [#allocation17], 0
          %s818 = sshll.u32 %s12, 4
          %s819 = int_to_ptr.hbm [resolvable:$true] %s818
          %s820 = sshll.u32 [#allocation18], 4
          %s821 = int_to_ptr.vmem [resolvable:$true] %s820
          %823 = dma.hbm_to_vmem [thread:$0]  %s819, 16, %s821, [#allocation17]
        $region60: #{d_forward.1} parent=11 // pred_fallthru
          _
        // Predicated region
        $region61: #{d_forward.1} parent=11 // pred_check
          %p824 = pneg %p344
        $region62: #{d_forward.1} parent=11 // pred_check_branch
          %826 = sbr.rel (%p824) target = $region64
        $region63: #{d_forward.1} parent=11 // pred_region
          _
        $region64: #{d_forward.1} parent=11 // pred_fallthru
          _
        // Predicated region
        $region65: #{d_forward.1} parent=11 // pred_check
          %p827 = pneg %p365
        $region66: #{d_forward.1} parent=11 // pred_check_branch
          %829 = sbr.rel (%p827) target = $region68
        $region67: #{d_forward.1} parent=11 // pred_region
          %831 = vsyncadd [#allocation20], 0
          %s833 = sshll.u32 %s14, 4
          %s834 = int_to_ptr.hbm [resolvable:$true] %s833
          %s835 = sshll.u32 [#allocation19], 4
          %s836 = int_to_ptr.vmem [resolvable:$true] %s835
          %838 = dma.hbm_to_vmem [thread:$0]  %s834, 16, %s836, [#allocation20]
        $region68: #{d_forward.1} parent=11 // pred_fallthru
          _
        // Predicated region
        $region69: #{d_forward.1} parent=11 // pred_check
          %p839 = pneg %p386
        $region70: #{d_forward.1} parent=11 // pred_check_branch
          %841 = sbr.rel (%p839) target = $region72
        $region71: #{d_forward.1} parent=11 // pred_region
          %843 = vsyncadd [#allocation20], 0
          %s844 = sshll.u32 %s15, 4
          %s845 = int_to_ptr.hbm [resolvable:$true] %s844
          %s846 = sshll.u32 [#allocation21], 4
          %s847 = int_to_ptr.vmem [resolvable:$true] %s846
          %852 = dma.hbm_to_vmem [thread:$0]  %s845, 512, %s847, [#allocation20], 64, 64, 4
        $region72: #{d_forward.1} parent=11 // pred_fallthru
          _
        // Predicated region
        $region73: #{d_forward.1} parent=11 // pred_check
          %p853 = pneg %p407
        $region74: #{d_forward.1} parent=11 // pred_check_branch
          %855 = sbr.rel (%p853) target = $region76
        $region75: #{d_forward.1} parent=11 // pred_region
          _
        $region76: #{d_forward.1} parent=11 // pred_fallthru
          _
        // Predicated region
        $region77: #{d_forward.1} parent=11 // pred_check
          %p856 = pneg %p428
        $region78: #{d_forward.1} parent=11 // pred_check_branch
          %858 = sbr.rel (%p856) target = $region80
        $region79: #{d_forward.1} parent=11 // pred_region
          %860 = vsyncadd [#allocation23], 0
          %s861 = sshll.u32 %s17, 4
          %s862 = int_to_ptr.hbm [resolvable:$true] %s861
          %s863 = sshll.u32 [#allocation22], 4
          %s864 = int_to_ptr.vmem [resolvable:$true] %s863
          %869 = dma.hbm_to_vmem [thread:$0]  %s862, 768, %s864, [#allocation23], 64, 64, 4
        $region80: #{d_forward.1} parent=11 // pred_fallthru
          _
        // Predicated region
        $region81: #{d_forward.1} parent=11 // pred_check
          %p870 = pneg %p449
        $region82: #{d_forward.1} parent=11 // pred_check_branch
          %872 = sbr.rel (%p870) target = $region84
        $region83: #{d_forward.1} parent=11 // pred_region
          %874 = vsyncadd [#allocation23], 0
          %s876 = sshll.u32 %s18, 4
          %s877 = int_to_ptr.hbm [resolvable:$true] %s876
          %s878 = sshll.u32 [#allocation24], 4
          %s879 = int_to_ptr.vmem [resolvable:$true] %s878
          %881 = dma.hbm_to_vmem [thread:$0]  %s877, 16, %s879, [#allocation23]
        $region84: #{d_forward.1} parent=11 // pred_fallthru
          _
        // Predicated region
        $region85: #{d_forward.1} parent=11 // pred_check
          %p882 = pneg %p470
        $region86: #{d_forward.1} parent=11 // pred_check_branch
          %884 = sbr.rel (%p882) target = $region88
        $region87: #{d_forward.1} parent=11 // pred_region
          %886 = vsyncadd [#allocation26], 0
          %s887 = sshll.u32 %s19, 4
          %s888 = int_to_ptr.hbm [resolvable:$true] %s887
          %s889 = sshll.u32 [#allocation25], 4
          %s890 = int_to_ptr.vmem [resolvable:$true] %s889
          %895 = dma.hbm_to_vmem [thread:$0]  %s888, 768, %s890, [#allocation26], 64, 64, 4
        $region88: #{d_forward.1} parent=11 // pred_fallthru
          _
        // Predicated region
        $region89: #{d_forward.1} parent=11 // pred_check
          %p896 = pneg %p491
        $region90: #{d_forward.1} parent=11 // pred_check_branch
          %898 = sbr.rel (%p896) target = $region92
        $region91: #{d_forward.1} parent=11 // pred_region
          _
        $region92: #{d_forward.1} parent=11 // pred_fallthru
          _
        // Predicated region
        $region93: #{d_forward.1} parent=11 // pred_check
          %p899 = pneg %p512
        $region94: #{d_forward.1} parent=11 // pred_check_branch
          %901 = sbr.rel (%p899) target = $region96
        $region95: #{d_forward.1} parent=11 // pred_region
          %903 = vsyncadd [#allocation26], 0
          %s904 = sshll.u32 %s21, 4
          %s905 = int_to_ptr.hbm [resolvable:$true] %s904
          %s906 = sshll.u32 [#allocation27], 4
          %s907 = int_to_ptr.vmem [resolvable:$true] %s906
          %912 = dma.hbm_to_vmem [thread:$0]  %s905, 512, %s907, [#allocation26], 128, 128, 8
        $region96: #{d_forward.1} parent=11 // pred_fallthru
          _
        // Predicated region
        $region97: #{d_forward.1} parent=11 // pred_check
          %p913 = pneg %p533
        $region98: #{d_forward.1} parent=11 // pred_check_branch
          %915 = sbr.rel (%p913) target = $region100
        $region99: #{d_forward.1} parent=11 // pred_region
          %917 = vsyncadd [#allocation29], 0
          %s918 = sshll.u32 %s22, 4
          %s919 = int_to_ptr.hbm [resolvable:$true] %s918
          %s920 = sshll.u32 [#allocation28], 4
          %s921 = int_to_ptr.vmem [resolvable:$true] %s920
          %926 = dma.hbm_to_vmem [thread:$0]  %s919, 1536, %s921, [#allocation29], 64, 64, 4
        $region100: #{d_forward.1} parent=11 // pred_fallthru
          _
        // Predicated region
        $region101: #{d_forward.1} parent=11 // pred_check
          %p927 = pneg %p554
        $region102: #{d_forward.1} parent=11 // pred_check_branch
          %929 = sbr.rel (%p927) target = $region104
        $region103: #{d_forward.1} parent=11 // pred_region
          _
        $region104: #{d_forward.1} parent=11 // pred_fallthru
          _
        // Predicated region
        $region105: #{d_forward.1} parent=11 // pred_check
          %p930 = pneg %p575
        $region106: #{d_forward.1} parent=11 // pred_check_branch
          %932 = sbr.rel (%p930) target = $region108
        $region107: #{d_forward.1} parent=11 // pred_region
          %934 = vsyncadd [#allocation29], 0
          %s935 = sshll.u32 %s24, 4
          %s936 = int_to_ptr.hbm [resolvable:$true] %s935
          %s937 = sshll.u32 [#allocation30], 4
          %s938 = int_to_ptr.vmem [resolvable:$true] %s937
          %943 = dma.hbm_to_vmem [thread:$0]  %s936, 1536, %s938, [#allocation29], 64, 64, 4
        $region108: #{d_forward.1} parent=11 // pred_fallthru
          _
        // Predicated region
        $region109: #{d_forward.1} parent=11 // pred_check
          %p944 = pneg %p596
        $region110: #{d_forward.1} parent=11 // pred_check_branch
          %946 = sbr.rel (%p944) target = $region112
        $region111: #{d_forward.1} parent=11 // pred_region
          _
        $region112: #{d_forward.1} parent=11 // pred_fallthru
          _
        // Predicated region
        $region113: #{d_forward.1} parent=11 // pred_check
          %p947 = pneg %p617
        $region114: #{d_forward.1} parent=11 // pred_check_branch
          %949 = sbr.rel (%p947) target = $region116
        $region115: #{d_forward.1} parent=11 // pred_region
          %951 = vsyncadd [#allocation32], 0
          %s952 = sshll.u32 %s26, 4
          %s953 = int_to_ptr.hbm [resolvable:$true] %s952
          %s954 = sshll.u32 [#allocation31], 4
          %s955 = int_to_ptr.vmem [resolvable:$true] %s954
          %960 = dma.hbm_to_vmem [thread:$0]  %s953, 1536, %s955, [#allocation32], 64, 64, 4
        $region116: #{d_forward.1} parent=11 // pred_fallthru
          _
        // Predicated region
        $region117: #{d_forward.1} parent=11 // pred_check
          %p961 = pneg %p638
        $region118: #{d_forward.1} parent=11 // pred_check_branch
          %963 = sbr.rel (%p961) target = $region120
        $region119: #{d_forward.1} parent=11 // pred_region
          _
        $region120: #{d_forward.1} parent=11 // pred_fallthru
          _
      $region12: #{d_forward.1} parent=5 // pred_fallthru
        _
      %p964 = scmp.lt.s32.totalorder %s45, 2
      // Predicated region
      $region121: #{d_forward.1} parent=5 // pred_check
        %p965 = pneg %p964
      $region122: #{d_forward.1} parent=5 // pred_check_branch
        %967 = sbr.rel (%p965) target = $region124
      $region123: #{d_forward.1} parent=5 // pred_region
        // Predicated region
        $region125: #{d_forward.1} parent=123 // pred_check
          %p968 = pneg %p65
        $region126: #{d_forward.1} parent=123 // pred_check_branch
          %970 = sbr.rel (%p968) target = $region128
        $region127: #{d_forward.1} parent=123 // pred_region
          %p971 = scmp.lt.s32.totalorder %s45, 1
          %s972 = scalar_select %p971, %s45, 1
          %s973 = smul.addr %s972, 2
          %s974 = smul.addr %s973, 8
          %s975 = scalar_lea.vmem %s0, %s974
        $region128: #{d_forward.1} parent=123 // pred_fallthru
          _
      $region124: #{d_forward.1} parent=5 // pred_fallthru
        _
      %p976 = scmp.le.s32.totalorder 1, %s45
      %p977 = scmp.lt.s32.totalorder %s45, 3
      %p978 = pnand %p976, %p977
      %p979 = pneg %p978
      // Predicated region
      $region129: #{d_forward.1} parent=5 // pred_check
        _
      $region130: #{d_forward.1} parent=5 // pred_check_branch
        %981 = sbr.rel (%p978) target = $region132
      $region131: #{d_forward.1} parent=5 // pred_region
        %s982 = ssub.s32 %s45, 1
        // Predicated region
        $region133: #{d_forward.1} parent=131 // pred_check
          %p983 = pneg %p113
        $region134: #{d_forward.1} parent=131 // pred_check_branch
          %985 = sbr.rel (%p983) target = $region136
        $region135: #{d_forward.1} parent=131 // pred_region
          %987 = dma.done [#allocation3], 16
        $region136: #{d_forward.1} parent=131 // pred_fallthru
          _
        // Predicated region
        $region137: #{d_forward.1} parent=131 // pred_check
          %p988 = pneg %p134
        $region138: #{d_forward.1} parent=131 // pred_check_branch
          %990 = sbr.rel (%p988) target = $region140
        $region139: #{d_forward.1} parent=131 // pred_region
          %992 = dma.done [#allocation5], 1536
        $region140: #{d_forward.1} parent=131 // pred_fallthru
          _
        // Predicated region
        $region141: #{d_forward.1} parent=131 // pred_check
          %p993 = pneg %p155
        $region142: #{d_forward.1} parent=131 // pred_check_branch
          %995 = sbr.rel (%p993) target = $region144
        $region143: #{d_forward.1} parent=131 // pred_region
          %997 = dma.done [#allocation5], 16
        $region144: #{d_forward.1} parent=131 // pred_fallthru
          _
        // Predicated region
        $region145: #{d_forward.1} parent=131 // pred_check
          %p998 = pneg %p176
        $region146: #{d_forward.1} parent=131 // pred_check_branch
          %1000 = sbr.rel (%p998) target = $region148
        $region147: #{d_forward.1} parent=131 // pred_region
          %1002 = dma.done [#allocation8], 1536
        $region148: #{d_forward.1} parent=131 // pred_fallthru
          _
        // Predicated region
        $region149: #{d_forward.1} parent=131 // pred_check
          %p1003 = pneg %p197
        $region150: #{d_forward.1} parent=131 // pred_check_branch
          %1005 = sbr.rel (%p1003) target = $region152
        $region151: #{d_forward.1} parent=131 // pred_region
          %1007 = dma.done [#allocation8], 16
        $region152: #{d_forward.1} parent=131 // pred_fallthru
          _
        // Predicated region
        $region153: #{d_forward.1} parent=131 // pred_check
          %p1008 = pneg %p218
        $region154: #{d_forward.1} parent=131 // pred_check_branch
          %1010 = sbr.rel (%p1008) target = $region156
        $region155: #{d_forward.1} parent=131 // pred_region
          %1012 = dma.done [#allocation11], 1536
        $region156: #{d_forward.1} parent=131 // pred_fallthru
          _
        // Predicated region
        $region157: #{d_forward.1} parent=131 // pred_check
          %p1013 = pneg %p239
        $region158: #{d_forward.1} parent=131 // pred_check_branch
          %1015 = sbr.rel (%p1013) target = $region160
        $region159: #{d_forward.1} parent=131 // pred_region
          %1017 = dma.done [#allocation11], 16
        $region160: #{d_forward.1} parent=131 // pred_fallthru
          _
        // Predicated region
        $region161: #{d_forward.1} parent=131 // pred_check
          %p1018 = pneg %p260
        $region162: #{d_forward.1} parent=131 // pred_check_branch
          %1020 = sbr.rel (%p1018) target = $region164
        $region163: #{d_forward.1} parent=131 // pred_region
          %1022 = dma.done [#allocation14], 768
        $region164: #{d_forward.1} parent=131 // pred_fallthru
          _
        // Predicated region
        $region165: #{d_forward.1} parent=131 // pred_check
          %p1023 = pneg %p281
        $region166: #{d_forward.1} parent=131 // pred_check_branch
          %1025 = sbr.rel (%p1023) target = $region168
        $region167: #{d_forward.1} parent=131 // pred_region
          %1027 = dma.done [#allocation14], 16
        $region168: #{d_forward.1} parent=131 // pred_fallthru
          _
        // Predicated region
        $region169: #{d_forward.1} parent=131 // pred_check
          %p1028 = pneg %p302
        $region170: #{d_forward.1} parent=131 // pred_check_branch
          %1030 = sbr.rel (%p1028) target = $region172
        $region171: #{d_forward.1} parent=131 // pred_region
          %1032 = dma.done [#allocation17], 1536
        $region172: #{d_forward.1} parent=131 // pred_fallthru
          _
        // Predicated region
        $region173: #{d_forward.1} parent=131 // pred_check
          %p1033 = pneg %p323
        $region174: #{d_forward.1} parent=131 // pred_check_branch
          %1035 = sbr.rel (%p1033) target = $region176
        $region175: #{d_forward.1} parent=131 // pred_region
          %1037 = dma.done [#allocation17], 16
        $region176: #{d_forward.1} parent=131 // pred_fallthru
          _
        // Predicated region
        $region177: #{d_forward.1} parent=131 // pred_check
          %p1038 = pneg %p365
        $region178: #{d_forward.1} parent=131 // pred_check_branch
          %1040 = sbr.rel (%p1038) target = $region180
        $region179: #{d_forward.1} parent=131 // pred_region
          %1042 = dma.done [#allocation20], 16
        $region180: #{d_forward.1} parent=131 // pred_fallthru
          _
        // Predicated region
        $region181: #{d_forward.1} parent=131 // pred_check
          %p1043 = pneg %p386
        $region182: #{d_forward.1} parent=131 // pred_check_branch
          %1045 = sbr.rel (%p1043) target = $region184
        $region183: #{d_forward.1} parent=131 // pred_region
          %1047 = dma.done [#allocation20], 512
        $region184: #{d_forward.1} parent=131 // pred_fallthru
          _
        // Predicated region
        $region185: #{d_forward.1} parent=131 // pred_check
          %p1048 = pneg %p428
        $region186: #{d_forward.1} parent=131 // pred_check_branch
          %1050 = sbr.rel (%p1048) target = $region188
        $region187: #{d_forward.1} parent=131 // pred_region
          %1052 = dma.done [#allocation23], 768
        $region188: #{d_forward.1} parent=131 // pred_fallthru
          _
        // Predicated region
        $region189: #{d_forward.1} parent=131 // pred_check
          %p1053 = pneg %p449
        $region190: #{d_forward.1} parent=131 // pred_check_branch
          %1055 = sbr.rel (%p1053) target = $region192
        $region191: #{d_forward.1} parent=131 // pred_region
          %1057 = dma.done [#allocation23], 16
        $region192: #{d_forward.1} parent=131 // pred_fallthru
          _
        // Predicated region
        $region193: #{d_forward.1} parent=131 // pred_check
          %p1058 = pneg %p470
        $region194: #{d_forward.1} parent=131 // pred_check_branch
          %1060 = sbr.rel (%p1058) target = $region196
        $region195: #{d_forward.1} parent=131 // pred_region
          %1062 = dma.done [#allocation26], 768
        $region196: #{d_forward.1} parent=131 // pred_fallthru
          _
        // Predicated region
        $region197: #{d_forward.1} parent=131 // pred_check
          %p1063 = pneg %p512
        $region198: #{d_forward.1} parent=131 // pred_check_branch
          %1065 = sbr.rel (%p1063) target = $region200
        $region199: #{d_forward.1} parent=131 // pred_region
          %1067 = dma.done [#allocation26], 512
        $region200: #{d_forward.1} parent=131 // pred_fallthru
          _
        // Predicated region
        $region201: #{d_forward.1} parent=131 // pred_check
          %p1068 = pneg %p533
        $region202: #{d_forward.1} parent=131 // pred_check_branch
          %1070 = sbr.rel (%p1068) target = $region204
        $region203: #{d_forward.1} parent=131 // pred_region
          %1072 = dma.done [#allocation29], 1536
        $region204: #{d_forward.1} parent=131 // pred_fallthru
          _
        // Predicated region
        $region205: #{d_forward.1} parent=131 // pred_check
          %p1073 = pneg %p575
        $region206: #{d_forward.1} parent=131 // pred_check_branch
          %1075 = sbr.rel (%p1073) target = $region208
        $region207: #{d_forward.1} parent=131 // pred_region
          %1077 = dma.done [#allocation29], 1536
        $region208: #{d_forward.1} parent=131 // pred_fallthru
          _
        // Predicated region
        $region209: #{d_forward.1} parent=131 // pred_check
          %p1078 = pneg %p617
        $region210: #{d_forward.1} parent=131 // pred_check_branch
          %1080 = sbr.rel (%p1078) target = $region212
        $region211: #{d_forward.1} parent=131 // pred_region
          %1082 = dma.done [#allocation32], 1536
        $region212: #{d_forward.1} parent=131 // pred_fallthru
          _
        %p1083 = scmp.lt.s32.totalorder %s50, 1
        %s1084 = scalar_select %p1083, %s50, 1
        %s1085 = smul.addr %s1084, 2
        %s1086 = smul.addr %s1085, 8
        %s1087 = scalar_lea.vmem %s0, %s1086
        %p1088 = pneg %p71
        %p1089 = pneg %p68
        %p1090 = pneg %p92
        %p1091 = pneg %p89
        %p1092 = pneg %p113
        %p1093 = pneg %p110
        %p1094 = pneg %p134
        %p1095 = pneg %p131
        %p1096 = pneg %p155
        %p1097 = pneg %p152
        %p1098 = pneg %p176
        %p1099 = pneg %p173
        %p1100 = pneg %p197
        %p1101 = pneg %p194
        %p1102 = pneg %p218
        %p1103 = pneg %p215
        %p1104 = pneg %p239
        %p1105 = pneg %p236
        %p1106 = pneg %p260
        %p1107 = pneg %p257
        %p1108 = pneg %p281
        %p1109 = pneg %p278
        %p1110 = pneg %p302
        %p1111 = pneg %p299
        %p1112 = pneg %p323
        %p1113 = pneg %p320
        %p1114 = pneg %p344
        %p1115 = pneg %p341
        %p1116 = pneg %p365
        %p1117 = pneg %p362
        %p1118 = pneg %p386
        %p1119 = pneg %p383
        %p1120 = pneg %p407
        %p1121 = pneg %p404
        %p1122 = pneg %p428
        %p1123 = pneg %p425
        %p1124 = pneg %p449
        %p1125 = pneg %p446
        %p1126 = pneg %p470
        %p1127 = pneg %p467
        %p1128 = pneg %p491
        %p1129 = pneg %p488
        %p1130 = pneg %p512
        %p1131 = pneg %p509
        %p1132 = pneg %p533
        %p1133 = pneg %p530
        %p1134 = pneg %p554
        %p1135 = pneg %p551
        %p1136 = pneg %p575
        %p1137 = pneg %p572
        %p1138 = pneg %p596
        %p1139 = pneg %p593
        %p1140 = pneg %p617
        %p1141 = pneg %p614
        %p1142 = pneg %p638
        %p1143 = pneg %p635
        %p1144 = pneg %p664
        %p1145 = pneg %p661
        %p1146 = scmp.lt.s32.totalorder %s50, 1
        %s1147 = scalar_select %p1146, %s50, 1
        %s1148 = smul.addr %s1147, 2
        %s1149 = smul.addr %s1148, 8
        %s1150 = scalar_lea.vmem %s28, %s1149
        %p1151 = scmp.lt.s32.totalorder %s50, 1
        %s1152 = scalar_select %p1151, %s50, 1
        %s1153 = smul.addr %s1152, 2
        %s1154 = smul.addr %s1153, 8
        %s1155 = scalar_lea.vmem %s0, %s1154
        %p1156 = scmp.lt.s32.totalorder %s50, 1
        %s1157 = scalar_select %p1156, %s50, 1
        %s1158 = smul.addr %s1157, 2
        %s1159 = smul.addr %s1158, 8
        %s1160 = scalar_lea.vmem %s28, %s1159
        %v1162 = vld [vmem:[%s1155] sm:$0xff]
        %v1163 = vld [vmem:[%s1155 + $0x8] sm:$0xff]
        %v1164 = vld [vmem:[%s1] sm:$0xf]
        %v1165 = vld [vmem:[%s1 + $0x4] sm:$0xf]
        %v1166 = vld [vmem:[%s1 + $0x8] sm:$0xf]
        %v1167 = vld [vmem:[%s1 + $0xc] sm:$0xf]
        %v1168 = vld [vmem:[%s1 + $0x10] sm:$0xf]
        %v1169 = vld [vmem:[%s1 + $0x14] sm:$0xf]
        %v1170 = vld [vmem:[%s1 + $0x18] sm:$0xf]
        %v1171 = vld [vmem:[%s1 + $0x1c] sm:$0xf]
        %v1172 = vld [vmem:[%s1 + $0x20] sm:$0xf]
        %v1173 = vld [vmem:[%s1 + $0x24] sm:$0xf]
        %v1174 = vld [vmem:[%s1 + $0x28] sm:$0xf]
        %v1175 = vld [vmem:[%s1 + $0x2c] sm:$0xf]
        %v1176 = vld [vmem:[%s1 + $0x30] sm:$0xf]
        %v1177 = vld [vmem:[%s1 + $0x34] sm:$0xf]
        %v1178 = vld [vmem:[%s1 + $0x38] sm:$0xf]
        %v1179 = vld [vmem:[%s1 + $0x3c] sm:$0xf]
        %v1180 = vld [vmem:[%s1 + $0x40] sm:$0xf]
        %v1181 = vld [vmem:[%s1 + $0x44] sm:$0xf]
        %v1182 = vld [vmem:[#allocation2] sm:$0x1]
        %vm1185 = vcmask 1040384
        %v1186 = vrot.slane %v1162, 7
        %v1187 = vrot.slane %v1163, 7
        %v1188 = vsel %vm1185, %v1186, %v1187
        %v1191 = vsel %vm1185, 0.0, %v1186
        %vm1192 = vcmask 1046528
        %v1193 = vrot.slane %v1162, 1
        %v1194 = vrot.slane %v1163, 1
        %v1195 = vsel %vm1192, %v1193, %v1194
        %v1197 = vsel %vm1192, %v1194, 0.0
        %1198 = vrot.lane.b32.xlu0 %v1162, 48
        %v1199 = vpop.permute.xlu0 %1198
        %1200 = vrot.lane.b32.xlu0 %v1163, 48
        %v1201 = vpop.permute.xlu0 %1200
        %1205 = vrot.lane.b32.xlu0 %v1195, 96
        %v1206 = vpop.permute.xlu0 %1205
        %1207 = vrot.lane.b32.xlu0 %v1197, 96
        %v1208 = vpop.permute.xlu0 %1207
        %vm1211 = vcmask 392192
        %v1212 = vsel %vm1211, %v1191, %v1199
        %v1213 = vsel %vm1211, %v1188, %v1201
        %vm1214 = vcmask 785408
        %v1215 = vsel %vm1214, %v1212, %v1206
        %v1216 = vsel %vm1214, %v1213, %v1208
        %v1217 = vpack.c.bf16 %v1216, %v1215
        %v1218 = vpack.c.bf16 %v1208, %v1206
        %v1220 = vperm.slane %v1182, 0
        %v1240 = vunpack.c.l.b16 %v1164
        %v1241 = vunpack.c.l.b16 %v1165
        %v1242 = vunpack.c.l.b16 %v1166
        %v1243 = vunpack.c.l.b16 %v1167
        %v1244 = vunpack.c.l.b16 %v1168
        %v1245 = vunpack.c.l.b16 %v1169
        %v1246 = vunpack.c.l.b16 %v1170
        %v1247 = vunpack.c.l.b16 %v1171
        %v1248 = vunpack.c.l.b16 %v1172
        %v1249 = vunpack.c.l.b16 %v1173
        %v1250 = vunpack.c.l.b16 %v1174
        %v1251 = vunpack.c.l.b16 %v1175
        %v1252 = vunpack.c.l.b16 %v1176
        %v1253 = vunpack.c.l.b16 %v1177
        %v1254 = vunpack.c.l.b16 %v1178
        %v1255 = vunpack.c.l.b16 %v1179
        %v1256 = vunpack.c.l.b16 %v1180
        %v1257 = vunpack.c.l.b16 %v1181
        %v1258 = vpack.c.b16 %v1241, %v1240
        %v1259 = vpack.c.b16 %v1243, %v1242
        %v1260 = vpack.c.b16 %v1245, %v1244
        %v1261 = vpack.c.b16 %v1247, %v1246
        %v1262 = vpack.c.b16 %v1249, %v1248
        %v1263 = vpack.c.b16 %v1251, %v1250
        %v1264 = vpack.c.b16 %v1253, %v1252
        %v1265 = vpack.c.b16 %v1255, %v1254
        %v1266 = vpack.c.b16 %v1257, %v1256
        %vm1276 = vcmask 130048
        %v1278 = vsel %vm1276, %v1218, 0
        %1280 = vmatpush.bf16.msra.mxu0 %v1265
        %1281 = vmatpush.bf16.msra.mxu0 %v1264
        %1282 = vmatpush.bf16.msra.mxu0 %v1263
        %1283 = vmatpush.bf16.msra.mxu0 %v1262
        %1284 = vmatpush.bf16.msra.mxu0 %v1261
        %1285 = vmatpush.bf16.msra.mxu0 %v1260
        %1286 = vmatpush.bf16.msra.mxu0 %v1259
        %1287 = vmatpush.bf16.msra.mxu0 %v1258
        %1288 = vmatmul.bf16.gmra.mxu0 %v1217
        %v1289 = vpop.f32.mrf.mxu0
        %v1290 = vadd.f32 %v1220, %v1289
        %v1291 = vpop.f32.mrf.mxu0
        %v1292 = vadd.f32 %v1220, %v1291
        %1293 = vdwg.mxu0
        %1294 = vmatpush.bf16.msra.mxu0 0
        %1295 = vmatpush.bf16.msra.mxu0 0
        %1296 = vmatpush.bf16.msra.mxu0 0
        %1297 = vmatpush.bf16.msra.mxu0 0
        %1298 = vmatpush.bf16.msra.mxu0 0
        %1299 = vmatpush.bf16.msra.mxu0 0
        %1300 = vmatpush.bf16.msra.mxu0 0
        %1301 = vmatpush.bf16.msra.mxu0 %v1266
        %1302 = vmatmul.bf16.gmra.mxu0 %v1278
        %v1303 = vpop.f32.mrf.mxu0
        %v1304 = vadd.f32 %v1290, %v1303
        %v1305 = vpop.f32.mrf.mxu0
        %v1306 = vadd.f32 %v1292, %v1305
        %1307 = vdwg.mxu0
        %v1308 = vld [vmem:[#allocation4] sm:$0xf]
        %v1309 = vld [vmem:[#allocation4 + $0x4] sm:$0xf]
        %v1310 = vld [vmem:[#allocation4 + $0x8] sm:$0xf]
        %v1311 = vld [vmem:[#allocation4 + $0xc] sm:$0xf]
        %v1312 = vld [vmem:[#allocation4 + $0x10] sm:$0xf]
        %v1313 = vld [vmem:[#allocation4 + $0x14] sm:$0xf]
        %v1314 = vld [vmem:[#allocation4 + $0x18] sm:$0xf]
        %v1315 = vld [vmem:[#allocation4 + $0x1c] sm:$0xf]
        %v1316 = vld [vmem:[#allocation4 + $0x20] sm:$0xf]
        %v1317 = vld [vmem:[#allocation4 + $0x24] sm:$0xf]
        %v1318 = vld [vmem:[#allocation4 + $0x28] sm:$0xf]
        %v1319 = vld [vmem:[#allocation4 + $0x2c] sm:$0xf]
        %v1320 = vld [vmem:[#allocation4 + $0x30] sm:$0xf]
        %v1321 = vld [vmem:[#allocation4 + $0x34] sm:$0xf]
        %v1322 = vld [vmem:[#allocation4 + $0x38] sm:$0xf]
        %v1323 = vld [vmem:[#allocation4 + $0x3c] sm:$0xf]
        %v1324 = vld [vmem:[#allocation4 + $0x40] sm:$0xf]
        %v1325 = vld [vmem:[#allocation4 + $0x44] sm:$0xf]
        %v1326 = vld [vmem:[#allocation4 + $0x48] sm:$0xf]
        %v1327 = vld [vmem:[#allocation4 + $0x4c] sm:$0xf]
        %v1328 = vld [vmem:[#allocation4 + $0x50] sm:$0xf]
        %v1329 = vld [vmem:[#allocation4 + $0x54] sm:$0xf]
        %v1330 = vld [vmem:[#allocation4 + $0x58] sm:$0xf]
        %v1331 = vld [vmem:[#allocation4 + $0x5c] sm:$0xf]
        %v1332 = vld [vmem:[#allocation6] sm:$0x1]
        %v1335 = vrot.slane %v1304, 7
        %v1336 = vrot.slane %v1306, 7
        %v1337 = vsel %vm1185, %v1335, %v1336
        %v1340 = vsel %vm1185, 0.0, %v1335
        %v1341 = vrot.slane %v1304, 1
        %v1342 = vrot.slane %v1306, 1
        %v1343 = vsel %vm1192, %v1341, %v1342
        %v1346 = vsel %vm1192, %v1342, 0.0
        %1347 = vrot.lane.b32.xlu0 %v1304, 64
        %v1348 = vpop.permute.xlu0 %1347
        %1349 = vrot.lane.b32.xlu0 %v1306, 64
        %v1350 = vpop.permute.xlu0 %1349
        %vm1353 = vcmask 523264
        %v1354 = vsel %vm1353, %v1340, %v1348
        %v1355 = vsel %vm1353, %v1337, %v1350
        %v1356 = vpack.c.bf16 %v1355, %v1354
        %v1357 = vpack.c.bf16 %v1346, %v1343
        %v1359 = vperm.slane %v1332, 0
        %v1385 = vunpack.c.l.b16 %v1308
        %v1386 = vunpack.c.l.b16 %v1309
        %v1387 = vunpack.c.l.b16 %v1310
        %v1388 = vunpack.c.l.b16 %v1311
        %v1389 = vunpack.c.l.b16 %v1312
        %v1390 = vunpack.c.l.b16 %v1313
        %v1391 = vunpack.c.l.b16 %v1314
        %v1392 = vunpack.c.l.b16 %v1315
        %v1393 = vunpack.c.l.b16 %v1316
        %v1394 = vunpack.c.l.b16 %v1317
        %v1395 = vunpack.c.l.b16 %v1318
        %v1396 = vunpack.c.l.b16 %v1319
        %v1397 = vunpack.c.l.b16 %v1320
        %v1398 = vunpack.c.l.b16 %v1321
        %v1399 = vunpack.c.l.b16 %v1322
        %v1400 = vunpack.c.l.b16 %v1323
        %v1401 = vunpack.c.l.b16 %v1324
        %v1402 = vunpack.c.l.b16 %v1325
        %v1403 = vunpack.c.l.b16 %v1326
        %v1404 = vunpack.c.l.b16 %v1327
        %v1405 = vunpack.c.l.b16 %v1328
        %v1406 = vunpack.c.l.b16 %v1329
        %v1407 = vunpack.c.l.b16 %v1330
        %v1408 = vunpack.c.l.b16 %v1331
        %v1409 = vpack.c.b16 %v1386, %v1385
        %v1410 = vpack.c.b16 %v1388, %v1387
        %v1411 = vpack.c.b16 %v1390, %v1389
        %v1412 = vpack.c.b16 %v1392, %v1391
        %v1413 = vpack.c.b16 %v1394, %v1393
        %v1414 = vpack.c.b16 %v1396, %v1395
        %v1415 = vpack.c.b16 %v1398, %v1397
        %v1416 = vpack.c.b16 %v1400, %v1399
        %v1417 = vpack.c.b16 %v1402, %v1401
        %v1418 = vpack.c.b16 %v1404, %v1403
        %v1419 = vpack.c.b16 %v1406, %v1405
        %v1420 = vpack.c.b16 %v1408, %v1407
        %v1434 = vsel %vm1353, %v1357, 0
        %1436 = vmatpush.bf16.msra.mxu0 %v1416
        %1437 = vmatpush.bf16.msra.mxu0 %v1415
        %1438 = vmatpush.bf16.msra.mxu0 %v1414
        %1439 = vmatpush.bf16.msra.mxu0 %v1413
        %1440 = vmatpush.bf16.msra.mxu0 %v1412
        %1441 = vmatpush.bf16.msra.mxu0 %v1411
        %1442 = vmatpush.bf16.msra.mxu0 %v1410
        %1443 = vmatpush.bf16.msra.mxu0 %v1409
        %1444 = vmatmul.bf16.gmra.mxu0 %v1356
        %v1445 = vpop.f32.mrf.mxu0
        %v1446 = vadd.f32 %v1359, %v1445
        %v1447 = vpop.f32.mrf.mxu0
        %v1448 = vadd.f32 %v1359, %v1447
        %1449 = vdwg.mxu0
        %1450 = vmatpush.bf16.msra.mxu0 0
        %1451 = vmatpush.bf16.msra.mxu0 0
        %1452 = vmatpush.bf16.msra.mxu0 0
        %1453 = vmatpush.bf16.msra.mxu0 0
        %1454 = vmatpush.bf16.msra.mxu0 %v1420
        %1455 = vmatpush.bf16.msra.mxu0 %v1419
        %1456 = vmatpush.bf16.msra.mxu0 %v1418
        %1457 = vmatpush.bf16.msra.mxu0 %v1417
        %1458 = vmatmul.bf16.gmra.mxu0 %v1434
        %v1459 = vpop.f32.mrf.mxu0
        %v1460 = vadd.f32 %v1446, %v1459
        %v1461 = vpop.f32.mrf.mxu0
        %v1462 = vadd.f32 %v1448, %v1461
        %1463 = vdwg.mxu0
        %vm1464 = vcmp.gt.f32.partialorder %v1460, 0.0
        %vm1465 = vcmp.gt.f32.partialorder %v1462, 0.0
        %v1466 = vmin.f32 %v1460, 0.0
        %v1467 = vmin.f32 %v1462, 0.0
        %v1468 = vmul.f32 %v1466, 1.442695
        %v1469 = vpow.pop %v1468
        %v1470 = vmul.f32 %v1467, 1.442695
        %v1471 = vpow.pop %v1470
        %v1472 = vsub.f32 %v1469, 1.0
        %v1473 = vsub.f32 %v1471, 1.0
        %v1474 = vsel %vm1464, %v1460, %v1472
        %v1475 = vsel %vm1465, %v1462, %v1473
        %v1476 = vld [vmem:[#allocation7] sm:$0xf]
        %v1477 = vld [vmem:[#allocation7 + $0x4] sm:$0xf]
        %v1478 = vld [vmem:[#allocation7 + $0x8] sm:$0xf]
        %v1479 = vld [vmem:[#allocation7 + $0xc] sm:$0xf]
        %v1480 = vld [vmem:[#allocation7 + $0x10] sm:$0xf]
        %v1481 = vld [vmem:[#allocation7 + $0x14] sm:$0xf]
        %v1482 = vld [vmem:[#allocation7 + $0x18] sm:$0xf]
        %v1483 = vld [vmem:[#allocation7 + $0x1c] sm:$0xf]
        %v1484 = vld [vmem:[#allocation7 + $0x20] sm:$0xf]
        %v1485 = vld [vmem:[#allocation7 + $0x24] sm:$0xf]
        %v1486 = vld [vmem:[#allocation7 + $0x28] sm:$0xf]
        %v1487 = vld [vmem:[#allocation7 + $0x2c] sm:$0xf]
        %v1488 = vld [vmem:[#allocation7 + $0x30] sm:$0xf]
        %v1489 = vld [vmem:[#allocation7 + $0x34] sm:$0xf]
        %v1490 = vld [vmem:[#allocation7 + $0x38] sm:$0xf]
        %v1491 = vld [vmem:[#allocation7 + $0x3c] sm:$0xf]
        %v1492 = vld [vmem:[#allocation7 + $0x40] sm:$0xf]
        %v1493 = vld [vmem:[#allocation7 + $0x44] sm:$0xf]
        %v1494 = vld [vmem:[#allocation7 + $0x48] sm:$0xf]
        %v1495 = vld [vmem:[#allocation7 + $0x4c] sm:$0xf]
        %v1496 = vld [vmem:[#allocation7 + $0x50] sm:$0xf]
        %v1497 = vld [vmem:[#allocation7 + $0x54] sm:$0xf]
        %v1498 = vld [vmem:[#allocation7 + $0x58] sm:$0xf]
        %v1499 = vld [vmem:[#allocation7 + $0x5c] sm:$0xf]
        %v1500 = vld [vmem:[#allocation9] sm:$0x1]
        %v1503 = vrot.slane %v1474, 7
        %v1504 = vrot.slane %v1475, 7
        %v1505 = vsel %vm1185, %v1503, %v1504
        %v1508 = vsel %vm1185, 0.0, %v1503
        %v1509 = vrot.slane %v1474, 1
        %v1510 = vrot.slane %v1475, 1
        %v1511 = vsel %vm1192, %v1509, %v1510
        %v1514 = vsel %vm1192, %v1510, 0.0
        %1515 = vrot.lane.b32.xlu0 %v1474, 64
        %v1516 = vpop.permute.xlu0 %1515
        %1517 = vrot.lane.b32.xlu0 %v1475, 64
        %v1518 = vpop.permute.xlu0 %1517
        %v1521 = vsel %vm1353, %v1508, %v1516
        %v1522 = vsel %vm1353, %v1505, %v1518
        %v1523 = vpack.c.bf16 %v1522, %v1521
        %v1524 = vpack.c.bf16 %v1514, %v1511
        %v1526 = vperm.slane %v1500, 0
        %v1552 = vunpack.c.l.b16 %v1476
        %v1553 = vunpack.c.l.b16 %v1477
        %v1554 = vunpack.c.l.b16 %v1478
        %v1555 = vunpack.c.l.b16 %v1479
        %v1556 = vunpack.c.l.b16 %v1480
        %v1557 = vunpack.c.l.b16 %v1481
        %v1558 = vunpack.c.l.b16 %v1482
        %v1559 = vunpack.c.l.b16 %v1483
        %v1560 = vunpack.c.l.b16 %v1484
        %v1561 = vunpack.c.l.b16 %v1485
        %v1562 = vunpack.c.l.b16 %v1486
        %v1563 = vunpack.c.l.b16 %v1487
        %v1564 = vunpack.c.l.b16 %v1488
        %v1565 = vunpack.c.l.b16 %v1489
        %v1566 = vunpack.c.l.b16 %v1490
        %v1567 = vunpack.c.l.b16 %v1491
        %v1568 = vunpack.c.l.b16 %v1492
        %v1569 = vunpack.c.l.b16 %v1493
        %v1570 = vunpack.c.l.b16 %v1494
        %v1571 = vunpack.c.l.b16 %v1495
        %v1572 = vunpack.c.l.b16 %v1496
        %v1573 = vunpack.c.l.b16 %v1497
        %v1574 = vunpack.c.l.b16 %v1498
        %v1575 = vunpack.c.l.b16 %v1499
        %v1576 = vpack.c.b16 %v1553, %v1552
        %v1577 = vpack.c.b16 %v1555, %v1554
        %v1578 = vpack.c.b16 %v1557, %v1556
        %v1579 = vpack.c.b16 %v1559, %v1558
        %v1580 = vpack.c.b16 %v1561, %v1560
        %v1581 = vpack.c.b16 %v1563, %v1562
        %v1582 = vpack.c.b16 %v1565, %v1564
        %v1583 = vpack.c.b16 %v1567, %v1566
        %v1584 = vpack.c.b16 %v1569, %v1568
        %v1585 = vpack.c.b16 %v1571, %v1570
        %v1586 = vpack.c.b16 %v1573, %v1572
        %v1587 = vpack.c.b16 %v1575, %v1574
        %v1601 = vsel %vm1353, %v1524, 0
        %1603 = vmatpush.bf16.msra.mxu0 %v1583
        %1604 = vmatpush.bf16.msra.mxu0 %v1582
        %1605 = vmatpush.bf16.msra.mxu0 %v1581
        %1606 = vmatpush.bf16.msra.mxu0 %v1580
        %1607 = vmatpush.bf16.msra.mxu0 %v1579
        %1608 = vmatpush.bf16.msra.mxu0 %v1578
        %1609 = vmatpush.bf16.msra.mxu0 %v1577
        %1610 = vmatpush.bf16.msra.mxu0 %v1576
        %1611 = vmatmul.bf16.gmra.mxu0 %v1523
        %v1612 = vpop.f32.mrf.mxu0
        %v1613 = vadd.f32 %v1526, %v1612
        %v1614 = vpop.f32.mrf.mxu0
        %v1615 = vadd.f32 %v1526, %v1614
        %1616 = vdwg.mxu0
        %1617 = vmatpush.bf16.msra.mxu0 0
        %1618 = vmatpush.bf16.msra.mxu0 0
        %1619 = vmatpush.bf16.msra.mxu0 0
        %1620 = vmatpush.bf16.msra.mxu0 0
        %1621 = vmatpush.bf16.msra.mxu0 %v1587
        %1622 = vmatpush.bf16.msra.mxu0 %v1586
        %1623 = vmatpush.bf16.msra.mxu0 %v1585
        %1624 = vmatpush.bf16.msra.mxu0 %v1584
        %1625 = vmatmul.bf16.gmra.mxu0 %v1601
        %v1626 = vpop.f32.mrf.mxu0
        %v1627 = vadd.f32 %v1613, %v1626
        %v1628 = vpop.f32.mrf.mxu0
        %v1629 = vadd.f32 %v1615, %v1628
        %1630 = vdwg.mxu0
        %vm1631 = vcmp.gt.f32.partialorder %v1627, 0.0
        %vm1632 = vcmp.gt.f32.partialorder %v1629, 0.0
        %v1633 = vmin.f32 %v1627, 0.0
        %v1634 = vmin.f32 %v1629, 0.0
        %v1635 = vmul.f32 %v1633, 1.442695
        %v1636 = vpow.pop %v1635
        %v1637 = vmul.f32 %v1634, 1.442695
        %v1638 = vpow.pop %v1637
        %v1639 = vsub.f32 %v1636, 1.0
        %v1640 = vsub.f32 %v1638, 1.0
        %v1641 = vsel %vm1631, %v1627, %v1639
        %v1642 = vsel %vm1632, %v1629, %v1640
        %v1643 = vld [vmem:[#allocation10] sm:$0xf]
        %v1644 = vld [vmem:[#allocation10 + $0x4] sm:$0xf]
        %v1645 = vld [vmem:[#allocation10 + $0x8] sm:$0xf]
        %v1646 = vld [vmem:[#allocation10 + $0xc] sm:$0xf]
        %v1647 = vld [vmem:[#allocation10 + $0x10] sm:$0xf]
        %v1648 = vld [vmem:[#allocation10 + $0x14] sm:$0xf]
        %v1649 = vld [vmem:[#allocation10 + $0x18] sm:$0xf]
        %v1650 = vld [vmem:[#allocation10 + $0x1c] sm:$0xf]
        %v1651 = vld [vmem:[#allocation10 + $0x20] sm:$0xf]
        %v1652 = vld [vmem:[#allocation10 + $0x24] sm:$0xf]
        %v1653 = vld [vmem:[#allocation10 + $0x28] sm:$0xf]
        %v1654 = vld [vmem:[#allocation10 + $0x2c] sm:$0xf]
        %v1655 = vld [vmem:[#allocation10 + $0x30] sm:$0xf]
        %v1656 = vld [vmem:[#allocation10 + $0x34] sm:$0xf]
        %v1657 = vld [vmem:[#allocation10 + $0x38] sm:$0xf]
        %v1658 = vld [vmem:[#allocation10 + $0x3c] sm:$0xf]
        %v1659 = vld [vmem:[#allocation10 + $0x40] sm:$0xf]
        %v1660 = vld [vmem:[#allocation10 + $0x44] sm:$0xf]
        %v1661 = vld [vmem:[#allocation10 + $0x48] sm:$0xf]
        %v1662 = vld [vmem:[#allocation10 + $0x4c] sm:$0xf]
        %v1663 = vld [vmem:[#allocation10 + $0x50] sm:$0xf]
        %v1664 = vld [vmem:[#allocation10 + $0x54] sm:$0xf]
        %v1665 = vld [vmem:[#allocation10 + $0x58] sm:$0xf]
        %v1666 = vld [vmem:[#allocation10 + $0x5c] sm:$0xf]
        %v1667 = vld [vmem:[#allocation12] sm:$0x1]
        %v1670 = vrot.slane %v1641, 7
        %v1671 = vrot.slane %v1642, 7
        %v1672 = vsel %vm1185, %v1670, %v1671
        %v1675 = vsel %vm1185, 0.0, %v1670
        %v1676 = vrot.slane %v1641, 1
        %v1677 = vrot.slane %v1642, 1
        %v1678 = vsel %vm1192, %v1676, %v1677
        %v1681 = vsel %vm1192, %v1677, 0.0
        %1682 = vrot.lane.b32.xlu0 %v1641, 64
        %v1683 = vpop.permute.xlu0 %1682
        %1684 = vrot.lane.b32.xlu0 %v1642, 64
        %v1685 = vpop.permute.xlu0 %1684
        %v1688 = vsel %vm1353, %v1675, %v1683
        %v1689 = vsel %vm1353, %v1672, %v1685
        %v1690 = vpack.c.bf16 %v1689, %v1688
        %v1691 = vpack.c.bf16 %v1681, %v1678
        %v1693 = vperm.slane %v1667, 0
        %v1719 = vunpack.c.l.b16 %v1643
        %v1720 = vunpack.c.l.b16 %v1644
        %v1721 = vunpack.c.l.b16 %v1645
        %v1722 = vunpack.c.l.b16 %v1646
        %v1723 = vunpack.c.l.b16 %v1647
        %v1724 = vunpack.c.l.b16 %v1648
        %v1725 = vunpack.c.l.b16 %v1649
        %v1726 = vunpack.c.l.b16 %v1650
        %v1727 = vunpack.c.l.b16 %v1651
        %v1728 = vunpack.c.l.b16 %v1652
        %v1729 = vunpack.c.l.b16 %v1653
        %v1730 = vunpack.c.l.b16 %v1654
        %v1731 = vunpack.c.l.b16 %v1655
        %v1732 = vunpack.c.l.b16 %v1656
        %v1733 = vunpack.c.l.b16 %v1657
        %v1734 = vunpack.c.l.b16 %v1658
        %v1735 = vunpack.c.l.b16 %v1659
        %v1736 = vunpack.c.l.b16 %v1660
        %v1737 = vunpack.c.l.b16 %v1661
        %v1738 = vunpack.c.l.b16 %v1662
        %v1739 = vunpack.c.l.b16 %v1663
        %v1740 = vunpack.c.l.b16 %v1664
        %v1741 = vunpack.c.l.b16 %v1665
        %v1742 = vunpack.c.l.b16 %v1666
        %v1743 = vpack.c.b16 %v1720, %v1719
        %v1744 = vpack.c.b16 %v1722, %v1721
        %v1745 = vpack.c.b16 %v1724, %v1723
        %v1746 = vpack.c.b16 %v1726, %v1725
        %v1747 = vpack.c.b16 %v1728, %v1727
        %v1748 = vpack.c.b16 %v1730, %v1729
        %v1749 = vpack.c.b16 %v1732, %v1731
        %v1750 = vpack.c.b16 %v1734, %v1733
        %v1751 = vpack.c.b16 %v1736, %v1735
        %v1752 = vpack.c.b16 %v1738, %v1737
        %v1753 = vpack.c.b16 %v1740, %v1739
        %v1754 = vpack.c.b16 %v1742, %v1741
        %v1768 = vsel %vm1353, %v1691, 0
        %1770 = vmatpush.bf16.msra.mxu0 %v1750
        %1771 = vmatpush.bf16.msra.mxu0 %v1749
        %1772 = vmatpush.bf16.msra.mxu0 %v1748
        %1773 = vmatpush.bf16.msra.mxu0 %v1747
        %1774 = vmatpush.bf16.msra.mxu0 %v1746
        %1775 = vmatpush.bf16.msra.mxu0 %v1745
        %1776 = vmatpush.bf16.msra.mxu0 %v1744
        %1777 = vmatpush.bf16.msra.mxu0 %v1743
        %1778 = vmatmul.bf16.gmra.mxu0 %v1690
        %v1779 = vpop.f32.mrf.mxu0
        %v1780 = vadd.f32 %v1693, %v1779
        %v1781 = vpop.f32.mrf.mxu0
        %v1782 = vadd.f32 %v1693, %v1781
        %1783 = vdwg.mxu0
        %1784 = vmatpush.bf16.msra.mxu0 0
        %1785 = vmatpush.bf16.msra.mxu0 0
        %1786 = vmatpush.bf16.msra.mxu0 0
        %1787 = vmatpush.bf16.msra.mxu0 0
        %1788 = vmatpush.bf16.msra.mxu0 %v1754
        %1789 = vmatpush.bf16.msra.mxu0 %v1753
        %1790 = vmatpush.bf16.msra.mxu0 %v1752
        %1791 = vmatpush.bf16.msra.mxu0 %v1751
        %1792 = vmatmul.bf16.gmra.mxu0 %v1768
        %v1793 = vpop.f32.mrf.mxu0
        %v1794 = vadd.f32 %v1780, %v1793
        %v1795 = vpop.f32.mrf.mxu0
        %v1796 = vadd.f32 %v1782, %v1795
        %1797 = vdwg.mxu0
        %vm1798 = vcmp.gt.f32.partialorder %v1794, 0.0
        %vm1799 = vcmp.gt.f32.partialorder %v1796, 0.0
        %v1800 = vmin.f32 %v1794, 0.0
        %v1801 = vmin.f32 %v1796, 0.0
        %v1802 = vmul.f32 %v1800, 1.442695
        %v1803 = vpow.pop %v1802
        %v1804 = vmul.f32 %v1801, 1.442695
        %v1805 = vpow.pop %v1804
        %v1806 = vsub.f32 %v1803, 1.0
        %v1807 = vsub.f32 %v1805, 1.0
        %v1808 = vsel %vm1798, %v1794, %v1806
        %v1809 = vsel %vm1799, %v1796, %v1807
        %v1811 = vrot.slane %v1808, 1
        %v1813 = vrot.slane %v1808, 2
        %v1815 = vrot.slane %v1808, 3
        %v1818 = vrot.slane %v1809, 4
        %v1820 = vrot.slane %v1809, 5
        %v1822 = vrot.slane %v1809, 6
        %v1824 = vrot.slane %v1809, 7
        %v1826 = vsel %vm1185, %v1808, %v1811
        %vm1827 = vcmask 1041408
        %v1828 = vsel %vm1827, %v1826, %v1813
        %vm1829 = vcmask 1042432
        %v1830 = vsel %vm1829, %v1828, %v1815
        %vm1831 = vcmask 1043456
        %v1832 = vsel %vm1831, %v1830, %v1818
        %vm1833 = vcmask 1044480
        %v1834 = vsel %vm1833, %v1832, %v1820
        %vm1835 = vcmask 1045504
        %v1836 = vsel %vm1835, %v1834, %v1822
        %v1837 = vsel %vm1192, %v1836, %v1824
        %v1838 = vld [vmem:[#allocation13] sm:$0xf]
        %v1839 = vld [vmem:[#allocation13 + $0x4] sm:$0xf]
        %v1840 = vld [vmem:[#allocation13 + $0x8] sm:$0xf]
        %v1841 = vld [vmem:[#allocation13 + $0xc] sm:$0xf]
        %v1842 = vld [vmem:[#allocation13 + $0x10] sm:$0xf]
        %v1843 = vld [vmem:[#allocation13 + $0x14] sm:$0xf]
        %v1844 = vld [vmem:[#allocation13 + $0x18] sm:$0xf]
        %v1845 = vld [vmem:[#allocation13 + $0x1c] sm:$0xf]
        %v1846 = vld [vmem:[#allocation13 + $0x20] sm:$0xf]
        %v1847 = vld [vmem:[#allocation13 + $0x24] sm:$0xf]
        %v1848 = vld [vmem:[#allocation13 + $0x28] sm:$0xf]
        %v1849 = vld [vmem:[#allocation13 + $0x2c] sm:$0xf]
        %v1850 = vld [vmem:[#allocation15] sm:$0x1]
        %v1852 = vrot.slane %v1837, 7
        %v1854 = vsel %vm1185, 0.0, %v1852
        %v1855 = vrot.slane %v1837, 1
        %v1857 = vsel %vm1192, %v1855, 0.0
        %1858 = vrot.lane.b32.xlu0 %v1837, 32
        %v1859 = vpop.permute.xlu0 %1858
        %1862 = vrot.lane.b32.xlu0 %v1857, 64
        %v1863 = vpop.permute.xlu0 %1862
        %vm1865 = vcmask 261120
        %v1866 = vsel %vm1865, %v1854, %v1859
        %v1867 = vsel %vm1353, %v1866, %v1863
        %v1868 = vpack.c.bf16 %v1867, %v1867
        %v1870 = vperm.slane %v1850, 0
        %v1884 = vunpack.c.l.b16 %v1838
        %v1885 = vunpack.c.l.b16 %v1839
        %v1886 = vunpack.c.l.b16 %v1840
        %v1887 = vunpack.c.l.b16 %v1841
        %v1888 = vunpack.c.l.b16 %v1842
        %v1889 = vunpack.c.l.b16 %v1843
        %v1890 = vunpack.c.l.b16 %v1844
        %v1891 = vunpack.c.l.b16 %v1845
        %v1892 = vunpack.c.l.b16 %v1846
        %v1893 = vunpack.c.l.b16 %v1847
        %v1894 = vunpack.c.l.b16 %v1848
        %v1895 = vunpack.c.l.b16 %v1849
        %v1896 = vpack.c.b16 %v1885, %v1884
        %v1897 = vpack.c.b16 %v1887, %v1886
        %v1898 = vpack.c.b16 %v1889, %v1888
        %v1899 = vpack.c.b16 %v1891, %v1890
        %v1900 = vpack.c.b16 %v1893, %v1892
        %v1901 = vpack.c.b16 %v1895, %v1894
        %v1909 = vsel %vm1214, %v1868, 0
        %1911 = vmatpush.bf16.msra.mxu0 0
        %1912 = vmatpush.bf16.msra.mxu0 0
        %1913 = vmatpush.bf16.msra.mxu0 %v1901
        %1914 = vmatpush.bf16.msra.mxu0 %v1900
        %1915 = vmatpush.bf16.msra.mxu0 %v1899
        %1916 = vmatpush.bf16.msra.mxu0 %v1898
        %1917 = vmatpush.bf16.msra.mxu0 %v1897
        %1918 = vmatpush.bf16.msra.mxu0 %v1896
        %1919 = vmatmul.bf16.gmra.mxu0 %v1909
        %v1920 = vpop.f32.mrf.mxu0
        %v1921 = vadd.f32 %v1870, %v1920
        %v1922 = vpop.f32.mrf.mxu0
        %1923 = vdwg.mxu0
        %vm1924 = vcmp.gt.f32.partialorder %v1921, 0.0
        %v1925 = vmin.f32 %v1921, 0.0
        %v1926 = vmul.f32 %v1925, 1.442695
        %v1927 = vpow.pop %v1926
        %v1928 = vsub.f32 %v1927, 1.0
        %v1929 = vsel %vm1924, %v1921, %v1928
        %v1930 = vld [vmem:[#allocation16] sm:$0xf]
        %v1931 = vld [vmem:[#allocation16 + $0x4] sm:$0xf]
        %v1932 = vld [vmem:[#allocation16 + $0x8] sm:$0xf]
        %v1933 = vld [vmem:[#allocation16 + $0xc] sm:$0xf]
        %v1934 = vld [vmem:[#allocation16 + $0x10] sm:$0xf]
        %v1935 = vld [vmem:[#allocation16 + $0x14] sm:$0xf]
        %v1936 = vld [vmem:[#allocation16 + $0x18] sm:$0xf]
        %v1937 = vld [vmem:[#allocation16 + $0x1c] sm:$0xf]
        %v1938 = vld [vmem:[#allocation16 + $0x20] sm:$0xf]
        %v1939 = vld [vmem:[#allocation16 + $0x24] sm:$0xf]
        %v1940 = vld [vmem:[#allocation16 + $0x28] sm:$0xf]
        %v1941 = vld [vmem:[#allocation16 + $0x2c] sm:$0xf]
        %v1942 = vld [vmem:[#allocation16 + $0x30] sm:$0xf]
        %v1943 = vld [vmem:[#allocation16 + $0x34] sm:$0xf]
        %v1944 = vld [vmem:[#allocation16 + $0x38] sm:$0xf]
        %v1945 = vld [vmem:[#allocation16 + $0x3c] sm:$0xf]
        %v1946 = vld [vmem:[#allocation16 + $0x40] sm:$0xf]
        %v1947 = vld [vmem:[#allocation16 + $0x44] sm:$0xf]
        %v1948 = vld [vmem:[#allocation16 + $0x48] sm:$0xf]
        %v1949 = vld [vmem:[#allocation16 + $0x4c] sm:$0xf]
        %v1950 = vld [vmem:[#allocation16 + $0x50] sm:$0xf]
        %v1951 = vld [vmem:[#allocation16 + $0x54] sm:$0xf]
        %v1952 = vld [vmem:[#allocation16 + $0x58] sm:$0xf]
        %v1953 = vld [vmem:[#allocation16 + $0x5c] sm:$0xf]
        %v1954 = vld [vmem:[#allocation18] sm:$0x1]
        %v1956 = vrot.slane %v1929, 7
        %v1958 = vsel %vm1185, 0.0, %v1956
        %v1959 = vrot.slane %v1929, 1
        %v1961 = vsel %vm1192, %v1959, 0.0
        %1962 = vrot.lane.b32.xlu0 %v1929, 64
        %v1963 = vpop.permute.xlu0 %1962
        %v1965 = vsel %vm1353, %v1958, %v1963
        %v1966 = vpack.c.bf16 %v1965, %v1965
        %v1967 = vpack.c.bf16 %v1961, %v1961
        %v1969 = vperm.slane %v1954, 0
        %v1995 = vunpack.c.l.b16 %v1930
        %v1996 = vunpack.c.l.b16 %v1931
        %v1997 = vunpack.c.l.b16 %v1932
        %v1998 = vunpack.c.l.b16 %v1933
        %v1999 = vunpack.c.l.b16 %v1934
        %v2000 = vunpack.c.l.b16 %v1935
        %v2001 = vunpack.c.l.b16 %v1936
        %v2002 = vunpack.c.l.b16 %v1937
        %v2003 = vunpack.c.l.b16 %v1938
        %v2004 = vunpack.c.l.b16 %v1939
        %v2005 = vunpack.c.l.b16 %v1940
        %v2006 = vunpack.c.l.b16 %v1941
        %v2007 = vunpack.c.l.b16 %v1942
        %v2008 = vunpack.c.l.b16 %v1943
        %v2009 = vunpack.c.l.b16 %v1944
        %v2010 = vunpack.c.l.b16 %v1945
        %v2011 = vunpack.c.l.b16 %v1946
        %v2012 = vunpack.c.l.b16 %v1947
        %v2013 = vunpack.c.l.b16 %v1948
        %v2014 = vunpack.c.l.b16 %v1949
        %v2015 = vunpack.c.l.b16 %v1950
        %v2016 = vunpack.c.l.b16 %v1951
        %v2017 = vunpack.c.l.b16 %v1952
        %v2018 = vunpack.c.l.b16 %v1953
        %v2019 = vpack.c.b16 %v1996, %v1995
        %v2020 = vpack.c.b16 %v1998, %v1997
        %v2021 = vpack.c.b16 %v2000, %v1999
        %v2022 = vpack.c.b16 %v2002, %v2001
        %v2023 = vpack.c.b16 %v2004, %v2003
        %v2024 = vpack.c.b16 %v2006, %v2005
        %v2025 = vpack.c.b16 %v2008, %v2007
        %v2026 = vpack.c.b16 %v2010, %v2009
        %v2027 = vpack.c.b16 %v2012, %v2011
        %v2028 = vpack.c.b16 %v2014, %v2013
        %v2029 = vpack.c.b16 %v2016, %v2015
        %v2030 = vpack.c.b16 %v2018, %v2017
        %v2044 = vsel %vm1353, %v1967, 0
        %2046 = vmatpush.bf16.msra.mxu0 %v2026
        %2047 = vmatpush.bf16.msra.mxu0 %v2025
        %2048 = vmatpush.bf16.msra.mxu0 %v2024
        %2049 = vmatpush.bf16.msra.mxu0 %v2023
        %2050 = vmatpush.bf16.msra.mxu0 %v2022
        %2051 = vmatpush.bf16.msra.mxu0 %v2021
        %2052 = vmatpush.bf16.msra.mxu0 %v2020
        %2053 = vmatpush.bf16.msra.mxu0 %v2019
        %2054 = vmatmul.bf16.gmra.mxu0 %v1966
        %v2055 = vpop.f32.mrf.mxu0
        %v2056 = vadd.f32 %v1969, %v2055
        %v2057 = vpop.f32.mrf.mxu0
        %2058 = vdwg.mxu0
        %2059 = vmatpush.bf16.msra.mxu0 0
        %2060 = vmatpush.bf16.msra.mxu0 0
        %2061 = vmatpush.bf16.msra.mxu0 0
        %2062 = vmatpush.bf16.msra.mxu0 0
        %2063 = vmatpush.bf16.msra.mxu0 %v2030
        %2064 = vmatpush.bf16.msra.mxu0 %v2029
        %2065 = vmatpush.bf16.msra.mxu0 %v2028
        %2066 = vmatpush.bf16.msra.mxu0 %v2027
        %2067 = vmatmul.bf16.gmra.mxu0 %v2044
        %v2068 = vpop.f32.mrf.mxu0
        %v2069 = vadd.f32 %v2056, %v2068
        %v2070 = vpop.f32.mrf.mxu0
        %2071 = vdwg.mxu0
        %vm2072 = vcmp.gt.f32.partialorder %v2069, 0.0
        %v2073 = vmin.f32 %v2069, 0.0
        %v2074 = vmul.f32 %v2073, 1.442695
        %v2075 = vpow.pop %v2074
        %v2076 = vsub.f32 %v2075, 1.0
        %v2077 = vsel %vm2072, %v2069, %v2076
        %v2078 = vld [vmem:[#allocation19] sm:$0x1]
        %v2079 = vpack.c.bf16 %v2077, %v2077
        %v2080 = vld [vmem:[%s13] sm:$0xf]
        %v2081 = vld [vmem:[%s13 + $0x4] sm:$0xf]
        %v2082 = vld [vmem:[%s13 + $0x8] sm:$0xf]
        %v2083 = vld [vmem:[%s13 + $0xc] sm:$0xf]
        %v2084 = vld [vmem:[%s13 + $0x10] sm:$0xf]
        %v2085 = vld [vmem:[%s13 + $0x14] sm:$0xf]
        %v2086 = vld [vmem:[%s13 + $0x18] sm:$0xf]
        %v2087 = vld [vmem:[%s13 + $0x1c] sm:$0xf]
        %v2096 = vunpack.c.l.b16 %v2080
        %v2097 = vunpack.c.l.b16 %v2081
        %v2098 = vunpack.c.l.b16 %v2082
        %v2099 = vunpack.c.l.b16 %v2083
        %v2100 = vunpack.c.l.b16 %v2084
        %v2101 = vunpack.c.l.b16 %v2085
        %v2102 = vunpack.c.l.b16 %v2086
        %v2103 = vunpack.c.l.b16 %v2087
        %v2104 = vpack.c.b16 %v2097, %v2096
        %v2105 = vpack.c.b16 %v2099, %v2098
        %v2106 = vpack.c.b16 %v2101, %v2100
        %v2107 = vpack.c.b16 %v2103, %v2102
        %v2113 = vsel %vm1353, %v2079, 0
        %2115 = vmatpush.bf16.msra.mxu0 0
        %2116 = vmatpush.bf16.msra.mxu0 0
        %2117 = vmatpush.bf16.msra.mxu0 0
        %2118 = vmatpush.bf16.msra.mxu0 0
        %2119 = vmatpush.bf16.msra.mxu0 %v2107
        %2120 = vmatpush.bf16.msra.mxu0 %v2106
        %2121 = vmatpush.bf16.msra.mxu0 %v2105
        %2122 = vmatpush.bf16.msra.mxu0 %v2104
        %2123 = vmatmul.bf16.gmra.mxu0 %v2113
        %v2124 = vpop.f32.mrf.mxu0
        %v2125 = vadd.f32 0.0, %v2124
        %v2126 = vpop.f32.mrf.mxu0
        %2127 = vdwg.mxu0
        %v2128 = vadd.f32 %v2078, %v2125
        %s2129 = scalar_lea.vmem %s13, 32
        %v2130 = vld [vmem:[%s2129] sm:$0xf]
        %v2131 = vld [vmem:[%s2129 + $0x4] sm:$0xf]
        %v2132 = vld [vmem:[%s2129 + $0x8] sm:$0xf]
        %v2133 = vld [vmem:[%s2129 + $0xc] sm:$0xf]
        %v2134 = vld [vmem:[%s2129 + $0x10] sm:$0xf]
        %v2135 = vld [vmem:[%s2129 + $0x14] sm:$0xf]
        %v2136 = vld [vmem:[%s2129 + $0x18] sm:$0xf]
        %v2137 = vld [vmem:[%s2129 + $0x1c] sm:$0xf]
        %v2138 = vshrl.u32 %v2079, 16
        %v2148 = vunpack.c.l.b16 %v2130
        %v2149 = vunpack.c.l.b16 %v2131
        %v2150 = vunpack.c.l.b16 %v2132
        %v2151 = vunpack.c.l.b16 %v2133
        %v2152 = vunpack.c.l.b16 %v2134
        %v2153 = vunpack.c.l.b16 %v2135
        %v2154 = vunpack.c.l.b16 %v2136
        %v2155 = vunpack.c.l.b16 %v2137
        %v2156 = vpack.c.b16 %v2149, %v2148
        %v2157 = vpack.c.b16 %v2151, %v2150
        %v2158 = vpack.c.b16 %v2153, %v2152
        %v2159 = vpack.c.b16 %v2155, %v2154
        %v2165 = vsel %vm1353, %v2138, 0
        %2167 = vmatpush.bf16.msra.mxu0 0
        %2168 = vmatpush.bf16.msra.mxu0 0
        %2169 = vmatpush.bf16.msra.mxu0 0
        %2170 = vmatpush.bf16.msra.mxu0 0
        %2171 = vmatpush.bf16.msra.mxu0 %v2159
        %2172 = vmatpush.bf16.msra.mxu0 %v2158
        %2173 = vmatpush.bf16.msra.mxu0 %v2157
        %2174 = vmatpush.bf16.msra.mxu0 %v2156
        %2175 = vmatmul.bf16.gmra.mxu0 %v2165
        %v2176 = vpop.f32.mrf.mxu0
        %v2177 = vadd.f32 0.0, %v2176
        %v2178 = vpop.f32.mrf.mxu0
        %2179 = vdwg.mxu0
        %v2180 = vadd.f32 %v2128, %v2177
        %s2181 = scalar_lea.vmem %s13, 64
        %v2182 = vld [vmem:[%s2181] sm:$0xf]
        %v2183 = vld [vmem:[%s2181 + $0x4] sm:$0xf]
        %v2184 = vld [vmem:[%s2181 + $0x8] sm:$0xf]
        %v2185 = vld [vmem:[%s2181 + $0xc] sm:$0xf]
        %v2186 = vld [vmem:[%s2181 + $0x10] sm:$0xf]
        %v2187 = vld [vmem:[%s2181 + $0x14] sm:$0xf]
        %v2188 = vld [vmem:[%s2181 + $0x18] sm:$0xf]
        %v2189 = vld [vmem:[%s2181 + $0x1c] sm:$0xf]
        %v2191 = vrot.slane %v2079, 1
        %v2200 = vunpack.c.l.b16 %v2182
        %v2201 = vunpack.c.l.b16 %v2183
        %v2202 = vunpack.c.l.b16 %v2184
        %v2203 = vunpack.c.l.b16 %v2185
        %v2204 = vunpack.c.l.b16 %v2186
        %v2205 = vunpack.c.l.b16 %v2187
        %v2206 = vunpack.c.l.b16 %v2188
        %v2207 = vunpack.c.l.b16 %v2189
        %v2208 = vpack.c.b16 %v2201, %v2200
        %v2209 = vpack.c.b16 %v2203, %v2202
        %v2210 = vpack.c.b16 %v2205, %v2204
        %v2211 = vpack.c.b16 %v2207, %v2206
        %v2217 = vsel %vm1353, %v2191, 0
        %2219 = vmatpush.bf16.msra.mxu0 0
        %2220 = vmatpush.bf16.msra.mxu0 0
        %2221 = vmatpush.bf16.msra.mxu0 0
        %2222 = vmatpush.bf16.msra.mxu0 0
        %2223 = vmatpush.bf16.msra.mxu0 %v2211
        %2224 = vmatpush.bf16.msra.mxu0 %v2210
        %2225 = vmatpush.bf16.msra.mxu0 %v2209
        %2226 = vmatpush.bf16.msra.mxu0 %v2208
        %2227 = vmatmul.bf16.gmra.mxu0 %v2217
        %v2228 = vpop.f32.mrf.mxu0
        %v2229 = vadd.f32 0.0, %v2228
        %v2230 = vpop.f32.mrf.mxu0
        %2231 = vdwg.mxu0
        %v2232 = vadd.f32 %v2180, %v2229
        %s2233 = scalar_lea.vmem %s13, 96
        %v2234 = vld [vmem:[%s2233] sm:$0xf]
        %v2235 = vld [vmem:[%s2233 + $0x4] sm:$0xf]
        %v2236 = vld [vmem:[%s2233 + $0x8] sm:$0xf]
        %v2237 = vld [vmem:[%s2233 + $0xc] sm:$0xf]
        %v2238 = vld [vmem:[%s2233 + $0x10] sm:$0xf]
        %v2239 = vld [vmem:[%s2233 + $0x14] sm:$0xf]
        %v2240 = vld [vmem:[%s2233 + $0x18] sm:$0xf]
        %v2241 = vld [vmem:[%s2233 + $0x1c] sm:$0xf]
        %v2242 = vrot.slane %v2138, 1
        %v2251 = vunpack.c.l.b16 %v2234
        %v2252 = vunpack.c.l.b16 %v2235
        %v2253 = vunpack.c.l.b16 %v2236
        %v2254 = vunpack.c.l.b16 %v2237
        %v2255 = vunpack.c.l.b16 %v2238
        %v2256 = vunpack.c.l.b16 %v2239
        %v2257 = vunpack.c.l.b16 %v2240
        %v2258 = vunpack.c.l.b16 %v2241
        %v2259 = vpack.c.b16 %v2252, %v2251
        %v2260 = vpack.c.b16 %v2254, %v2253
        %v2261 = vpack.c.b16 %v2256, %v2255
        %v2262 = vpack.c.b16 %v2258, %v2257
        %v2268 = vsel %vm1353, %v2242, 0
        %2270 = vmatpush.bf16.msra.mxu0 0
        %2271 = vmatpush.bf16.msra.mxu0 0
        %2272 = vmatpush.bf16.msra.mxu0 0
        %2273 = vmatpush.bf16.msra.mxu0 0
        %2274 = vmatpush.bf16.msra.mxu0 %v2262
        %2275 = vmatpush.bf16.msra.mxu0 %v2261
        %2276 = vmatpush.bf16.msra.mxu0 %v2260
        %2277 = vmatpush.bf16.msra.mxu0 %v2259
        %2278 = vmatmul.bf16.gmra.mxu0 %v2268
        %v2279 = vpop.f32.mrf.mxu0
        %v2280 = vadd.f32 0.0, %v2279
        %v2281 = vpop.f32.mrf.mxu0
        %2282 = vdwg.mxu0
        %v2283 = vadd.f32 %v2232, %v2280
        %s2284 = scalar_lea.vmem %s13, 128
        %v2285 = vld [vmem:[%s2284] sm:$0xf]
        %v2286 = vld [vmem:[%s2284 + $0x4] sm:$0xf]
        %v2287 = vld [vmem:[%s2284 + $0x8] sm:$0xf]
        %v2288 = vld [vmem:[%s2284 + $0xc] sm:$0xf]
        %v2289 = vld [vmem:[%s2284 + $0x10] sm:$0xf]
        %v2290 = vld [vmem:[%s2284 + $0x14] sm:$0xf]
        %v2291 = vld [vmem:[%s2284 + $0x18] sm:$0xf]
        %v2292 = vld [vmem:[%s2284 + $0x1c] sm:$0xf]
        %v2293 = vrot.slane %v2079, 2
        %v2302 = vunpack.c.l.b16 %v2285
        %v2303 = vunpack.c.l.b16 %v2286
        %v2304 = vunpack.c.l.b16 %v2287
        %v2305 = vunpack.c.l.b16 %v2288
        %v2306 = vunpack.c.l.b16 %v2289
        %v2307 = vunpack.c.l.b16 %v2290
        %v2308 = vunpack.c.l.b16 %v2291
        %v2309 = vunpack.c.l.b16 %v2292
        %v2310 = vpack.c.b16 %v2303, %v2302
        %v2311 = vpack.c.b16 %v2305, %v2304
        %v2312 = vpack.c.b16 %v2307, %v2306
        %v2313 = vpack.c.b16 %v2309, %v2308
        %v2319 = vsel %vm1353, %v2293, 0
        %2321 = vmatpush.bf16.msra.mxu0 0
        %2322 = vmatpush.bf16.msra.mxu0 0
        %2323 = vmatpush.bf16.msra.mxu0 0
        %2324 = vmatpush.bf16.msra.mxu0 0
        %2325 = vmatpush.bf16.msra.mxu0 %v2313
        %2326 = vmatpush.bf16.msra.mxu0 %v2312
        %2327 = vmatpush.bf16.msra.mxu0 %v2311
        %2328 = vmatpush.bf16.msra.mxu0 %v2310
        %2329 = vmatmul.bf16.gmra.mxu0 %v2319
        %v2330 = vpop.f32.mrf.mxu0
        %v2331 = vadd.f32 0.0, %v2330
        %v2332 = vpop.f32.mrf.mxu0
        %2333 = vdwg.mxu0
        %v2334 = vadd.f32 %v2283, %v2331
        %s2335 = scalar_lea.vmem %s13, 160
        %v2336 = vld [vmem:[%s2335] sm:$0xf]
        %v2337 = vld [vmem:[%s2335 + $0x4] sm:$0xf]
        %v2338 = vld [vmem:[%s2335 + $0x8] sm:$0xf]
        %v2339 = vld [vmem:[%s2335 + $0xc] sm:$0xf]
        %v2340 = vld [vmem:[%s2335 + $0x10] sm:$0xf]
        %v2341 = vld [vmem:[%s2335 + $0x14] sm:$0xf]
        %v2342 = vld [vmem:[%s2335 + $0x18] sm:$0xf]
        %v2343 = vld [vmem:[%s2335 + $0x1c] sm:$0xf]
        %v2344 = vrot.slane %v2138, 2
        %v2353 = vunpack.c.l.b16 %v2336
        %v2354 = vunpack.c.l.b16 %v2337
        %v2355 = vunpack.c.l.b16 %v2338
        %v2356 = vunpack.c.l.b16 %v2339
        %v2357 = vunpack.c.l.b16 %v2340
        %v2358 = vunpack.c.l.b16 %v2341
        %v2359 = vunpack.c.l.b16 %v2342
        %v2360 = vunpack.c.l.b16 %v2343
        %v2361 = vpack.c.b16 %v2354, %v2353
        %v2362 = vpack.c.b16 %v2356, %v2355
        %v2363 = vpack.c.b16 %v2358, %v2357
        %v2364 = vpack.c.b16 %v2360, %v2359
        %v2370 = vsel %vm1353, %v2344, 0
        %2372 = vmatpush.bf16.msra.mxu0 0
        %2373 = vmatpush.bf16.msra.mxu0 0
        %2374 = vmatpush.bf16.msra.mxu0 0
        %2375 = vmatpush.bf16.msra.mxu0 0
        %2376 = vmatpush.bf16.msra.mxu0 %v2364
        %2377 = vmatpush.bf16.msra.mxu0 %v2363
        %2378 = vmatpush.bf16.msra.mxu0 %v2362
        %2379 = vmatpush.bf16.msra.mxu0 %v2361
        %2380 = vmatmul.bf16.gmra.mxu0 %v2370
        %v2381 = vpop.f32.mrf.mxu0
        %v2382 = vadd.f32 0.0, %v2381
        %v2383 = vpop.f32.mrf.mxu0
        %2384 = vdwg.mxu0
        %v2385 = vadd.f32 %v2334, %v2382
        %s2386 = scalar_lea.vmem %s13, 192
        %v2387 = vld [vmem:[%s2386] sm:$0xf]
        %v2388 = vld [vmem:[%s2386 + $0x4] sm:$0xf]
        %v2389 = vld [vmem:[%s2386 + $0x8] sm:$0xf]
        %v2390 = vld [vmem:[%s2386 + $0xc] sm:$0xf]
        %v2391 = vld [vmem:[%s2386 + $0x10] sm:$0xf]
        %v2392 = vld [vmem:[%s2386 + $0x14] sm:$0xf]
        %v2393 = vld [vmem:[%s2386 + $0x18] sm:$0xf]
        %v2394 = vld [vmem:[%s2386 + $0x1c] sm:$0xf]
        %v2395 = vrot.slane %v2079, 3
        %v2404 = vunpack.c.l.b16 %v2387
        %v2405 = vunpack.c.l.b16 %v2388
        %v2406 = vunpack.c.l.b16 %v2389
        %v2407 = vunpack.c.l.b16 %v2390
        %v2408 = vunpack.c.l.b16 %v2391
        %v2409 = vunpack.c.l.b16 %v2392
        %v2410 = vunpack.c.l.b16 %v2393
        %v2411 = vunpack.c.l.b16 %v2394
        %v2412 = vpack.c.b16 %v2405, %v2404
        %v2413 = vpack.c.b16 %v2407, %v2406
        %v2414 = vpack.c.b16 %v2409, %v2408
        %v2415 = vpack.c.b16 %v2411, %v2410
        %v2421 = vsel %vm1353, %v2395, 0
        %2423 = vmatpush.bf16.msra.mxu0 0
        %2424 = vmatpush.bf16.msra.mxu0 0
        %2425 = vmatpush.bf16.msra.mxu0 0
        %2426 = vmatpush.bf16.msra.mxu0 0
        %2427 = vmatpush.bf16.msra.mxu0 %v2415
        %2428 = vmatpush.bf16.msra.mxu0 %v2414
        %2429 = vmatpush.bf16.msra.mxu0 %v2413
        %2430 = vmatpush.bf16.msra.mxu0 %v2412
        %2431 = vmatmul.bf16.gmra.mxu0 %v2421
        %v2432 = vpop.f32.mrf.mxu0
        %v2433 = vadd.f32 0.0, %v2432
        %v2434 = vpop.f32.mrf.mxu0
        %2435 = vdwg.mxu0
        %v2436 = vadd.f32 %v2385, %v2433
        %s2437 = scalar_lea.vmem %s13, 224
        %v2438 = vld [vmem:[%s2437] sm:$0xf]
        %v2439 = vld [vmem:[%s2437 + $0x4] sm:$0xf]
        %v2440 = vld [vmem:[%s2437 + $0x8] sm:$0xf]
        %v2441 = vld [vmem:[%s2437 + $0xc] sm:$0xf]
        %v2442 = vld [vmem:[%s2437 + $0x10] sm:$0xf]
        %v2443 = vld [vmem:[%s2437 + $0x14] sm:$0xf]
        %v2444 = vld [vmem:[%s2437 + $0x18] sm:$0xf]
        %v2445 = vld [vmem:[%s2437 + $0x1c] sm:$0xf]
        %v2446 = vrot.slane %v2138, 3
        %v2455 = vunpack.c.l.b16 %v2438
        %v2456 = vunpack.c.l.b16 %v2439
        %v2457 = vunpack.c.l.b16 %v2440
        %v2458 = vunpack.c.l.b16 %v2441
        %v2459 = vunpack.c.l.b16 %v2442
        %v2460 = vunpack.c.l.b16 %v2443
        %v2461 = vunpack.c.l.b16 %v2444
        %v2462 = vunpack.c.l.b16 %v2445
        %v2463 = vpack.c.b16 %v2456, %v2455
        %v2464 = vpack.c.b16 %v2458, %v2457
        %v2465 = vpack.c.b16 %v2460, %v2459
        %v2466 = vpack.c.b16 %v2462, %v2461
        %v2472 = vsel %vm1353, %v2446, 0
        %2474 = vmatpush.bf16.msra.mxu0 0
        %2475 = vmatpush.bf16.msra.mxu0 0
        %2476 = vmatpush.bf16.msra.mxu0 0
        %2477 = vmatpush.bf16.msra.mxu0 0
        %2478 = vmatpush.bf16.msra.mxu0 %v2466
        %2479 = vmatpush.bf16.msra.mxu0 %v2465
        %2480 = vmatpush.bf16.msra.mxu0 %v2464
        %2481 = vmatpush.bf16.msra.mxu0 %v2463
        %2482 = vmatmul.bf16.gmra.mxu0 %v2472
        %v2483 = vpop.f32.mrf.mxu0
        %v2484 = vadd.f32 0.0, %v2483
        %v2485 = vpop.f32.mrf.mxu0
        %2486 = vdwg.mxu0
        %v2487 = vadd.f32 %v2436, %v2484
        %v2488 = vpack.c.bf16 %v2487, %v2487
        %v2489 = vld [vmem:[%s16] sm:$0xff]
        %v2490 = vld [vmem:[#allocation21] sm:$0xf]
        %vm2491 = vcmask 64512
        %v2493 = vsel %vm2491, %v2488, 0
        %v2496 = vsel %vm1831, %v2490, 0
        %2498 = vmatpush.bf16.msra.mxu0 0
        %2499 = vmatpush.bf16.msra.mxu0 0
        %2500 = vmatpush.bf16.msra.mxu0 0
        %2501 = vmatpush.bf16.msra.mxu0 0
        %2502 = vmatpush.bf16.msra.mxu0 0
        %2503 = vmatpush.bf16.msra.mxu0 0
        %2504 = vmatpush.bf16.msra.mxu0 0
        %2505 = vmatpush.bf16.msra.mxu0 %v2496
        %2506 = vmatmul.bf16.gmra.mxu0 %v2493
        %v2507 = vpop.f32.mrf.mxu0
        %v2508 = vadd.f32 %v2489, %v2507
        %v2509 = vpop.f32.mrf.mxu0
        %2510 = vdwg.mxu0
        %s2511 = scalar_lea.vmem [#allocation21], 4
        %v2512 = vld [vmem:[%s2511] sm:$0xf]
        %v2514 = vrot.slane %v2489, 1
        %v2517 = vsel %vm1831, %v2512, 0
        %2519 = vmatpush.bf16.msra.mxu0 0
        %2520 = vmatpush.bf16.msra.mxu0 0
        %2521 = vmatpush.bf16.msra.mxu0 0
        %2522 = vmatpush.bf16.msra.mxu0 0
        %2523 = vmatpush.bf16.msra.mxu0 0
        %2524 = vmatpush.bf16.msra.mxu0 0
        %2525 = vmatpush.bf16.msra.mxu0 0
        %2526 = vmatpush.bf16.msra.mxu0 %v2517
        %2527 = vmatmul.bf16.gmra.mxu0 %v2493
        %v2528 = vpop.f32.mrf.mxu0
        %v2529 = vadd.f32 %v2514, %v2528
        %v2530 = vpop.f32.mrf.mxu0
        %2531 = vdwg.mxu0
        %s2532 = scalar_lea.vmem [#allocation21], 8
        %v2533 = vld [vmem:[%s2532] sm:$0xf]
        %v2534 = vrot.slane %v2489, 2
        %v2537 = vsel %vm1831, %v2533, 0
        %2539 = vmatpush.bf16.msra.mxu0 0
        %2540 = vmatpush.bf16.msra.mxu0 0
        %2541 = vmatpush.bf16.msra.mxu0 0
        %2542 = vmatpush.bf16.msra.mxu0 0
        %2543 = vmatpush.bf16.msra.mxu0 0
        %2544 = vmatpush.bf16.msra.mxu0 0
        %2545 = vmatpush.bf16.msra.mxu0 0
        %2546 = vmatpush.bf16.msra.mxu0 %v2537
        %2547 = vmatmul.bf16.gmra.mxu0 %v2493
        %v2548 = vpop.f32.mrf.mxu0
        %v2549 = vadd.f32 %v2534, %v2548
        %v2550 = vpop.f32.mrf.mxu0
        %2551 = vdwg.mxu0
        %s2552 = scalar_lea.vmem [#allocation21], 12
        %v2553 = vld [vmem:[%s2552] sm:$0xf]
        %v2554 = vrot.slane %v2489, 3
        %v2557 = vsel %vm1831, %v2553, 0
        %2559 = vmatpush.bf16.msra.mxu0 0
        %2560 = vmatpush.bf16.msra.mxu0 0
        %2561 = vmatpush.bf16.msra.mxu0 0
        %2562 = vmatpush.bf16.msra.mxu0 0
        %2563 = vmatpush.bf16.msra.mxu0 0
        %2564 = vmatpush.bf16.msra.mxu0 0
        %2565 = vmatpush.bf16.msra.mxu0 0
        %2566 = vmatpush.bf16.msra.mxu0 %v2557
        %2567 = vmatmul.bf16.gmra.mxu0 %v2493
        %v2568 = vpop.f32.mrf.mxu0
        %v2569 = vadd.f32 %v2554, %v2568
        %v2570 = vpop.f32.mrf.mxu0
        %2571 = vdwg.mxu0
        %s2572 = scalar_lea.vmem [#allocation21], 16
        %v2573 = vld [vmem:[%s2572] sm:$0xf]
        %v2574 = vrot.slane %v2489, 4
        %v2577 = vsel %vm1831, %v2573, 0
        %2579 = vmatpush.bf16.msra.mxu0 0
        %2580 = vmatpush.bf16.msra.mxu0 0
        %2581 = vmatpush.bf16.msra.mxu0 0
        %2582 = vmatpush.bf16.msra.mxu0 0
        %2583 = vmatpush.bf16.msra.mxu0 0
        %2584 = vmatpush.bf16.msra.mxu0 0
        %2585 = vmatpush.bf16.msra.mxu0 0
        %2586 = vmatpush.bf16.msra.mxu0 %v2577
        %2587 = vmatmul.bf16.gmra.mxu0 %v2493
        %v2588 = vpop.f32.mrf.mxu0
        %v2589 = vadd.f32 %v2574, %v2588
        %v2590 = vpop.f32.mrf.mxu0
        %2591 = vdwg.mxu0
        %s2592 = scalar_lea.vmem [#allocation21], 20
        %v2593 = vld [vmem:[%s2592] sm:$0xf]
        %v2594 = vrot.slane %v2489, 5
        %v2597 = vsel %vm1831, %v2593, 0
        %2599 = vmatpush.bf16.msra.mxu0 0
        %2600 = vmatpush.bf16.msra.mxu0 0
        %2601 = vmatpush.bf16.msra.mxu0 0
        %2602 = vmatpush.bf16.msra.mxu0 0
        %2603 = vmatpush.bf16.msra.mxu0 0
        %2604 = vmatpush.bf16.msra.mxu0 0
        %2605 = vmatpush.bf16.msra.mxu0 0
        %2606 = vmatpush.bf16.msra.mxu0 %v2597
        %2607 = vmatmul.bf16.gmra.mxu0 %v2493
        %v2608 = vpop.f32.mrf.mxu0
        %v2609 = vadd.f32 %v2594, %v2608
        %v2610 = vpop.f32.mrf.mxu0
        %2611 = vdwg.mxu0
        %s2612 = scalar_lea.vmem [#allocation21], 24
        %v2613 = vld [vmem:[%s2612] sm:$0xf]
        %v2614 = vrot.slane %v2489, 6
        %v2617 = vsel %vm1831, %v2613, 0
        %2619 = vmatpush.bf16.msra.mxu0 0
        %2620 = vmatpush.bf16.msra.mxu0 0
        %2621 = vmatpush.bf16.msra.mxu0 0
        %2622 = vmatpush.bf16.msra.mxu0 0
        %2623 = vmatpush.bf16.msra.mxu0 0
        %2624 = vmatpush.bf16.msra.mxu0 0
        %2625 = vmatpush.bf16.msra.mxu0 0
        %2626 = vmatpush.bf16.msra.mxu0 %v2617
        %2627 = vmatmul.bf16.gmra.mxu0 %v2493
        %v2628 = vpop.f32.mrf.mxu0
        %v2629 = vadd.f32 %v2614, %v2628
        %v2630 = vpop.f32.mrf.mxu0
        %2631 = vdwg.mxu0
        %s2632 = scalar_lea.vmem [#allocation21], 28
        %v2633 = vld [vmem:[%s2632] sm:$0xf]
        %v2634 = vrot.slane %v2489, 7
        %v2637 = vsel %vm1831, %v2633, 0
        %2639 = vmatpush.bf16.msra.mxu0 0
        %2640 = vmatpush.bf16.msra.mxu0 0
        %2641 = vmatpush.bf16.msra.mxu0 0
        %2642 = vmatpush.bf16.msra.mxu0 0
        %2643 = vmatpush.bf16.msra.mxu0 0
        %2644 = vmatpush.bf16.msra.mxu0 0
        %2645 = vmatpush.bf16.msra.mxu0 0
        %2646 = vmatpush.bf16.msra.mxu0 %v2637
        %2647 = vmatmul.bf16.gmra.mxu0 %v2493
        %v2648 = vpop.f32.mrf.mxu0
        %v2649 = vadd.f32 %v2634, %v2648
        %v2650 = vpop.f32.mrf.mxu0
        %2651 = vdwg.mxu0
        %v2653 = vrot.slane %v2529, 7
        %v2656 = vrot.slane %v2549, 6
        %v2659 = vrot.slane %v2569, 5
        %v2662 = vrot.slane %v2589, 4
        %v2665 = vrot.slane %v2609, 3
        %v2668 = vrot.slane %v2629, 2
        %v2671 = vrot.slane %v2649, 1
        %v2673 = vsel %vm1185, %v2508, %v2653
        %v2674 = vsel %vm1827, %v2673, %v2656
        %v2675 = vsel %vm1829, %v2674, %v2659
        %v2676 = vsel %vm1831, %v2675, %v2662
        %v2677 = vsel %vm1833, %v2676, %v2665
        %v2678 = vsel %vm1835, %v2677, %v2668
        %v2679 = vsel %vm1192, %v2678, %v2671
        %v2680 = vld [vmem:[#allocation22] sm:$0xf]
        %v2681 = vld [vmem:[#allocation22 + $0x4] sm:$0xf]
        %v2682 = vld [vmem:[#allocation22 + $0x8] sm:$0xf]
        %v2683 = vld [vmem:[#allocation22 + $0xc] sm:$0xf]
        %v2684 = vld [vmem:[#allocation22 + $0x10] sm:$0xf]
        %v2685 = vld [vmem:[#allocation22 + $0x14] sm:$0xf]
        %v2686 = vld [vmem:[#allocation22 + $0x18] sm:$0xf]
        %v2687 = vld [vmem:[#allocation22 + $0x1c] sm:$0xf]
        %v2688 = vld [vmem:[#allocation22 + $0x20] sm:$0xf]
        %v2689 = vld [vmem:[#allocation22 + $0x24] sm:$0xf]
        %v2690 = vld [vmem:[#allocation22 + $0x28] sm:$0xf]
        %v2691 = vld [vmem:[#allocation22 + $0x2c] sm:$0xf]
        %v2692 = vld [vmem:[#allocation24] sm:$0x1]
        %v2694 = vrot.slane %v2679, 7
        %v2696 = vsel %vm1185, 0.0, %v2694
        %v2697 = vrot.slane %v2679, 1
        %v2699 = vsel %vm1192, %v2697, 0.0
        %2700 = vrot.lane.b32.xlu0 %v2679, 32
        %v2701 = vpop.permute.xlu0 %2700
        %2704 = vrot.lane.b32.xlu0 %v2699, 64
        %v2705 = vpop.permute.xlu0 %2704
        %v2707 = vsel %vm1865, %v2696, %v2701
        %v2708 = vsel %vm1353, %v2707, %v2705
        %v2709 = vpack.c.bf16 %v2708, %v2708
        %v2711 = vperm.slane %v2692, 0
        %v2725 = vunpack.c.l.b16 %v2680
        %v2726 = vunpack.c.l.b16 %v2681
        %v2727 = vunpack.c.l.b16 %v2682
        %v2728 = vunpack.c.l.b16 %v2683
        %v2729 = vunpack.c.l.b16 %v2684
        %v2730 = vunpack.c.l.b16 %v2685
        %v2731 = vunpack.c.l.b16 %v2686
        %v2732 = vunpack.c.l.b16 %v2687
        %v2733 = vunpack.c.l.b16 %v2688
        %v2734 = vunpack.c.l.b16 %v2689
        %v2735 = vunpack.c.l.b16 %v2690
        %v2736 = vunpack.c.l.b16 %v2691
        %v2737 = vpack.c.b16 %v2726, %v2725
        %v2738 = vpack.c.b16 %v2728, %v2727
        %v2739 = vpack.c.b16 %v2730, %v2729
        %v2740 = vpack.c.b16 %v2732, %v2731
        %v2741 = vpack.c.b16 %v2734, %v2733
        %v2742 = vpack.c.b16 %v2736, %v2735
        %v2750 = vsel %vm1214, %v2709, 0
        %2752 = vmatpush.bf16.msra.mxu0 0
        %2753 = vmatpush.bf16.msra.mxu0 0
        %2754 = vmatpush.bf16.msra.mxu0 %v2742
        %2755 = vmatpush.bf16.msra.mxu0 %v2741
        %2756 = vmatpush.bf16.msra.mxu0 %v2740
        %2757 = vmatpush.bf16.msra.mxu0 %v2739
        %2758 = vmatpush.bf16.msra.mxu0 %v2738
        %2759 = vmatpush.bf16.msra.mxu0 %v2737
        %2760 = vmatmul.bf16.gmra.mxu0 %v2750
        %v2761 = vpop.f32.mrf.mxu0
        %v2762 = vadd.f32 %v2711, %v2761
        %v2763 = vpop.f32.mrf.mxu0
        %2764 = vdwg.mxu0
        %vm2765 = vcmp.gt.f32.partialorder %v2762, 0.0
        %v2766 = vmin.f32 %v2762, 0.0
        %v2767 = vmul.f32 %v2766, 1.442695
        %v2768 = vpow.pop %v2767
        %v2769 = vsub.f32 %v2768, 1.0
        %v2770 = vsel %vm2765, %v2762, %v2769
        %v2771 = vld [vmem:[#allocation25] sm:$0xf]
        %v2772 = vld [vmem:[#allocation25 + $0x4] sm:$0xf]
        %v2773 = vld [vmem:[#allocation25 + $0x8] sm:$0xf]
        %v2774 = vld [vmem:[#allocation25 + $0xc] sm:$0xf]
        %v2775 = vld [vmem:[#allocation25 + $0x10] sm:$0xf]
        %v2776 = vld [vmem:[#allocation25 + $0x14] sm:$0xf]
        %v2777 = vld [vmem:[#allocation25 + $0x18] sm:$0xf]
        %v2778 = vld [vmem:[#allocation25 + $0x1c] sm:$0xf]
        %v2779 = vld [vmem:[#allocation25 + $0x20] sm:$0xf]
        %v2780 = vld [vmem:[#allocation25 + $0x24] sm:$0xf]
        %v2781 = vld [vmem:[#allocation25 + $0x28] sm:$0xf]
        %v2782 = vld [vmem:[#allocation25 + $0x2c] sm:$0xf]
        %v2783 = vld [vmem:[%s20] sm:$0x1]
        %v2785 = vrot.slane %v2770, 7
        %v2787 = vsel %vm1185, 0.0, %v2785
        %v2788 = vrot.slane %v2770, 1
        %v2790 = vsel %vm1192, %v2788, 0.0
        %2791 = vrot.lane.b32.xlu0 %v2770, 32
        %v2792 = vpop.permute.xlu0 %2791
        %2795 = vrot.lane.b32.xlu0 %v2790, 64
        %v2796 = vpop.permute.xlu0 %2795
        %v2798 = vsel %vm1865, %v2787, %v2792
        %v2799 = vsel %vm1353, %v2798, %v2796
        %v2800 = vpack.c.bf16 %v2799, %v2799
        %v2802 = vperm.slane %v2783, 0
        %v2816 = vunpack.c.l.b16 %v2771
        %v2817 = vunpack.c.l.b16 %v2772
        %v2818 = vunpack.c.l.b16 %v2773
        %v2819 = vunpack.c.l.b16 %v2774
        %v2820 = vunpack.c.l.b16 %v2775
        %v2821 = vunpack.c.l.b16 %v2776
        %v2822 = vunpack.c.l.b16 %v2777
        %v2823 = vunpack.c.l.b16 %v2778
        %v2824 = vunpack.c.l.b16 %v2779
        %v2825 = vunpack.c.l.b16 %v2780
        %v2826 = vunpack.c.l.b16 %v2781
        %v2827 = vunpack.c.l.b16 %v2782
        %v2828 = vpack.c.b16 %v2817, %v2816
        %v2829 = vpack.c.b16 %v2819, %v2818
        %v2830 = vpack.c.b16 %v2821, %v2820
        %v2831 = vpack.c.b16 %v2823, %v2822
        %v2832 = vpack.c.b16 %v2825, %v2824
        %v2833 = vpack.c.b16 %v2827, %v2826
        %v2841 = vsel %vm1214, %v2800, 0
        %2843 = vmatpush.bf16.msra.mxu0 0
        %2844 = vmatpush.bf16.msra.mxu0 0
        %2845 = vmatpush.bf16.msra.mxu0 %v2833
        %2846 = vmatpush.bf16.msra.mxu0 %v2832
        %2847 = vmatpush.bf16.msra.mxu0 %v2831
        %2848 = vmatpush.bf16.msra.mxu0 %v2830
        %2849 = vmatpush.bf16.msra.mxu0 %v2829
        %2850 = vmatpush.bf16.msra.mxu0 %v2828
        %2851 = vmatmul.bf16.gmra.mxu0 %v2841
        %v2852 = vpop.f32.mrf.mxu0
        %v2853 = vadd.f32 %v2802, %v2852
        %v2854 = vpop.f32.mrf.mxu0
        %2855 = vdwg.mxu0
        %vm2856 = vcmp.gt.f32.partialorder %v2853, 0.0
        %v2857 = vmin.f32 %v2853, 0.0
        %v2858 = vmul.f32 %v2857, 1.442695
        %v2859 = vpow.pop %v2858
        %v2860 = vsub.f32 %v2859, 1.0
        %v2861 = vsel %vm2856, %v2853, %v2860
        %v2862 = vld [vmem:[#allocation27] sm:$0xff]
        %v2863 = vld [vmem:[#allocation27 + $0x8] sm:$0xff]
        %v2864 = vld [vmem:[#allocation27 + $0x10] sm:$0xff]
        %v2865 = vld [vmem:[#allocation27 + $0x18] sm:$0xff]
        %v2867 = vrot.slane %v2861, 7
        %v2869 = vrot.slane %v2861, 6
        %v2871 = vrot.slane %v2861, 5
        %v2873 = vrot.slane %v2861, 4
        %v2875 = vrot.slane %v2861, 3
        %v2877 = vrot.slane %v2861, 2
        %v2879 = vrot.slane %v2861, 1
        %v2881 = vsel %vm1185, %v2861, %v2867
        %v2882 = vsel %vm1827, %v2881, %v2867
        %v2883 = vsel %vm1829, %v2882, %v2869
        %v2884 = vsel %vm1831, %v2883, %v2869
        %v2885 = vsel %vm1833, %v2884, %v2871
        %v2886 = vsel %vm1835, %v2885, %v2871
        %v2887 = vsel %vm1192, %v2886, %v2873
        %v2888 = vsel %vm1185, %v2873, %v2875
        %v2889 = vsel %vm1827, %v2888, %v2875
        %v2890 = vsel %vm1829, %v2889, %v2877
        %v2891 = vsel %vm1831, %v2890, %v2877
        %v2892 = vsel %vm1833, %v2891, %v2879
        %v2893 = vsel %vm1835, %v2892, %v2879
        %v2894 = vsel %vm1192, %v2893, %v2861
        %v2896 = vsel %vm1865, %v2887, 0
        %v2899 = vsel %vm1865, %v2894, 0
        %2901 = vmatpush.msra.mxu0 0.0
        %2902 = vmatpush.msra.mxu0 0.0
        %2903 = vmatpush.msra.mxu0 0.0
        %2904 = vmatpush.msra.mxu0 0.0
        %2905 = vmatpush.msra.mxu0 0.0
        %2906 = vmatpush.msra.mxu0 0.0
        %2907 = vmatpush.msra.mxu0 0.0
        %2908 = vmatpush.msra.mxu0 0.0
        %2909 = vmatpush.msra.mxu0 0.0
        %2910 = vmatpush.msra.mxu0 0.0
        %2911 = vmatpush.msra.mxu0 0.0
        %2912 = vmatpush.msra.mxu0 0.0
        %2913 = vmatpush.msra.mxu0 %v2865
        %2914 = vmatpush.msra.mxu0 %v2864
        %2915 = vmatpush.msra.mxu0 %v2863
        %2916 = vmatpush.msra.mxu0 %v2862
        %2917 = vmatmul.f32.gmra.mxu0 %v2896
        %v2918 = vpop.f32.mrf.mxu0
        %v2919 = vadd.f32 0.0, %v2918
        %2920 = vmatmul.f32.gmra.mxu0 %v2899
        %v2921 = vpop.f32.mrf.mxu0
        %v2922 = vadd.f32 0.0, %v2921
        %2923 = vdwg.mxu0
        %v2924 = vld [vmem:[#allocation28] sm:$0xf]
        %v2925 = vld [vmem:[#allocation28 + $0x4] sm:$0xf]
        %v2926 = vld [vmem:[#allocation28 + $0x8] sm:$0xf]
        %v2927 = vld [vmem:[#allocation28 + $0xc] sm:$0xf]
        %v2928 = vld [vmem:[#allocation28 + $0x10] sm:$0xf]
        %v2929 = vld [vmem:[#allocation28 + $0x14] sm:$0xf]
        %v2930 = vld [vmem:[#allocation28 + $0x18] sm:$0xf]
        %v2931 = vld [vmem:[#allocation28 + $0x1c] sm:$0xf]
        %v2932 = vld [vmem:[#allocation28 + $0x20] sm:$0xf]
        %v2933 = vld [vmem:[#allocation28 + $0x24] sm:$0xf]
        %v2934 = vld [vmem:[#allocation28 + $0x28] sm:$0xf]
        %v2935 = vld [vmem:[#allocation28 + $0x2c] sm:$0xf]
        %v2936 = vld [vmem:[#allocation28 + $0x30] sm:$0xf]
        %v2937 = vld [vmem:[#allocation28 + $0x34] sm:$0xf]
        %v2938 = vld [vmem:[#allocation28 + $0x38] sm:$0xf]
        %v2939 = vld [vmem:[#allocation28 + $0x3c] sm:$0xf]
        %v2940 = vld [vmem:[#allocation28 + $0x40] sm:$0xf]
        %v2941 = vld [vmem:[#allocation28 + $0x44] sm:$0xf]
        %v2942 = vld [vmem:[#allocation28 + $0x48] sm:$0xf]
        %v2943 = vld [vmem:[#allocation28 + $0x4c] sm:$0xf]
        %v2944 = vld [vmem:[#allocation28 + $0x50] sm:$0xf]
        %v2945 = vld [vmem:[#allocation28 + $0x54] sm:$0xf]
        %v2946 = vld [vmem:[#allocation28 + $0x58] sm:$0xf]
        %v2947 = vld [vmem:[#allocation28 + $0x5c] sm:$0xf]
        %v2948 = vld [vmem:[%s23] sm:$0x1]
        %v2951 = vrot.slane %v2919, 7
        %v2952 = vrot.slane %v2922, 7
        %v2953 = vsel %vm1185, %v2951, %v2952
        %v2956 = vsel %vm1185, 0.0, %v2951
        %v2957 = vrot.slane %v2919, 1
        %v2958 = vrot.slane %v2922, 1
        %v2959 = vsel %vm1192, %v2957, %v2958
        %v2962 = vsel %vm1192, %v2958, 0.0
        %2963 = vrot.lane.b32.xlu0 %v2919, 64
        %v2964 = vpop.permute.xlu0 %2963
        %2965 = vrot.lane.b32.xlu0 %v2922, 64
        %v2966 = vpop.permute.xlu0 %2965
        %v2969 = vsel %vm1353, %v2956, %v2964
        %v2970 = vsel %vm1353, %v2953, %v2966
        %v2971 = vpack.c.bf16 %v2970, %v2969
        %v2972 = vpack.c.bf16 %v2962, %v2959
        %v2974 = vperm.slane %v2948, 0
        %v3000 = vunpack.c.l.b16 %v2924
        %v3001 = vunpack.c.l.b16 %v2925
        %v3002 = vunpack.c.l.b16 %v2926
        %v3003 = vunpack.c.l.b16 %v2927
        %v3004 = vunpack.c.l.b16 %v2928
        %v3005 = vunpack.c.l.b16 %v2929
        %v3006 = vunpack.c.l.b16 %v2930
        %v3007 = vunpack.c.l.b16 %v2931
        %v3008 = vunpack.c.l.b16 %v2932
        %v3009 = vunpack.c.l.b16 %v2933
        %v3010 = vunpack.c.l.b16 %v2934
        %v3011 = vunpack.c.l.b16 %v2935
        %v3012 = vunpack.c.l.b16 %v2936
        %v3013 = vunpack.c.l.b16 %v2937
        %v3014 = vunpack.c.l.b16 %v2938
        %v3015 = vunpack.c.l.b16 %v2939
        %v3016 = vunpack.c.l.b16 %v2940
        %v3017 = vunpack.c.l.b16 %v2941
        %v3018 = vunpack.c.l.b16 %v2942
        %v3019 = vunpack.c.l.b16 %v2943
        %v3020 = vunpack.c.l.b16 %v2944
        %v3021 = vunpack.c.l.b16 %v2945
        %v3022 = vunpack.c.l.b16 %v2946
        %v3023 = vunpack.c.l.b16 %v2947
        %v3024 = vpack.c.b16 %v3001, %v3000
        %v3025 = vpack.c.b16 %v3003, %v3002
        %v3026 = vpack.c.b16 %v3005, %v3004
        %v3027 = vpack.c.b16 %v3007, %v3006
        %v3028 = vpack.c.b16 %v3009, %v3008
        %v3029 = vpack.c.b16 %v3011, %v3010
        %v3030 = vpack.c.b16 %v3013, %v3012
        %v3031 = vpack.c.b16 %v3015, %v3014
        %v3032 = vpack.c.b16 %v3017, %v3016
        %v3033 = vpack.c.b16 %v3019, %v3018
        %v3034 = vpack.c.b16 %v3021, %v3020
        %v3035 = vpack.c.b16 %v3023, %v3022
        %v3049 = vsel %vm1353, %v2972, 0
        %3051 = vmatpush.bf16.msra.mxu0 %v3031
        %3052 = vmatpush.bf16.msra.mxu0 %v3030
        %3053 = vmatpush.bf16.msra.mxu0 %v3029
        %3054 = vmatpush.bf16.msra.mxu0 %v3028
        %3055 = vmatpush.bf16.msra.mxu0 %v3027
        %3056 = vmatpush.bf16.msra.mxu0 %v3026
        %3057 = vmatpush.bf16.msra.mxu0 %v3025
        %3058 = vmatpush.bf16.msra.mxu0 %v3024
        %3059 = vmatmul.bf16.gmra.mxu0 %v2971
        %v3060 = vpop.f32.mrf.mxu0
        %v3061 = vadd.f32 %v2974, %v3060
        %v3062 = vpop.f32.mrf.mxu0
        %v3063 = vadd.f32 %v2974, %v3062
        %3064 = vdwg.mxu0
        %3065 = vmatpush.bf16.msra.mxu0 0
        %3066 = vmatpush.bf16.msra.mxu0 0
        %3067 = vmatpush.bf16.msra.mxu0 0
        %3068 = vmatpush.bf16.msra.mxu0 0
        %3069 = vmatpush.bf16.msra.mxu0 %v3035
        %3070 = vmatpush.bf16.msra.mxu0 %v3034
        %3071 = vmatpush.bf16.msra.mxu0 %v3033
        %3072 = vmatpush.bf16.msra.mxu0 %v3032
        %3073 = vmatmul.bf16.gmra.mxu0 %v3049
        %v3074 = vpop.f32.mrf.mxu0
        %v3075 = vadd.f32 %v3061, %v3074
        %v3076 = vpop.f32.mrf.mxu0
        %v3077 = vadd.f32 %v3063, %v3076
        %3078 = vdwg.mxu0
        %vm3079 = vcmp.gt.f32.partialorder %v3075, 0.0
        %vm3080 = vcmp.gt.f32.partialorder %v3077, 0.0
        %v3081 = vmin.f32 %v3075, 0.0
        %v3082 = vmin.f32 %v3077, 0.0
        %v3083 = vmul.f32 %v3081, 1.442695
        %v3084 = vpow.pop %v3083
        %v3085 = vmul.f32 %v3082, 1.442695
        %v3086 = vpow.pop %v3085
        %v3087 = vsub.f32 %v3084, 1.0
        %v3088 = vsub.f32 %v3086, 1.0
        %v3089 = vsel %vm3079, %v3075, %v3087
        %v3090 = vsel %vm3080, %v3077, %v3088
        %v3091 = vld [vmem:[#allocation30] sm:$0xf]
        %v3092 = vld [vmem:[#allocation30 + $0x4] sm:$0xf]
        %v3093 = vld [vmem:[#allocation30 + $0x8] sm:$0xf]
        %v3094 = vld [vmem:[#allocation30 + $0xc] sm:$0xf]
        %v3095 = vld [vmem:[#allocation30 + $0x10] sm:$0xf]
        %v3096 = vld [vmem:[#allocation30 + $0x14] sm:$0xf]
        %v3097 = vld [vmem:[#allocation30 + $0x18] sm:$0xf]
        %v3098 = vld [vmem:[#allocation30 + $0x1c] sm:$0xf]
        %v3099 = vld [vmem:[#allocation30 + $0x20] sm:$0xf]
        %v3100 = vld [vmem:[#allocation30 + $0x24] sm:$0xf]
        %v3101 = vld [vmem:[#allocation30 + $0x28] sm:$0xf]
        %v3102 = vld [vmem:[#allocation30 + $0x2c] sm:$0xf]
        %v3103 = vld [vmem:[#allocation30 + $0x30] sm:$0xf]
        %v3104 = vld [vmem:[#allocation30 + $0x34] sm:$0xf]
        %v3105 = vld [vmem:[#allocation30 + $0x38] sm:$0xf]
        %v3106 = vld [vmem:[#allocation30 + $0x3c] sm:$0xf]
        %v3107 = vld [vmem:[#allocation30 + $0x40] sm:$0xf]
        %v3108 = vld [vmem:[#allocation30 + $0x44] sm:$0xf]
        %v3109 = vld [vmem:[#allocation30 + $0x48] sm:$0xf]
        %v3110 = vld [vmem:[#allocation30 + $0x4c] sm:$0xf]
        %v3111 = vld [vmem:[#allocation30 + $0x50] sm:$0xf]
        %v3112 = vld [vmem:[#allocation30 + $0x54] sm:$0xf]
        %v3113 = vld [vmem:[#allocation30 + $0x58] sm:$0xf]
        %v3114 = vld [vmem:[#allocation30 + $0x5c] sm:$0xf]
        %v3115 = vld [vmem:[%s25] sm:$0x1]
        %v3118 = vrot.slane %v3089, 7
        %v3119 = vrot.slane %v3090, 7
        %v3120 = vsel %vm1185, %v3118, %v3119
        %v3123 = vsel %vm1185, 0.0, %v3118
        %v3124 = vrot.slane %v3089, 1
        %v3125 = vrot.slane %v3090, 1
        %v3126 = vsel %vm1192, %v3124, %v3125
        %v3129 = vsel %vm1192, %v3125, 0.0
        %3130 = vrot.lane.b32.xlu0 %v3089, 64
        %v3131 = vpop.permute.xlu0 %3130
        %3132 = vrot.lane.b32.xlu0 %v3090, 64
        %v3133 = vpop.permute.xlu0 %3132
        %v3136 = vsel %vm1353, %v3123, %v3131
        %v3137 = vsel %vm1353, %v3120, %v3133
        %v3138 = vpack.c.bf16 %v3137, %v3136
        %v3139 = vpack.c.bf16 %v3129, %v3126
        %v3141 = vperm.slane %v3115, 0
        %v3167 = vunpack.c.l.b16 %v3091
        %v3168 = vunpack.c.l.b16 %v3092
        %v3169 = vunpack.c.l.b16 %v3093
        %v3170 = vunpack.c.l.b16 %v3094
        %v3171 = vunpack.c.l.b16 %v3095
        %v3172 = vunpack.c.l.b16 %v3096
        %v3173 = vunpack.c.l.b16 %v3097
        %v3174 = vunpack.c.l.b16 %v3098
        %v3175 = vunpack.c.l.b16 %v3099
        %v3176 = vunpack.c.l.b16 %v3100
        %v3177 = vunpack.c.l.b16 %v3101
        %v3178 = vunpack.c.l.b16 %v3102
        %v3179 = vunpack.c.l.b16 %v3103
        %v3180 = vunpack.c.l.b16 %v3104
        %v3181 = vunpack.c.l.b16 %v3105
        %v3182 = vunpack.c.l.b16 %v3106
        %v3183 = vunpack.c.l.b16 %v3107
        %v3184 = vunpack.c.l.b16 %v3108
        %v3185 = vunpack.c.l.b16 %v3109
        %v3186 = vunpack.c.l.b16 %v3110
        %v3187 = vunpack.c.l.b16 %v3111
        %v3188 = vunpack.c.l.b16 %v3112
        %v3189 = vunpack.c.l.b16 %v3113
        %v3190 = vunpack.c.l.b16 %v3114
        %v3191 = vpack.c.b16 %v3168, %v3167
        %v3192 = vpack.c.b16 %v3170, %v3169
        %v3193 = vpack.c.b16 %v3172, %v3171
        %v3194 = vpack.c.b16 %v3174, %v3173
        %v3195 = vpack.c.b16 %v3176, %v3175
        %v3196 = vpack.c.b16 %v3178, %v3177
        %v3197 = vpack.c.b16 %v3180, %v3179
        %v3198 = vpack.c.b16 %v3182, %v3181
        %v3199 = vpack.c.b16 %v3184, %v3183
        %v3200 = vpack.c.b16 %v3186, %v3185
        %v3201 = vpack.c.b16 %v3188, %v3187
        %v3202 = vpack.c.b16 %v3190, %v3189
        %v3216 = vsel %vm1353, %v3139, 0
        %3218 = vmatpush.bf16.msra.mxu0 %v3198
        %3219 = vmatpush.bf16.msra.mxu0 %v3197
        %3220 = vmatpush.bf16.msra.mxu0 %v3196
        %3221 = vmatpush.bf16.msra.mxu0 %v3195
        %3222 = vmatpush.bf16.msra.mxu0 %v3194
        %3223 = vmatpush.bf16.msra.mxu0 %v3193
        %3224 = vmatpush.bf16.msra.mxu0 %v3192
        %3225 = vmatpush.bf16.msra.mxu0 %v3191
        %3226 = vmatmul.bf16.gmra.mxu0 %v3138
        %v3227 = vpop.f32.mrf.mxu0
        %v3228 = vadd.f32 %v3141, %v3227
        %v3229 = vpop.f32.mrf.mxu0
        %v3230 = vadd.f32 %v3141, %v3229
        %3231 = vdwg.mxu0
        %3232 = vmatpush.bf16.msra.mxu0 0
        %3233 = vmatpush.bf16.msra.mxu0 0
        %3234 = vmatpush.bf16.msra.mxu0 0
        %3235 = vmatpush.bf16.msra.mxu0 0
        %3236 = vmatpush.bf16.msra.mxu0 %v3202
        %3237 = vmatpush.bf16.msra.mxu0 %v3201
        %3238 = vmatpush.bf16.msra.mxu0 %v3200
        %3239 = vmatpush.bf16.msra.mxu0 %v3199
        %3240 = vmatmul.bf16.gmra.mxu0 %v3216
        %v3241 = vpop.f32.mrf.mxu0
        %v3242 = vadd.f32 %v3228, %v3241
        %v3243 = vpop.f32.mrf.mxu0
        %v3244 = vadd.f32 %v3230, %v3243
        %3245 = vdwg.mxu0
        %vm3246 = vcmp.gt.f32.partialorder %v3242, 0.0
        %vm3247 = vcmp.gt.f32.partialorder %v3244, 0.0
        %v3248 = vmin.f32 %v3242, 0.0
        %v3249 = vmin.f32 %v3244, 0.0
        %v3250 = vmul.f32 %v3248, 1.442695
        %v3251 = vpow.pop %v3250
        %v3252 = vmul.f32 %v3249, 1.442695
        %v3253 = vpow.pop %v3252
        %v3254 = vsub.f32 %v3251, 1.0
        %v3255 = vsub.f32 %v3253, 1.0
        %v3256 = vsel %vm3246, %v3242, %v3254
        %v3257 = vsel %vm3247, %v3244, %v3255
        %v3258 = vld [vmem:[#allocation31] sm:$0xf]
        %v3259 = vld [vmem:[#allocation31 + $0x4] sm:$0xf]
        %v3260 = vld [vmem:[#allocation31 + $0x8] sm:$0xf]
        %v3261 = vld [vmem:[#allocation31 + $0xc] sm:$0xf]
        %v3262 = vld [vmem:[#allocation31 + $0x10] sm:$0xf]
        %v3263 = vld [vmem:[#allocation31 + $0x14] sm:$0xf]
        %v3264 = vld [vmem:[#allocation31 + $0x18] sm:$0xf]
        %v3265 = vld [vmem:[#allocation31 + $0x1c] sm:$0xf]
        %v3266 = vld [vmem:[#allocation31 + $0x20] sm:$0xf]
        %v3267 = vld [vmem:[#allocation31 + $0x24] sm:$0xf]
        %v3268 = vld [vmem:[#allocation31 + $0x28] sm:$0xf]
        %v3269 = vld [vmem:[#allocation31 + $0x2c] sm:$0xf]
        %v3270 = vld [vmem:[#allocation31 + $0x30] sm:$0xf]
        %v3271 = vld [vmem:[#allocation31 + $0x34] sm:$0xf]
        %v3272 = vld [vmem:[#allocation31 + $0x38] sm:$0xf]
        %v3273 = vld [vmem:[#allocation31 + $0x3c] sm:$0xf]
        %v3274 = vld [vmem:[#allocation31 + $0x40] sm:$0xf]
        %v3275 = vld [vmem:[#allocation31 + $0x44] sm:$0xf]
        %v3276 = vld [vmem:[#allocation31 + $0x48] sm:$0xf]
        %v3277 = vld [vmem:[#allocation31 + $0x4c] sm:$0xf]
        %v3278 = vld [vmem:[#allocation31 + $0x50] sm:$0xf]
        %v3279 = vld [vmem:[#allocation31 + $0x54] sm:$0xf]
        %v3280 = vld [vmem:[#allocation31 + $0x58] sm:$0xf]
        %v3281 = vld [vmem:[#allocation31 + $0x5c] sm:$0xf]
        %v3282 = vld [vmem:[%s27] sm:$0x1]
        %v3285 = vrot.slane %v3256, 7
        %v3286 = vrot.slane %v3257, 7
        %v3287 = vsel %vm1185, %v3285, %v3286
        %v3290 = vsel %vm1185, 0.0, %v3285
        %v3291 = vrot.slane %v3256, 1
        %v3292 = vrot.slane %v3257, 1
        %v3293 = vsel %vm1192, %v3291, %v3292
        %v3296 = vsel %vm1192, %v3292, 0.0
        %3297 = vrot.lane.b32.xlu0 %v3256, 64
        %v3298 = vpop.permute.xlu0 %3297
        %3299 = vrot.lane.b32.xlu0 %v3257, 64
        %v3300 = vpop.permute.xlu0 %3299
        %v3303 = vsel %vm1353, %v3290, %v3298
        %v3304 = vsel %vm1353, %v3287, %v3300
        %v3305 = vpack.c.bf16 %v3304, %v3303
        %v3306 = vpack.c.bf16 %v3296, %v3293
        %v3308 = vperm.slane %v3282, 0
        %v3334 = vunpack.c.l.b16 %v3258
        %v3335 = vunpack.c.l.b16 %v3259
        %v3336 = vunpack.c.l.b16 %v3260
        %v3337 = vunpack.c.l.b16 %v3261
        %v3338 = vunpack.c.l.b16 %v3262
        %v3339 = vunpack.c.l.b16 %v3263
        %v3340 = vunpack.c.l.b16 %v3264
        %v3341 = vunpack.c.l.b16 %v3265
        %v3342 = vunpack.c.l.b16 %v3266
        %v3343 = vunpack.c.l.b16 %v3267
        %v3344 = vunpack.c.l.b16 %v3268
        %v3345 = vunpack.c.l.b16 %v3269
        %v3346 = vunpack.c.l.b16 %v3270
        %v3347 = vunpack.c.l.b16 %v3271
        %v3348 = vunpack.c.l.b16 %v3272
        %v3349 = vunpack.c.l.b16 %v3273
        %v3350 = vunpack.c.l.b16 %v3274
        %v3351 = vunpack.c.l.b16 %v3275
        %v3352 = vunpack.c.l.b16 %v3276
        %v3353 = vunpack.c.l.b16 %v3277
        %v3354 = vunpack.c.l.b16 %v3278
        %v3355 = vunpack.c.l.b16 %v3279
        %v3356 = vunpack.c.l.b16 %v3280
        %v3357 = vunpack.c.l.b16 %v3281
        %v3358 = vpack.c.b16 %v3335, %v3334
        %v3359 = vpack.c.b16 %v3337, %v3336
        %v3360 = vpack.c.b16 %v3339, %v3338
        %v3361 = vpack.c.b16 %v3341, %v3340
        %v3362 = vpack.c.b16 %v3343, %v3342
        %v3363 = vpack.c.b16 %v3345, %v3344
        %v3364 = vpack.c.b16 %v3347, %v3346
        %v3365 = vpack.c.b16 %v3349, %v3348
        %v3366 = vpack.c.b16 %v3351, %v3350
        %v3367 = vpack.c.b16 %v3353, %v3352
        %v3368 = vpack.c.b16 %v3355, %v3354
        %v3369 = vpack.c.b16 %v3357, %v3356
        %v3383 = vsel %vm1353, %v3306, 0
        %3385 = vmatpush.bf16.msra.mxu0 %v3365
        %3386 = vmatpush.bf16.msra.mxu0 %v3364
        %3387 = vmatpush.bf16.msra.mxu0 %v3363
        %3388 = vmatpush.bf16.msra.mxu0 %v3362
        %3389 = vmatpush.bf16.msra.mxu0 %v3361
        %3390 = vmatpush.bf16.msra.mxu0 %v3360
        %3391 = vmatpush.bf16.msra.mxu0 %v3359
        %3392 = vmatpush.bf16.msra.mxu0 %v3358
        %3393 = vmatmul.bf16.gmra.mxu0 %v3305
        %v3394 = vpop.f32.mrf.mxu0
        %v3395 = vadd.f32 %v3308, %v3394
        %v3396 = vpop.f32.mrf.mxu0
        %v3397 = vadd.f32 %v3308, %v3396
        %3398 = vdwg.mxu0
        %3399 = vmatpush.bf16.msra.mxu0 0
        %3400 = vmatpush.bf16.msra.mxu0 0
        %3401 = vmatpush.bf16.msra.mxu0 0
        %3402 = vmatpush.bf16.msra.mxu0 0
        %3403 = vmatpush.bf16.msra.mxu0 %v3369
        %3404 = vmatpush.bf16.msra.mxu0 %v3368
        %3405 = vmatpush.bf16.msra.mxu0 %v3367
        %3406 = vmatpush.bf16.msra.mxu0 %v3366
        %3407 = vmatmul.bf16.gmra.mxu0 %v3383
        %v3408 = vpop.f32.mrf.mxu0
        %v3409 = vadd.f32 %v3395, %v3408
        %v3410 = vpop.f32.mrf.mxu0
        %v3411 = vadd.f32 %v3397, %v3410
        %3412 = vdwg.mxu0
        %3413 = vst.msk [vmem:[%s1160] sm:$0xff] %vm1211, %v3409
        %3414 = vst.msk [vmem:[%s1160 + $0x8] sm:$0xff] %vm1211, %v3411
        %p3415 = scmp.lt.s32.totalorder %s50, 1
        %s3416 = scalar_select %p3415, %s50, 1
        %s3417 = smul.addr %s3416, 2
        %s3418 = smul.addr %s3417, 8
        %s3419 = scalar_lea.vmem %s28, %s3418
        // Predicated region
        $region213: #{d_forward.1} parent=131 // pred_check
          %p3420 = pneg %p661
        $region214: #{d_forward.1} parent=131 // pred_check_branch
          %3422 = sbr.rel (%p3420) target = $region216
        $region215: #{d_forward.1} parent=131 // pred_region
          _
        $region216: #{d_forward.1} parent=131 // pred_fallthru
          _
      $region132: #{d_forward.1} parent=5 // pred_fallthru
        _
      %p3423 = scmp.le.s32.totalorder 2, %s45
      // Predicated region
      $region217: #{d_forward.1} parent=5 // pred_check
        %p3424 = pneg %p3423
      $region218: #{d_forward.1} parent=5 // pred_check_branch
        %3426 = sbr.rel (%p3424) target = $region220
      $region219: #{d_forward.1} parent=5 // pred_region
        %s3427 = ssub.s32 %s45, 2
        // Predicated region
        $region221: #{d_forward.1} parent=219 // pred_check
          %p3428 = pneg %p667
        $region222: #{d_forward.1} parent=219 // pred_check_branch
          %3430 = sbr.rel (%p3428) target = $region224
        $region223: #{d_forward.1} parent=219 // pred_region
          %p3431 = scmp.lt.s32.totalorder %s51, 1
          %s3432 = scalar_select %p3431, %s51, 1
          %s3433 = smul.addr %s3432, 2
          %s3434 = smul.addr %s3433, 8
          %s3435 = scalar_lea.vmem %s28, %s3434
        $region224: #{d_forward.1} parent=219 // pred_fallthru
          _
      $region220: #{d_forward.1} parent=5 // pred_fallthru
        _
    $region6: #{d_forward.1} parent=1 // loop_footer
      %s49 = sadd.s32 1, %s45
    $region7: #{d_forward.1} parent=1 // loop_footer_branch
      %44 = sbr.rel target = $region3
    $region8: #{d_forward.1} parent=1 // loop_exit
      _
    %3436 = vsyncpa [#allocation3], 1
    %s3437 = scalar_lea.sflag [#allocation3], 1
    %3438 = vsyncpa %s3437, 1
    %3439 = vsyncpa [#allocation5], 1
    %3440 = vsyncpa [#allocation8], 1
    %3441 = vsyncpa [#allocation11], 1
    %3442 = vsyncpa [#allocation14], 1
    %3443 = vsyncpa [#allocation17], 1
    %3444 = vsyncpa [#allocation20], 1
    %3445 = vsyncpa [#allocation23], 1
    %3446 = vsyncpa [#allocation26], 1
    %3447 = vsyncpa [#allocation29], 1
    %3448 = vsyncpa [#allocation32], 1

</llo_original>
